<compile_context>
chip_gen: v6e
topology: v6e:2x2x1
jax: 0.10.0
libtpu: 0.0.40
codegen_flags: <defaults>
</compile_context>

<pallas_src>
import functools
import math

import jax
import jax.numpy as jnp
from jax.experimental import pallas as pl
from jax.experimental.pallas import tpu as pltpu


VMEM_SPEC = pl.BlockSpec(memory_space=pltpu.MemorySpace.VMEM)
LOGITS_PAD = 128   # pad classifier output to a full lane width (unmasked vst)


# ----------------------------- fused kernel --------------------------------

def _layernorm(x, g, b):
    mean = jnp.mean(x, axis=-1, keepdims=True)
    var = jnp.mean((x - mean) ** 2, axis=-1, keepdims=True)
    return (x - mean) * jax.lax.rsqrt(var + 1e-12) * g + b


def _gelu(x):
    # TODO(synk): HF BERT 'gelu' is erf-based; tanh approximation used for
    # Mosaic-safe lowering (EUP tanh).
    return 0.5 * x * (1.0 + jnp.tanh(0.7978845608028654 * (x + 0.044715 * x * x * x)))


def _bert_topic_kernel(x_ref, mask_ref,
                       emb_g_ref, emb_b_ref,
                       wqkv_ref, bqkv_ref, wo_ref, bo_ref,
                       ln1_g_ref, ln1_b_ref,
                       wi_ref, bi_ref, wf_ref, bf_ref,
                       ln2_g_ref, ln2_b_ref,
                       pool_w_ref, pool_b_ref, fc_w_ref, fc_b_ref,
                       logits_ref, *, batch, seq, hidden, heads, layers):
    hd = hidden // heads
    scale = 1.0 / math.sqrt(hd)

    # Embedding LayerNorm (no zeros residual -- summed embeddings come in directly).
    x = _layernorm(x_ref[...], emb_g_ref[...], emb_b_ref[...])        # (B*S, H)

    # Additive attention mask rows, one (1, S) slice per batch element.
    mask_all = mask_ref[...]                                           # (B, S)
    mask_rows = [mask_all[bi:bi + 1, :] for bi in range(batch)]

    for l in range(layers):
        # ---- self-attention: fused QKV matmul + per-(batch,head) SDPA + out proj ----
        qkv = jnp.dot(x, wqkv_ref[l], preferred_element_type=jnp.float32) + bqkv_ref[l]

        ctx_rows = []
        for bi in range(batch):
            row0 = bi * seq
            head_outs = []
            for hi in range(heads):
                q_bh = qkv[row0:row0 + seq, 0 * hidden + hi * hd: 0 * hidden + (hi + 1) * hd]
                k_bh = qkv[row0:row0 + seq, 1 * hidden + hi * hd: 1 * hidden + (hi + 1) * hd]
                v_bh = qkv[row0:row0 + seq, 2 * hidden + hi * hd: 2 * hidden + (hi + 1) * hd]
                sc = jax.lax.dot_general(q_bh, k_bh, (((1,), (1,)), ((), ())),
                                         preferred_element_type=jnp.float32)
                sc = sc * scale + mask_rows[bi]
                sc = sc - jnp.max(sc, axis=-1, keepdims=True)
                p = jnp.exp(sc)
                p = p * pl.reciprocal(jnp.sum(p, axis=-1, keepdims=True), approx=True)
                head_outs.append(jnp.dot(p, v_bh, preferred_element_type=jnp.float32))
            ctx_rows.append(jnp.concatenate(head_outs, axis=-1))        # (S, H)
        ctx = jnp.concatenate(ctx_rows, axis=0)                         # (B*S, H)

        attn_out = jnp.dot(ctx, wo_ref[l], preferred_element_type=jnp.float32) + bo_ref[l]
        x1 = _layernorm(attn_out + x, ln1_g_ref[l], ln1_b_ref[l])

        # ---- feed-forward (gelu) + add & layernorm ----
        inter = _gelu(jnp.dot(x1, wi_ref[l], preferred_element_type=jnp.float32) + bi_ref[l])
        ffo = jnp.dot(inter, wf_ref[l], preferred_element_type=jnp.float32) + bf_ref[l]
        x = _layernorm(ffo + x1, ln2_g_ref[l], ln2_b_ref[l])

    # ---- pooler: tanh(W * hidden[:, 0] + b) on the CLS row of each sequence ----
    cls = jnp.concatenate([x[i * seq: i * seq + 1, :] for i in range(batch)], axis=0)  # (B, H)
    pooled = jnp.tanh(jnp.dot(cls, pool_w_ref[...], preferred_element_type=jnp.float32)
                      + pool_b_ref[...])

    # ---- classifier head (output padded to 128 lanes; wrapper slices to 20) ----
    logits_ref[...] = (jnp.dot(pooled, fc_w_ref[...], preferred_element_type=jnp.float32)
                       + fc_b_ref[...])


# ----------------------------- model wrapper --------------------------------

class Config:
    vocab_size = 50
    hidden = 32
    heads = 4
    layers = 2
    intermediate = 64
    max_pos = 16
    num_labels = 20


def init_params(key, cfg):
    keys = iter(jax.random.split(key, 64))

    def nrm(shape):
        return 0.02 * jax.random.normal(next(keys), shape, dtype=jnp.float32)

    h, inter, L = cfg.hidden, cfg.intermediate, cfg.layers
    params = {
        "word_emb": nrm((cfg.vocab_size, h)),
        "pos_emb": nrm((cfg.max_pos, h)),
        "type_emb": nrm((2, h)),
        "emb_ln_g": jnp.ones((1, h), jnp.float32),
        "emb_ln_b": jnp.zeros((1, h), jnp.float32),
        # Per-layer weights stacked along L; Q/K/V concatenated along the output dim.
        "wqkv": nrm((L, h, 3 * h)),
        "bqkv": jnp.zeros((L, 1, 3 * h), jnp.float32),
        "wo": nrm((L, h, h)),
        "bo": jnp.zeros((L, 1, h), jnp.float32),
        "ln1_g": jnp.ones((L, 1, h), jnp.float32),
        "ln1_b": jnp.zeros((L, 1, h), jnp.float32),
        "wi": nrm((L, h, inter)),
        "bi": jnp.zeros((L, 1, inter), jnp.float32),
        "wf": nrm((L, inter, h)),
        "bf": jnp.zeros((L, 1, h), jnp.float32),
        "ln2_g": jnp.ones((L, 1, h), jnp.float32),
        "ln2_b": jnp.zeros((L, 1, h), jnp.float32),
        "pool_w": nrm((h, h)),
        "pool_b": jnp.zeros((1, h), jnp.float32),
        # Classifier weight padded num_labels -> 128 lanes (zeros); sliced in the wrapper.
        "fc_w": jnp.pad(nrm((h, cfg.num_labels)),
                        ((0, 0), (0, LOGITS_PAD - cfg.num_labels))),
        "fc_b": jnp.zeros((1, LOGITS_PAD), jnp.float32),
    }
    return params


def topic_model_forward(params, cfg, input_ids, attention_mask):
    b, s = input_ids.shape
    h = cfg.hidden

    # --- embeddings (gathers are plain-JAX glue; everything else in ONE kernel) ---
    x = (params["word_emb"][input_ids]                        # (B,S,H)
         + params["pos_emb"][:s][None, :, :]
         + params["type_emb"][0][None, None, :]               # token_type_ids == 0
         ).reshape(b * s, h)

    # BERT extended attention mask: (1 - mask) * -10000, kept as (B, S).
    mask_bias = (1.0 - attention_mask.astype(jnp.float32)) * -10000.0

    kernel = functools.partial(
        _bert_topic_kernel,
        batch=b, seq=s, hidden=h, heads=cfg.heads, layers=cfg.layers)

    logits_padded = pl.pallas_call(
        kernel,
        out_shape=jax.ShapeDtypeStruct((b, LOGITS_PAD), jnp.float32),
        in_specs=[VMEM_SPEC] * 20,
        out_specs=VMEM_SPEC,
    )(x, mask_bias,
      params["emb_ln_g"], params["emb_ln_b"],
      params["wqkv"], params["bqkv"], params["wo"], params["bo"],
      params["ln1_g"], params["ln1_b"],
      params["wi"], params["bi"], params["wf"], params["bf"],
      params["ln2_g"], params["ln2_b"],
      params["pool_w"], params["pool_b"], params["fc_w"], params["fc_b"])

    return logits_padded[:, :cfg.num_labels]


if __name__ == "__main__":
    cfg = Config()
    key = jax.random.PRNGKey(0)
    pkey, ikey = jax.random.split(key)
    params = init_params(pkey, cfg)

    B, S = 2, 8
    input_ids = jax.random.randint(ikey, (B, S), 0, cfg.vocab_size, dtype=jnp.int32)
    attention_mask = jnp.ones((B, S), dtype=jnp.int32).at[1, 6:].set(0)

    logits = topic_model_forward(params, cfg, input_ids, attention_mask)
    jax.block_until_ready(logits)
    assert logits.shape == (B, cfg.num_labels) and logits.dtype == jnp.float32
    print("KERNEL_OK")
</pallas_src>

<mosaic_0001>
module attributes {stable_mosaic.version = 11 : i64} {
  func.func @_bert_topic_kernel(%arg0: memref<16x32xf32, #tpu.memory_space<vmem>>, %arg1: memref<2x8xf32, #tpu.memory_space<vmem>>, %arg2: memref<1x32xf32, #tpu.memory_space<vmem>>, %arg3: memref<1x32xf32, #tpu.memory_space<vmem>>, %arg4: memref<2x32x96xf32, #tpu.memory_space<vmem>>, %arg5: memref<2x1x96xf32, #tpu.memory_space<vmem>>, %arg6: memref<2x32x32xf32, #tpu.memory_space<vmem>>, %arg7: memref<2x1x32xf32, #tpu.memory_space<vmem>>, %arg8: memref<2x1x32xf32, #tpu.memory_space<vmem>>, %arg9: memref<2x1x32xf32, #tpu.memory_space<vmem>>, %arg10: memref<2x32x64xf32, #tpu.memory_space<vmem>>, %arg11: memref<2x1x64xf32, #tpu.memory_space<vmem>>, %arg12: memref<2x64x32xf32, #tpu.memory_space<vmem>>, %arg13: memref<2x1x32xf32, #tpu.memory_space<vmem>>, %arg14: memref<2x1x32xf32, #tpu.memory_space<vmem>>, %arg15: memref<2x1x32xf32, #tpu.memory_space<vmem>>, %arg16: memref<32x32xf32, #tpu.memory_space<vmem>>, %arg17: memref<1x32xf32, #tpu.memory_space<vmem>>, %arg18: memref<32x128xf32, #tpu.memory_space<vmem>>, %arg19: memref<1x128xf32, #tpu.memory_space<vmem>>, %arg20: memref<2x128xf32, #tpu.memory_space<vmem>>) attributes {dimension_semantics = [], scalar_prefetch = 0 : i64, scratch_operands = 0 : i64, tpu.core_type = #tpu.core_type<tc>} {
    %c0 = arith.constant 0 : index
    %c0_0 = arith.constant 0 : index
    %0 = vector.load %arg0[%c0, %c0_0] : memref<16x32xf32, #tpu.memory_space<vmem>>, vector<16x32xf32>
    %c0_1 = arith.constant 0 : index
    %c0_2 = arith.constant 0 : index
    %1 = vector.load %arg2[%c0_1, %c0_2] : memref<1x32xf32, #tpu.memory_space<vmem>>, vector<1x32xf32>
    %c0_3 = arith.constant 0 : index
    %c0_4 = arith.constant 0 : index
    %2 = vector.load %arg3[%c0_3, %c0_4] : memref<1x32xf32, #tpu.memory_space<vmem>>, vector<1x32xf32>
    %cst = arith.constant dense<0.000000e+00> : vector<16xf32>
    %3 = vector.multi_reduction <add>, %0, %cst [1] : vector<16x32xf32> to vector<16xf32>
    %4 = vector.shape_cast %3 : vector<16xf32> to vector<16x1xf32>
    %cst_5 = arith.constant 3.200000e+01 : f32
    %5 = vector.broadcast %cst_5 : f32 to vector<16x1xf32>
    %6 = arith.divf %4, %5 : vector<16x1xf32>
    %7 = vector.broadcast %6 : vector<16x1xf32> to vector<16x32xf32>
    %8 = arith.subf %0, %7 : vector<16x32xf32>
    %9 = arith.mulf %8, %8 : vector<16x32xf32>
    %cst_6 = arith.constant dense<0.000000e+00> : vector<16xf32>
    %10 = vector.multi_reduction <add>, %9, %cst_6 [1] : vector<16x32xf32> to vector<16xf32>
    %11 = vector.shape_cast %10 : vector<16xf32> to vector<16x1xf32>
    %cst_7 = arith.constant 3.200000e+01 : f32
    %12 = vector.broadcast %cst_7 : f32 to vector<16x1xf32>
    %13 = arith.divf %11, %12 : vector<16x1xf32>
    %14 = vector.broadcast %6 : vector<16x1xf32> to vector<16x32xf32>
    %15 = arith.subf %0, %14 : vector<16x32xf32>
    %cst_8 = arith.constant 9.99999996E-13 : f32
    %16 = vector.broadcast %cst_8 : f32 to vector<16x1xf32>
    %17 = arith.addf %13, %16 : vector<16x1xf32>
    %18 = math.rsqrt %17 : vector<16x1xf32>
    %19 = vector.broadcast %18 : vector<16x1xf32> to vector<16x32xf32>
    %20 = arith.mulf %15, %19 : vector<16x32xf32>
    %21 = vector.broadcast %1 : vector<1x32xf32> to vector<16x32xf32>
    %22 = arith.mulf %20, %21 : vector<16x32xf32>
    %23 = vector.broadcast %2 : vector<1x32xf32> to vector<16x32xf32>
    %24 = arith.addf %22, %23 : vector<16x32xf32>
    %c0_9 = arith.constant 0 : index
    %c0_10 = arith.constant 0 : index
    %25 = vector.load %arg1[%c0_9, %c0_10] : memref<2x8xf32, #tpu.memory_space<vmem>>, vector<2x8xf32>
    %26 = vector.extract_strided_slice %25 {offsets = [0, 0], sizes = [1, 8], strides = [1, 1]} : vector<2x8xf32> to vector<1x8xf32>
    %27 = vector.extract_strided_slice %25 {offsets = [1, 0], sizes = [1, 8], strides = [1, 1]} : vector<2x8xf32> to vector<1x8xf32>
    %c0_11 = arith.constant 0 : index
    %c0_12 = arith.constant 0 : index
    %c0_13 = arith.constant 0 : index
    %28 = vector.load %arg4[%c0_11, %c0_12, %c0_13] : memref<2x32x96xf32, #tpu.memory_space<vmem>>, vector<1x32x96xf32>
    %29 = vector.shape_cast %28 : vector<1x32x96xf32> to vector<32x96xf32>
    %cst_14 = arith.constant dense<0.000000e+00> : vector<16x96xf32>
    %30 = tpu.matmul %24, %29, %cst_14 {dimension_numbers = #tpu.dot_dimension_numbers<[1], [0], [0], [1], [0, 0, 1, 1], [], []>} : vector<16x32xf32>, vector<32x96xf32>, vector<16x96xf32> -> vector<16x96xf32>
    %c0_15 = arith.constant 0 : index
    %c0_16 = arith.constant 0 : index
    %c0_17 = arith.constant 0 : index
    %31 = vector.load %arg5[%c0_15, %c0_16, %c0_17] : memref<2x1x96xf32, #tpu.memory_space<vmem>>, vector<1x1x96xf32>
    %32 = vector.shape_cast %31 : vector<1x1x96xf32> to vector<1x96xf32>
    %33 = vector.broadcast %32 : vector<1x96xf32> to vector<16x96xf32>
    %34 = arith.addf %30, %33 : vector<16x96xf32>
    %35 = vector.extract_strided_slice %34 {offsets = [0, 0], sizes = [8, 8], strides = [1, 1]} : vector<16x96xf32> to vector<8x8xf32>
    %36 = vector.extract_strided_slice %34 {offsets = [0, 32], sizes = [8, 8], strides = [1, 1]} : vector<16x96xf32> to vector<8x8xf32>
    %37 = vector.extract_strided_slice %34 {offsets = [0, 64], sizes = [8, 8], strides = [1, 1]} : vector<16x96xf32> to vector<8x8xf32>
    %cst_18 = arith.constant dense<0.000000e+00> : vector<8x8xf32>
    %38 = tpu.matmul %35, %36, %cst_18 {dimension_numbers = #tpu.dot_dimension_numbers<[1], [1], [0], [0], [0, 0, 1, 0], [], []>} : vector<8x8xf32>, vector<8x8xf32>, vector<8x8xf32> -> vector<8x8xf32>
    %cst_19 = arith.constant 0.353553385 : f32
    %39 = vector.broadcast %cst_19 : f32 to vector<8x8xf32>
    %40 = arith.mulf %38, %39 : vector<8x8xf32>
    %41 = vector.broadcast %26 : vector<1x8xf32> to vector<8x8xf32>
    %42 = arith.addf %40, %41 : vector<8x8xf32>
    %cst_20 = arith.constant dense<0xFF800000> : vector<8xf32>
    %43 = vector.multi_reduction <maximumf>, %42, %cst_20 [1] : vector<8x8xf32> to vector<8xf32>
    %44 = vector.shape_cast %43 : vector<8xf32> to vector<8x1xf32>
    %45 = vector.broadcast %44 : vector<8x1xf32> to vector<8x8xf32>
    %46 = arith.subf %42, %45 : vector<8x8xf32>
    %47 = math.exp %46 : vector<8x8xf32>
    %cst_21 = arith.constant dense<0.000000e+00> : vector<8xf32>
    %48 = vector.multi_reduction <add>, %47, %cst_21 [1] : vector<8x8xf32> to vector<8xf32>
    %49 = vector.shape_cast %48 : vector<8xf32> to vector<8x1xf32>
    %50 = tpu.reciprocal %49 {approx = true} : vector<8x1xf32> -> vector<8x1xf32>
    %51 = vector.broadcast %50 : vector<8x1xf32> to vector<8x8xf32>
    %52 = arith.mulf %47, %51 : vector<8x8xf32>
    %cst_22 = arith.constant dense<0.000000e+00> : vector<8x8xf32>
    %53 = tpu.matmul %52, %37, %cst_22 {dimension_numbers = #tpu.dot_dimension_numbers<[1], [0], [0], [1], [0, 0, 1, 1], [], []>} : vector<8x8xf32>, vector<8x8xf32>, vector<8x8xf32> -> vector<8x8xf32>
    %54 = vector.extract_strided_slice %34 {offsets = [0, 8], sizes = [8, 8], strides = [1, 1]} : vector<16x96xf32> to vector<8x8xf32>
    %55 = vector.extract_strided_slice %34 {offsets = [0, 40], sizes = [8, 8], strides = [1, 1]} : vector<16x96xf32> to vector<8x8xf32>
    %56 = vector.extract_strided_slice %34 {offsets = [0, 72], sizes = [8, 8], strides = [1, 1]} : vector<16x96xf32> to vector<8x8xf32>
    %cst_23 = arith.constant dense<0.000000e+00> : vector<8x8xf32>
    %57 = tpu.matmul %54, %55, %cst_23 {dimension_numbers = #tpu.dot_dimension_numbers<[1], [1], [0], [0], [0, 0, 1, 0], [], []>} : vector<8x8xf32>, vector<8x8xf32>, vector<8x8xf32> -> vector<8x8xf32>
    %cst_24 = arith.constant 0.353553385 : f32
    %58 = vector.broadcast %cst_24 : f32 to vector<8x8xf32>
    %59 = arith.mulf %57, %58 : vector<8x8xf32>
    %60 = vector.broadcast %26 : vector<1x8xf32> to vector<8x8xf32>
    %61 = arith.addf %59, %60 : vector<8x8xf32>
    %cst_25 = arith.constant dense<0xFF800000> : vector<8xf32>
    %62 = vector.multi_reduction <maximumf>, %61, %cst_25 [1] : vector<8x8xf32> to vector<8xf32>
    %63 = vector.shape_cast %62 : vector<8xf32> to vector<8x1xf32>
    %64 = vector.broadcast %63 : vector<8x1xf32> to vector<8x8xf32>
    %65 = arith.subf %61, %64 : vector<8x8xf32>
    %66 = math.exp %65 : vector<8x8xf32>
    %cst_26 = arith.constant dense<0.000000e+00> : vector<8xf32>
    %67 = vector.multi_reduction <add>, %66, %cst_26 [1] : vector<8x8xf32> to vector<8xf32>
    %68 = vector.shape_cast %67 : vector<8xf32> to vector<8x1xf32>
    %69 = tpu.reciprocal %68 {approx = true} : vector<8x1xf32> -> vector<8x1xf32>
    %70 = vector.broadcast %69 : vector<8x1xf32> to vector<8x8xf32>
    %71 = arith.mulf %66, %70 : vector<8x8xf32>
    %cst_27 = arith.constant dense<0.000000e+00> : vector<8x8xf32>
    %72 = tpu.matmul %71, %56, %cst_27 {dimension_numbers = #tpu.dot_dimension_numbers<[1], [0], [0], [1], [0, 0, 1, 1], [], []>} : vector<8x8xf32>, vector<8x8xf32>, vector<8x8xf32> -> vector<8x8xf32>
    %73 = vector.extract_strided_slice %34 {offsets = [0, 16], sizes = [8, 8], strides = [1, 1]} : vector<16x96xf32> to vector<8x8xf32>
    %74 = vector.extract_strided_slice %34 {offsets = [0, 48], sizes = [8, 8], strides = [1, 1]} : vector<16x96xf32> to vector<8x8xf32>
    %75 = vector.extract_strided_slice %34 {offsets = [0, 80], sizes = [8, 8], strides = [1, 1]} : vector<16x96xf32> to vector<8x8xf32>
    %cst_28 = arith.constant dense<0.000000e+00> : vector<8x8xf32>
    %76 = tpu.matmul %73, %74, %cst_28 {dimension_numbers = #tpu.dot_dimension_numbers<[1], [1], [0], [0], [0, 0, 1, 0], [], []>} : vector<8x8xf32>, vector<8x8xf32>, vector<8x8xf32> -> vector<8x8xf32>
    %cst_29 = arith.constant 0.353553385 : f32
    %77 = vector.broadcast %cst_29 : f32 to vector<8x8xf32>
    %78 = arith.mulf %76, %77 : vector<8x8xf32>
    %79 = vector.broadcast %26 : vector<1x8xf32> to vector<8x8xf32>
    %80 = arith.addf %78, %79 : vector<8x8xf32>
    %cst_30 = arith.constant dense<0xFF800000> : vector<8xf32>
    %81 = vector.multi_reduction <maximumf>, %80, %cst_30 [1] : vector<8x8xf32> to vector<8xf32>
    %82 = vector.shape_cast %81 : vector<8xf32> to vector<8x1xf32>
    %83 = vector.broadcast %82 : vector<8x1xf32> to vector<8x8xf32>
    %84 = arith.subf %80, %83 : vector<8x8xf32>
    %85 = math.exp %84 : vector<8x8xf32>
    %cst_31 = arith.constant dense<0.000000e+00> : vector<8xf32>
    %86 = vector.multi_reduction <add>, %85, %cst_31 [1] : vector<8x8xf32> to vector<8xf32>
    %87 = vector.shape_cast %86 : vector<8xf32> to vector<8x1xf32>
    %88 = tpu.reciprocal %87 {approx = true} : vector<8x1xf32> -> vector<8x1xf32>
    %89 = vector.broadcast %88 : vector<8x1xf32> to vector<8x8xf32>
    %90 = arith.mulf %85, %89 : vector<8x8xf32>
    %cst_32 = arith.constant dense<0.000000e+00> : vector<8x8xf32>
    %91 = tpu.matmul %90, %75, %cst_32 {dimension_numbers = #tpu.dot_dimension_numbers<[1], [0], [0], [1], [0, 0, 1, 1], [], []>} : vector<8x8xf32>, vector<8x8xf32>, vector<8x8xf32> -> vector<8x8xf32>
    %92 = vector.extract_strided_slice %34 {offsets = [0, 24], sizes = [8, 8], strides = [1, 1]} : vector<16x96xf32> to vector<8x8xf32>
    %93 = vector.extract_strided_slice %34 {offsets = [0, 56], sizes = [8, 8], strides = [1, 1]} : vector<16x96xf32> to vector<8x8xf32>
    %94 = vector.extract_strided_slice %34 {offsets = [0, 88], sizes = [8, 8], strides = [1, 1]} : vector<16x96xf32> to vector<8x8xf32>
    %cst_33 = arith.constant dense<0.000000e+00> : vector<8x8xf32>
    %95 = tpu.matmul %92, %93, %cst_33 {dimension_numbers = #tpu.dot_dimension_numbers<[1], [1], [0], [0], [0, 0, 1, 0], [], []>} : vector<8x8xf32>, vector<8x8xf32>, vector<8x8xf32> -> vector<8x8xf32>
    %cst_34 = arith.constant 0.353553385 : f32
    %96 = vector.broadcast %cst_34 : f32 to vector<8x8xf32>
    %97 = arith.mulf %95, %96 : vector<8x8xf32>
    %98 = vector.broadcast %26 : vector<1x8xf32> to vector<8x8xf32>
    %99 = arith.addf %97, %98 : vector<8x8xf32>
    %cst_35 = arith.constant dense<0xFF800000> : vector<8xf32>
    %100 = vector.multi_reduction <maximumf>, %99, %cst_35 [1] : vector<8x8xf32> to vector<8xf32>
    %101 = vector.shape_cast %100 : vector<8xf32> to vector<8x1xf32>
    %102 = vector.broadcast %101 : vector<8x1xf32> to vector<8x8xf32>
    %103 = arith.subf %99, %102 : vector<8x8xf32>
    %104 = math.exp %103 : vector<8x8xf32>
    %cst_36 = arith.constant dense<0.000000e+00> : vector<8xf32>
    %105 = vector.multi_reduction <add>, %104, %cst_36 [1] : vector<8x8xf32> to vector<8xf32>
    %106 = vector.shape_cast %105 : vector<8xf32> to vector<8x1xf32>
    %107 = tpu.reciprocal %106 {approx = true} : vector<8x1xf32> -> vector<8x1xf32>
    %108 = vector.broadcast %107 : vector<8x1xf32> to vector<8x8xf32>
    %109 = arith.mulf %104, %108 : vector<8x8xf32>
    %cst_37 = arith.constant dense<0.000000e+00> : vector<8x8xf32>
    %110 = tpu.matmul %109, %94, %cst_37 {dimension_numbers = #tpu.dot_dimension_numbers<[1], [0], [0], [1], [0, 0, 1, 1], [], []>} : vector<8x8xf32>, vector<8x8xf32>, vector<8x8xf32> -> vector<8x8xf32>
    %111 = tpu.concatenate %53, %72, %91, %110 in 1 : vector<8x8xf32>, vector<8x8xf32>, vector<8x8xf32>, vector<8x8xf32> -> vector<8x32xf32>
    %112 = vector.extract_strided_slice %34 {offsets = [8, 0], sizes = [8, 8], strides = [1, 1]} : vector<16x96xf32> to vector<8x8xf32>
    %113 = vector.extract_strided_slice %34 {offsets = [8, 32], sizes = [8, 8], strides = [1, 1]} : vector<16x96xf32> to vector<8x8xf32>
    %114 = vector.extract_strided_slice %34 {offsets = [8, 64], sizes = [8, 8], strides = [1, 1]} : vector<16x96xf32> to vector<8x8xf32>
    %cst_38 = arith.constant dense<0.000000e+00> : vector<8x8xf32>
    %115 = tpu.matmul %112, %113, %cst_38 {dimension_numbers = #tpu.dot_dimension_numbers<[1], [1], [0], [0], [0, 0, 1, 0], [], []>} : vector<8x8xf32>, vector<8x8xf32>, vector<8x8xf32> -> vector<8x8xf32>
    %cst_39 = arith.constant 0.353553385 : f32
    %116 = vector.broadcast %cst_39 : f32 to vector<8x8xf32>
    %117 = arith.mulf %115, %116 : vector<8x8xf32>
    %118 = vector.broadcast %27 : vector<1x8xf32> to vector<8x8xf32>
    %119 = arith.addf %117, %118 : vector<8x8xf32>
    %cst_40 = arith.constant dense<0xFF800000> : vector<8xf32>
    %120 = vector.multi_reduction <maximumf>, %119, %cst_40 [1] : vector<8x8xf32> to vector<8xf32>
    %121 = vector.shape_cast %120 : vector<8xf32> to vector<8x1xf32>
    %122 = vector.broadcast %121 : vector<8x1xf32> to vector<8x8xf32>
    %123 = arith.subf %119, %122 : vector<8x8xf32>
    %124 = math.exp %123 : vector<8x8xf32>
    %cst_41 = arith.constant dense<0.000000e+00> : vector<8xf32>
    %125 = vector.multi_reduction <add>, %124, %cst_41 [1] : vector<8x8xf32> to vector<8xf32>
    %126 = vector.shape_cast %125 : vector<8xf32> to vector<8x1xf32>
    %127 = tpu.reciprocal %126 {approx = true} : vector<8x1xf32> -> vector<8x1xf32>
    %128 = vector.broadcast %127 : vector<8x1xf32> to vector<8x8xf32>
    %129 = arith.mulf %124, %128 : vector<8x8xf32>
    %cst_42 = arith.constant dense<0.000000e+00> : vector<8x8xf32>
    %130 = tpu.matmul %129, %114, %cst_42 {dimension_numbers = #tpu.dot_dimension_numbers<[1], [0], [0], [1], [0, 0, 1, 1], [], []>} : vector<8x8xf32>, vector<8x8xf32>, vector<8x8xf32> -> vector<8x8xf32>
    %131 = vector.extract_strided_slice %34 {offsets = [8, 8], sizes = [8, 8], strides = [1, 1]} : vector<16x96xf32> to vector<8x8xf32>
    %132 = vector.extract_strided_slice %34 {offsets = [8, 40], sizes = [8, 8], strides = [1, 1]} : vector<16x96xf32> to vector<8x8xf32>
    %133 = vector.extract_strided_slice %34 {offsets = [8, 72], sizes = [8, 8], strides = [1, 1]} : vector<16x96xf32> to vector<8x8xf32>
    %cst_43 = arith.constant dense<0.000000e+00> : vector<8x8xf32>
    %134 = tpu.matmul %131, %132, %cst_43 {dimension_numbers = #tpu.dot_dimension_numbers<[1], [1], [0], [0], [0, 0, 1, 0], [], []>} : vector<8x8xf32>, vector<8x8xf32>, vector<8x8xf32> -> vector<8x8xf32>
    %cst_44 = arith.constant 0.353553385 : f32
    %135 = vector.broadcast %cst_44 : f32 to vector<8x8xf32>
    %136 = arith.mulf %134, %135 : vector<8x8xf32>
    %137 = vector.broadcast %27 : vector<1x8xf32> to vector<8x8xf32>
    %138 = arith.addf %136, %137 : vector<8x8xf32>
    %cst_45 = arith.constant dense<0xFF800000> : vector<8xf32>
    %139 = vector.multi_reduction <maximumf>, %138, %cst_45 [1] : vector<8x8xf32> to vector<8xf32>
    %140 = vector.shape_cast %139 : vector<8xf32> to vector<8x1xf32>
    %141 = vector.broadcast %140 : vector<8x1xf32> to vector<8x8xf32>
    %142 = arith.subf %138, %141 : vector<8x8xf32>
    %143 = math.exp %142 : vector<8x8xf32>
    %cst_46 = arith.constant dense<0.000000e+00> : vector<8xf32>
    %144 = vector.multi_reduction <add>, %143, %cst_46 [1] : vector<8x8xf32> to vector<8xf32>
    %145 = vector.shape_cast %144 : vector<8xf32> to vector<8x1xf32>
    %146 = tpu.reciprocal %145 {approx = true} : vector<8x1xf32> -> vector<8x1xf32>
    %147 = vector.broadcast %146 : vector<8x1xf32> to vector<8x8xf32>
    %148 = arith.mulf %143, %147 : vector<8x8xf32>
    %cst_47 = arith.constant dense<0.000000e+00> : vector<8x8xf32>
    %149 = tpu.matmul %148, %133, %cst_47 {dimension_numbers = #tpu.dot_dimension_numbers<[1], [0], [0], [1], [0, 0, 1, 1], [], []>} : vector<8x8xf32>, vector<8x8xf32>, vector<8x8xf32> -> vector<8x8xf32>
    %150 = vector.extract_strided_slice %34 {offsets = [8, 16], sizes = [8, 8], strides = [1, 1]} : vector<16x96xf32> to vector<8x8xf32>
    %151 = vector.extract_strided_slice %34 {offsets = [8, 48], sizes = [8, 8], strides = [1, 1]} : vector<16x96xf32> to vector<8x8xf32>
    %152 = vector.extract_strided_slice %34 {offsets = [8, 80], sizes = [8, 8], strides = [1, 1]} : vector<16x96xf32> to vector<8x8xf32>
    %cst_48 = arith.constant dense<0.000000e+00> : vector<8x8xf32>
    %153 = tpu.matmul %150, %151, %cst_48 {dimension_numbers = #tpu.dot_dimension_numbers<[1], [1], [0], [0], [0, 0, 1, 0], [], []>} : vector<8x8xf32>, vector<8x8xf32>, vector<8x8xf32> -> vector<8x8xf32>
    %cst_49 = arith.constant 0.353553385 : f32
    %154 = vector.broadcast %cst_49 : f32 to vector<8x8xf32>
    %155 = arith.mulf %153, %154 : vector<8x8xf32>
    %156 = vector.broadcast %27 : vector<1x8xf32> to vector<8x8xf32>
    %157 = arith.addf %155, %156 : vector<8x8xf32>
    %cst_50 = arith.constant dense<0xFF800000> : vector<8xf32>
    %158 = vector.multi_reduction <maximumf>, %157, %cst_50 [1] : vector<8x8xf32> to vector<8xf32>
    %159 = vector.shape_cast %158 : vector<8xf32> to vector<8x1xf32>
    %160 = vector.broadcast %159 : vector<8x1xf32> to vector<8x8xf32>
    %161 = arith.subf %157, %160 : vector<8x8xf32>
    %162 = math.exp %161 : vector<8x8xf32>
    %cst_51 = arith.constant dense<0.000000e+00> : vector<8xf32>
    %163 = vector.multi_reduction <add>, %162, %cst_51 [1] : vector<8x8xf32> to vector<8xf32>
    %164 = vector.shape_cast %163 : vector<8xf32> to vector<8x1xf32>
    %165 = tpu.reciprocal %164 {approx = true} : vector<8x1xf32> -> vector<8x1xf32>
    %166 = vector.broadcast %165 : vector<8x1xf32> to vector<8x8xf32>
    %167 = arith.mulf %162, %166 : vector<8x8xf32>
    %cst_52 = arith.constant dense<0.000000e+00> : vector<8x8xf32>
    %168 = tpu.matmul %167, %152, %cst_52 {dimension_numbers = #tpu.dot_dimension_numbers<[1], [0], [0], [1], [0, 0, 1, 1], [], []>} : vector<8x8xf32>, vector<8x8xf32>, vector<8x8xf32> -> vector<8x8xf32>
    %169 = vector.extract_strided_slice %34 {offsets = [8, 24], sizes = [8, 8], strides = [1, 1]} : vector<16x96xf32> to vector<8x8xf32>
    %170 = vector.extract_strided_slice %34 {offsets = [8, 56], sizes = [8, 8], strides = [1, 1]} : vector<16x96xf32> to vector<8x8xf32>
    %171 = vector.extract_strided_slice %34 {offsets = [8, 88], sizes = [8, 8], strides = [1, 1]} : vector<16x96xf32> to vector<8x8xf32>
    %cst_53 = arith.constant dense<0.000000e+00> : vector<8x8xf32>
    %172 = tpu.matmul %169, %170, %cst_53 {dimension_numbers = #tpu.dot_dimension_numbers<[1], [1], [0], [0], [0, 0, 1, 0], [], []>} : vector<8x8xf32>, vector<8x8xf32>, vector<8x8xf32> -> vector<8x8xf32>
    %cst_54 = arith.constant 0.353553385 : f32
    %173 = vector.broadcast %cst_54 : f32 to vector<8x8xf32>
    %174 = arith.mulf %172, %173 : vector<8x8xf32>
    %175 = vector.broadcast %27 : vector<1x8xf32> to vector<8x8xf32>
    %176 = arith.addf %174, %175 : vector<8x8xf32>
    %cst_55 = arith.constant dense<0xFF800000> : vector<8xf32>
    %177 = vector.multi_reduction <maximumf>, %176, %cst_55 [1] : vector<8x8xf32> to vector<8xf32>
    %178 = vector.shape_cast %177 : vector<8xf32> to vector<8x1xf32>
    %179 = vector.broadcast %178 : vector<8x1xf32> to vector<8x8xf32>
    %180 = arith.subf %176, %179 : vector<8x8xf32>
    %181 = math.exp %180 : vector<8x8xf32>
    %cst_56 = arith.constant dense<0.000000e+00> : vector<8xf32>
    %182 = vector.multi_reduction <add>, %181, %cst_56 [1] : vector<8x8xf32> to vector<8xf32>
    %183 = vector.shape_cast %182 : vector<8xf32> to vector<8x1xf32>
    %184 = tpu.reciprocal %183 {approx = true} : vector<8x1xf32> -> vector<8x1xf32>
    %185 = vector.broadcast %184 : vector<8x1xf32> to vector<8x8xf32>
    %186 = arith.mulf %181, %185 : vector<8x8xf32>
    %cst_57 = arith.constant dense<0.000000e+00> : vector<8x8xf32>
    %187 = tpu.matmul %186, %171, %cst_57 {dimension_numbers = #tpu.dot_dimension_numbers<[1], [0], [0], [1], [0, 0, 1, 1], [], []>} : vector<8x8xf32>, vector<8x8xf32>, vector<8x8xf32> -> vector<8x8xf32>
    %188 = tpu.concatenate %130, %149, %168, %187 in 1 : vector<8x8xf32>, vector<8x8xf32>, vector<8x8xf32>, vector<8x8xf32> -> vector<8x32xf32>
    %189 = tpu.concatenate %111, %188 in 0 : vector<8x32xf32>, vector<8x32xf32> -> vector<16x32xf32>
    %c0_58 = arith.constant 0 : index
    %c0_59 = arith.constant 0 : index
    %c0_60 = arith.constant 0 : index
    %190 = vector.load %arg6[%c0_58, %c0_59, %c0_60] : memref<2x32x32xf32, #tpu.memory_space<vmem>>, vector<1x32x32xf32>
    %191 = vector.shape_cast %190 : vector<1x32x32xf32> to vector<32x32xf32>
    %cst_61 = arith.constant dense<0.000000e+00> : vector<16x32xf32>
    %192 = tpu.matmul %189, %191, %cst_61 {dimension_numbers = #tpu.dot_dimension_numbers<[1], [0], [0], [1], [0, 0, 1, 1], [], []>} : vector<16x32xf32>, vector<32x32xf32>, vector<16x32xf32> -> vector<16x32xf32>
    %c0_62 = arith.constant 0 : index
    %c0_63 = arith.constant 0 : index
    %c0_64 = arith.constant 0 : index
    %193 = vector.load %arg7[%c0_62, %c0_63, %c0_64] : memref<2x1x32xf32, #tpu.memory_space<vmem>>, vector<1x1x32xf32>
    %194 = vector.shape_cast %193 : vector<1x1x32xf32> to vector<1x32xf32>
    %195 = vector.broadcast %194 : vector<1x32xf32> to vector<16x32xf32>
    %196 = arith.addf %192, %195 : vector<16x32xf32>
    %197 = arith.addf %196, %24 : vector<16x32xf32>
    %c0_65 = arith.constant 0 : index
    %c0_66 = arith.constant 0 : index
    %c0_67 = arith.constant 0 : index
    %198 = vector.load %arg8[%c0_65, %c0_66, %c0_67] : memref<2x1x32xf32, #tpu.memory_space<vmem>>, vector<1x1x32xf32>
    %199 = vector.shape_cast %198 : vector<1x1x32xf32> to vector<1x32xf32>
    %c0_68 = arith.constant 0 : index
    %c0_69 = arith.constant 0 : index
    %c0_70 = arith.constant 0 : index
    %200 = vector.load %arg9[%c0_68, %c0_69, %c0_70] : memref<2x1x32xf32, #tpu.memory_space<vmem>>, vector<1x1x32xf32>
    %201 = vector.shape_cast %200 : vector<1x1x32xf32> to vector<1x32xf32>
    %cst_71 = arith.constant dense<0.000000e+00> : vector<16xf32>
    %202 = vector.multi_reduction <add>, %197, %cst_71 [1] : vector<16x32xf32> to vector<16xf32>
    %203 = vector.shape_cast %202 : vector<16xf32> to vector<16x1xf32>
    %cst_72 = arith.constant 3.200000e+01 : f32
    %204 = vector.broadcast %cst_72 : f32 to vector<16x1xf32>
    %205 = arith.divf %203, %204 : vector<16x1xf32>
    %206 = vector.broadcast %205 : vector<16x1xf32> to vector<16x32xf32>
    %207 = arith.subf %197, %206 : vector<16x32xf32>
    %208 = arith.mulf %207, %207 : vector<16x32xf32>
    %cst_73 = arith.constant dense<0.000000e+00> : vector<16xf32>
    %209 = vector.multi_reduction <add>, %208, %cst_73 [1] : vector<16x32xf32> to vector<16xf32>
    %210 = vector.shape_cast %209 : vector<16xf32> to vector<16x1xf32>
    %cst_74 = arith.constant 3.200000e+01 : f32
    %211 = vector.broadcast %cst_74 : f32 to vector<16x1xf32>
    %212 = arith.divf %210, %211 : vector<16x1xf32>
    %213 = vector.broadcast %205 : vector<16x1xf32> to vector<16x32xf32>
    %214 = arith.subf %197, %213 : vector<16x32xf32>
    %cst_75 = arith.constant 9.99999996E-13 : f32
    %215 = vector.broadcast %cst_75 : f32 to vector<16x1xf32>
    %216 = arith.addf %212, %215 : vector<16x1xf32>
    %217 = math.rsqrt %216 : vector<16x1xf32>
    %218 = vector.broadcast %217 : vector<16x1xf32> to vector<16x32xf32>
    %219 = arith.mulf %214, %218 : vector<16x32xf32>
    %220 = vector.broadcast %199 : vector<1x32xf32> to vector<16x32xf32>
    %221 = arith.mulf %219, %220 : vector<16x32xf32>
    %222 = vector.broadcast %201 : vector<1x32xf32> to vector<16x32xf32>
    %223 = arith.addf %221, %222 : vector<16x32xf32>
    %c0_76 = arith.constant 0 : index
    %c0_77 = arith.constant 0 : index
    %c0_78 = arith.constant 0 : index
    %224 = vector.load %arg10[%c0_76, %c0_77, %c0_78] : memref<2x32x64xf32, #tpu.memory_space<vmem>>, vector<1x32x64xf32>
    %225 = vector.shape_cast %224 : vector<1x32x64xf32> to vector<32x64xf32>
    %cst_79 = arith.constant dense<0.000000e+00> : vector<16x64xf32>
    %226 = tpu.matmul %223, %225, %cst_79 {dimension_numbers = #tpu.dot_dimension_numbers<[1], [0], [0], [1], [0, 0, 1, 1], [], []>} : vector<16x32xf32>, vector<32x64xf32>, vector<16x64xf32> -> vector<16x64xf32>
    %c0_80 = arith.constant 0 : index
    %c0_81 = arith.constant 0 : index
    %c0_82 = arith.constant 0 : index
    %227 = vector.load %arg11[%c0_80, %c0_81, %c0_82] : memref<2x1x64xf32, #tpu.memory_space<vmem>>, vector<1x1x64xf32>
    %228 = vector.shape_cast %227 : vector<1x1x64xf32> to vector<1x64xf32>
    %229 = vector.broadcast %228 : vector<1x64xf32> to vector<16x64xf32>
    %230 = arith.addf %226, %229 : vector<16x64xf32>
    %cst_83 = arith.constant 5.000000e-01 : f32
    %231 = vector.broadcast %cst_83 : f32 to vector<16x64xf32>
    %232 = arith.mulf %231, %230 : vector<16x64xf32>
    %cst_84 = arith.constant 4.471500e-02 : f32
    %233 = vector.broadcast %cst_84 : f32 to vector<16x64xf32>
    %234 = arith.mulf %233, %230 : vector<16x64xf32>
    %235 = arith.mulf %234, %230 : vector<16x64xf32>
    %236 = arith.mulf %235, %230 : vector<16x64xf32>
    %237 = arith.addf %230, %236 : vector<16x64xf32>
    %cst_85 = arith.constant 0.797884583 : f32
    %238 = vector.broadcast %cst_85 : f32 to vector<16x64xf32>
    %239 = arith.mulf %238, %237 : vector<16x64xf32>
    %240 = math.tanh %239 : vector<16x64xf32>
    %cst_86 = arith.constant 1.000000e+00 : f32
    %241 = vector.broadcast %cst_86 : f32 to vector<16x64xf32>
    %242 = arith.addf %241, %240 : vector<16x64xf32>
    %243 = arith.mulf %232, %242 : vector<16x64xf32>
    %c0_87 = arith.constant 0 : index
    %c0_88 = arith.constant 0 : index
    %c0_89 = arith.constant 0 : index
    %244 = vector.load %arg12[%c0_87, %c0_88, %c0_89] : memref<2x64x32xf32, #tpu.memory_space<vmem>>, vector<1x64x32xf32>
    %245 = vector.shape_cast %244 : vector<1x64x32xf32> to vector<64x32xf32>
    %cst_90 = arith.constant dense<0.000000e+00> : vector<16x32xf32>
    %246 = tpu.matmul %243, %245, %cst_90 {dimension_numbers = #tpu.dot_dimension_numbers<[1], [0], [0], [1], [0, 0, 1, 1], [], []>} : vector<16x64xf32>, vector<64x32xf32>, vector<16x32xf32> -> vector<16x32xf32>
    %c0_91 = arith.constant 0 : index
    %c0_92 = arith.constant 0 : index
    %c0_93 = arith.constant 0 : index
    %247 = vector.load %arg13[%c0_91, %c0_92, %c0_93] : memref<2x1x32xf32, #tpu.memory_space<vmem>>, vector<1x1x32xf32>
    %248 = vector.shape_cast %247 : vector<1x1x32xf32> to vector<1x32xf32>
    %249 = vector.broadcast %248 : vector<1x32xf32> to vector<16x32xf32>
    %250 = arith.addf %246, %249 : vector<16x32xf32>
    %251 = arith.addf %250, %223 : vector<16x32xf32>
    %c0_94 = arith.constant 0 : index
    %c0_95 = arith.constant 0 : index
    %c0_96 = arith.constant 0 : index
    %252 = vector.load %arg14[%c0_94, %c0_95, %c0_96] : memref<2x1x32xf32, #tpu.memory_space<vmem>>, vector<1x1x32xf32>
    %253 = vector.shape_cast %252 : vector<1x1x32xf32> to vector<1x32xf32>
    %c0_97 = arith.constant 0 : index
    %c0_98 = arith.constant 0 : index
    %c0_99 = arith.constant 0 : index
    %254 = vector.load %arg15[%c0_97, %c0_98, %c0_99] : memref<2x1x32xf32, #tpu.memory_space<vmem>>, vector<1x1x32xf32>
    %255 = vector.shape_cast %254 : vector<1x1x32xf32> to vector<1x32xf32>
    %cst_100 = arith.constant dense<0.000000e+00> : vector<16xf32>
    %256 = vector.multi_reduction <add>, %251, %cst_100 [1] : vector<16x32xf32> to vector<16xf32>
    %257 = vector.shape_cast %256 : vector<16xf32> to vector<16x1xf32>
    %cst_101 = arith.constant 3.200000e+01 : f32
    %258 = vector.broadcast %cst_101 : f32 to vector<16x1xf32>
    %259 = arith.divf %257, %258 : vector<16x1xf32>
    %260 = vector.broadcast %259 : vector<16x1xf32> to vector<16x32xf32>
    %261 = arith.subf %251, %260 : vector<16x32xf32>
    %262 = arith.mulf %261, %261 : vector<16x32xf32>
    %cst_102 = arith.constant dense<0.000000e+00> : vector<16xf32>
    %263 = vector.multi_reduction <add>, %262, %cst_102 [1] : vector<16x32xf32> to vector<16xf32>
    %264 = vector.shape_cast %263 : vector<16xf32> to vector<16x1xf32>
    %cst_103 = arith.constant 3.200000e+01 : f32
    %265 = vector.broadcast %cst_103 : f32 to vector<16x1xf32>
    %266 = arith.divf %264, %265 : vector<16x1xf32>
    %267 = vector.broadcast %259 : vector<16x1xf32> to vector<16x32xf32>
    %268 = arith.subf %251, %267 : vector<16x32xf32>
    %cst_104 = arith.constant 9.99999996E-13 : f32
    %269 = vector.broadcast %cst_104 : f32 to vector<16x1xf32>
    %270 = arith.addf %266, %269 : vector<16x1xf32>
    %271 = math.rsqrt %270 : vector<16x1xf32>
    %272 = vector.broadcast %271 : vector<16x1xf32> to vector<16x32xf32>
    %273 = arith.mulf %268, %272 : vector<16x32xf32>
    %274 = vector.broadcast %253 : vector<1x32xf32> to vector<16x32xf32>
    %275 = arith.mulf %273, %274 : vector<16x32xf32>
    %276 = vector.broadcast %255 : vector<1x32xf32> to vector<16x32xf32>
    %277 = arith.addf %275, %276 : vector<16x32xf32>
    %c1 = arith.constant 1 : index
    %c0_105 = arith.constant 0 : index
    %c0_106 = arith.constant 0 : index
    %278 = vector.load %arg4[%c1, %c0_105, %c0_106] : memref<2x32x96xf32, #tpu.memory_space<vmem>>, vector<1x32x96xf32>
    %279 = vector.shape_cast %278 : vector<1x32x96xf32> to vector<32x96xf32>
    %cst_107 = arith.constant dense<0.000000e+00> : vector<16x96xf32>
    %280 = tpu.matmul %277, %279, %cst_107 {dimension_numbers = #tpu.dot_dimension_numbers<[1], [0], [0], [1], [0, 0, 1, 1], [], []>} : vector<16x32xf32>, vector<32x96xf32>, vector<16x96xf32> -> vector<16x96xf32>
    %c1_108 = arith.constant 1 : index
    %c0_109 = arith.constant 0 : index
    %c0_110 = arith.constant 0 : index
    %281 = vector.load %arg5[%c1_108, %c0_109, %c0_110] : memref<2x1x96xf32, #tpu.memory_space<vmem>>, vector<1x1x96xf32>
    %282 = vector.shape_cast %281 : vector<1x1x96xf32> to vector<1x96xf32>
    %283 = vector.broadcast %282 : vector<1x96xf32> to vector<16x96xf32>
    %284 = arith.addf %280, %283 : vector<16x96xf32>
    %285 = vector.extract_strided_slice %284 {offsets = [0, 0], sizes = [8, 8], strides = [1, 1]} : vector<16x96xf32> to vector<8x8xf32>
    %286 = vector.extract_strided_slice %284 {offsets = [0, 32], sizes = [8, 8], strides = [1, 1]} : vector<16x96xf32> to vector<8x8xf32>
    %287 = vector.extract_strided_slice %284 {offsets = [0, 64], sizes = [8, 8], strides = [1, 1]} : vector<16x96xf32> to vector<8x8xf32>
    %cst_111 = arith.constant dense<0.000000e+00> : vector<8x8xf32>
    %288 = tpu.matmul %285, %286, %cst_111 {dimension_numbers = #tpu.dot_dimension_numbers<[1], [1], [0], [0], [0, 0, 1, 0], [], []>} : vector<8x8xf32>, vector<8x8xf32>, vector<8x8xf32> -> vector<8x8xf32>
    %cst_112 = arith.constant 0.353553385 : f32
    %289 = vector.broadcast %cst_112 : f32 to vector<8x8xf32>
    %290 = arith.mulf %288, %289 : vector<8x8xf32>
    %291 = vector.broadcast %26 : vector<1x8xf32> to vector<8x8xf32>
    %292 = arith.addf %290, %291 : vector<8x8xf32>
    %cst_113 = arith.constant dense<0xFF800000> : vector<8xf32>
    %293 = vector.multi_reduction <maximumf>, %292, %cst_113 [1] : vector<8x8xf32> to vector<8xf32>
    %294 = vector.shape_cast %293 : vector<8xf32> to vector<8x1xf32>
    %295 = vector.broadcast %294 : vector<8x1xf32> to vector<8x8xf32>
    %296 = arith.subf %292, %295 : vector<8x8xf32>
    %297 = math.exp %296 : vector<8x8xf32>
    %cst_114 = arith.constant dense<0.000000e+00> : vector<8xf32>
    %298 = vector.multi_reduction <add>, %297, %cst_114 [1] : vector<8x8xf32> to vector<8xf32>
    %299 = vector.shape_cast %298 : vector<8xf32> to vector<8x1xf32>
    %300 = tpu.reciprocal %299 {approx = true} : vector<8x1xf32> -> vector<8x1xf32>
    %301 = vector.broadcast %300 : vector<8x1xf32> to vector<8x8xf32>
    %302 = arith.mulf %297, %301 : vector<8x8xf32>
    %cst_115 = arith.constant dense<0.000000e+00> : vector<8x8xf32>
    %303 = tpu.matmul %302, %287, %cst_115 {dimension_numbers = #tpu.dot_dimension_numbers<[1], [0], [0], [1], [0, 0, 1, 1], [], []>} : vector<8x8xf32>, vector<8x8xf32>, vector<8x8xf32> -> vector<8x8xf32>
    %304 = vector.extract_strided_slice %284 {offsets = [0, 8], sizes = [8, 8], strides = [1, 1]} : vector<16x96xf32> to vector<8x8xf32>
    %305 = vector.extract_strided_slice %284 {offsets = [0, 40], sizes = [8, 8], strides = [1, 1]} : vector<16x96xf32> to vector<8x8xf32>
    %306 = vector.extract_strided_slice %284 {offsets = [0, 72], sizes = [8, 8], strides = [1, 1]} : vector<16x96xf32> to vector<8x8xf32>
    %cst_116 = arith.constant dense<0.000000e+00> : vector<8x8xf32>
    %307 = tpu.matmul %304, %305, %cst_116 {dimension_numbers = #tpu.dot_dimension_numbers<[1], [1], [0], [0], [0, 0, 1, 0], [], []>} : vector<8x8xf32>, vector<8x8xf32>, vector<8x8xf32> -> vector<8x8xf32>
    %cst_117 = arith.constant 0.353553385 : f32
    %308 = vector.broadcast %cst_117 : f32 to vector<8x8xf32>
    %309 = arith.mulf %307, %308 : vector<8x8xf32>
    %310 = vector.broadcast %26 : vector<1x8xf32> to vector<8x8xf32>
    %311 = arith.addf %309, %310 : vector<8x8xf32>
    %cst_118 = arith.constant dense<0xFF800000> : vector<8xf32>
    %312 = vector.multi_reduction <maximumf>, %311, %cst_118 [1] : vector<8x8xf32> to vector<8xf32>
    %313 = vector.shape_cast %312 : vector<8xf32> to vector<8x1xf32>
    %314 = vector.broadcast %313 : vector<8x1xf32> to vector<8x8xf32>
    %315 = arith.subf %311, %314 : vector<8x8xf32>
    %316 = math.exp %315 : vector<8x8xf32>
    %cst_119 = arith.constant dense<0.000000e+00> : vector<8xf32>
    %317 = vector.multi_reduction <add>, %316, %cst_119 [1] : vector<8x8xf32> to vector<8xf32>
    %318 = vector.shape_cast %317 : vector<8xf32> to vector<8x1xf32>
    %319 = tpu.reciprocal %318 {approx = true} : vector<8x1xf32> -> vector<8x1xf32>
    %320 = vector.broadcast %319 : vector<8x1xf32> to vector<8x8xf32>
    %321 = arith.mulf %316, %320 : vector<8x8xf32>
    %cst_120 = arith.constant dense<0.000000e+00> : vector<8x8xf32>
    %322 = tpu.matmul %321, %306, %cst_120 {dimension_numbers = #tpu.dot_dimension_numbers<[1], [0], [0], [1], [0, 0, 1, 1], [], []>} : vector<8x8xf32>, vector<8x8xf32>, vector<8x8xf32> -> vector<8x8xf32>
    %323 = vector.extract_strided_slice %284 {offsets = [0, 16], sizes = [8, 8], strides = [1, 1]} : vector<16x96xf32> to vector<8x8xf32>
    %324 = vector.extract_strided_slice %284 {offsets = [0, 48], sizes = [8, 8], strides = [1, 1]} : vector<16x96xf32> to vector<8x8xf32>
    %325 = vector.extract_strided_slice %284 {offsets = [0, 80], sizes = [8, 8], strides = [1, 1]} : vector<16x96xf32> to vector<8x8xf32>
    %cst_121 = arith.constant dense<0.000000e+00> : vector<8x8xf32>
    %326 = tpu.matmul %323, %324, %cst_121 {dimension_numbers = #tpu.dot_dimension_numbers<[1], [1], [0], [0], [0, 0, 1, 0], [], []>} : vector<8x8xf32>, vector<8x8xf32>, vector<8x8xf32> -> vector<8x8xf32>
    %cst_122 = arith.constant 0.353553385 : f32
    %327 = vector.broadcast %cst_122 : f32 to vector<8x8xf32>
    %328 = arith.mulf %326, %327 : vector<8x8xf32>
    %329 = vector.broadcast %26 : vector<1x8xf32> to vector<8x8xf32>
    %330 = arith.addf %328, %329 : vector<8x8xf32>
    %cst_123 = arith.constant dense<0xFF800000> : vector<8xf32>
    %331 = vector.multi_reduction <maximumf>, %330, %cst_123 [1] : vector<8x8xf32> to vector<8xf32>
    %332 = vector.shape_cast %331 : vector<8xf32> to vector<8x1xf32>
    %333 = vector.broadcast %332 : vector<8x1xf32> to vector<8x8xf32>
    %334 = arith.subf %330, %333 : vector<8x8xf32>
    %335 = math.exp %334 : vector<8x8xf32>
    %cst_124 = arith.constant dense<0.000000e+00> : vector<8xf32>
    %336 = vector.multi_reduction <add>, %335, %cst_124 [1] : vector<8x8xf32> to vector<8xf32>
    %337 = vector.shape_cast %336 : vector<8xf32> to vector<8x1xf32>
    %338 = tpu.reciprocal %337 {approx = true} : vector<8x1xf32> -> vector<8x1xf32>
    %339 = vector.broadcast %338 : vector<8x1xf32> to vector<8x8xf32>
    %340 = arith.mulf %335, %339 : vector<8x8xf32>
    %cst_125 = arith.constant dense<0.000000e+00> : vector<8x8xf32>
    %341 = tpu.matmul %340, %325, %cst_125 {dimension_numbers = #tpu.dot_dimension_numbers<[1], [0], [0], [1], [0, 0, 1, 1], [], []>} : vector<8x8xf32>, vector<8x8xf32>, vector<8x8xf32> -> vector<8x8xf32>
    %342 = vector.extract_strided_slice %284 {offsets = [0, 24], sizes = [8, 8], strides = [1, 1]} : vector<16x96xf32> to vector<8x8xf32>
    %343 = vector.extract_strided_slice %284 {offsets = [0, 56], sizes = [8, 8], strides = [1, 1]} : vector<16x96xf32> to vector<8x8xf32>
    %344 = vector.extract_strided_slice %284 {offsets = [0, 88], sizes = [8, 8], strides = [1, 1]} : vector<16x96xf32> to vector<8x8xf32>
    %cst_126 = arith.constant dense<0.000000e+00> : vector<8x8xf32>
    %345 = tpu.matmul %342, %343, %cst_126 {dimension_numbers = #tpu.dot_dimension_numbers<[1], [1], [0], [0], [0, 0, 1, 0], [], []>} : vector<8x8xf32>, vector<8x8xf32>, vector<8x8xf32> -> vector<8x8xf32>
    %cst_127 = arith.constant 0.353553385 : f32
    %346 = vector.broadcast %cst_127 : f32 to vector<8x8xf32>
    %347 = arith.mulf %345, %346 : vector<8x8xf32>
    %348 = vector.broadcast %26 : vector<1x8xf32> to vector<8x8xf32>
    %349 = arith.addf %347, %348 : vector<8x8xf32>
    %cst_128 = arith.constant dense<0xFF800000> : vector<8xf32>
    %350 = vector.multi_reduction <maximumf>, %349, %cst_128 [1] : vector<8x8xf32> to vector<8xf32>
    %351 = vector.shape_cast %350 : vector<8xf32> to vector<8x1xf32>
    %352 = vector.broadcast %351 : vector<8x1xf32> to vector<8x8xf32>
    %353 = arith.subf %349, %352 : vector<8x8xf32>
    %354 = math.exp %353 : vector<8x8xf32>
    %cst_129 = arith.constant dense<0.000000e+00> : vector<8xf32>
    %355 = vector.multi_reduction <add>, %354, %cst_129 [1] : vector<8x8xf32> to vector<8xf32>
    %356 = vector.shape_cast %355 : vector<8xf32> to vector<8x1xf32>
    %357 = tpu.reciprocal %356 {approx = true} : vector<8x1xf32> -> vector<8x1xf32>
    %358 = vector.broadcast %357 : vector<8x1xf32> to vector<8x8xf32>
    %359 = arith.mulf %354, %358 : vector<8x8xf32>
    %cst_130 = arith.constant dense<0.000000e+00> : vector<8x8xf32>
    %360 = tpu.matmul %359, %344, %cst_130 {dimension_numbers = #tpu.dot_dimension_numbers<[1], [0], [0], [1], [0, 0, 1, 1], [], []>} : vector<8x8xf32>, vector<8x8xf32>, vector<8x8xf32> -> vector<8x8xf32>
    %361 = tpu.concatenate %303, %322, %341, %360 in 1 : vector<8x8xf32>, vector<8x8xf32>, vector<8x8xf32>, vector<8x8xf32> -> vector<8x32xf32>
    %362 = vector.extract_strided_slice %284 {offsets = [8, 0], sizes = [8, 8], strides = [1, 1]} : vector<16x96xf32> to vector<8x8xf32>
    %363 = vector.extract_strided_slice %284 {offsets = [8, 32], sizes = [8, 8], strides = [1, 1]} : vector<16x96xf32> to vector<8x8xf32>
    %364 = vector.extract_strided_slice %284 {offsets = [8, 64], sizes = [8, 8], strides = [1, 1]} : vector<16x96xf32> to vector<8x8xf32>
    %cst_131 = arith.constant dense<0.000000e+00> : vector<8x8xf32>
    %365 = tpu.matmul %362, %363, %cst_131 {dimension_numbers = #tpu.dot_dimension_numbers<[1], [1], [0], [0], [0, 0, 1, 0], [], []>} : vector<8x8xf32>, vector<8x8xf32>, vector<8x8xf32> -> vector<8x8xf32>
    %cst_132 = arith.constant 0.353553385 : f32
    %366 = vector.broadcast %cst_132 : f32 to vector<8x8xf32>
    %367 = arith.mulf %365, %366 : vector<8x8xf32>
    %368 = vector.broadcast %27 : vector<1x8xf32> to vector<8x8xf32>
    %369 = arith.addf %367, %368 : vector<8x8xf32>
    %cst_133 = arith.constant dense<0xFF800000> : vector<8xf32>
    %370 = vector.multi_reduction <maximumf>, %369, %cst_133 [1] : vector<8x8xf32> to vector<8xf32>
    %371 = vector.shape_cast %370 : vector<8xf32> to vector<8x1xf32>
    %372 = vector.broadcast %371 : vector<8x1xf32> to vector<8x8xf32>
    %373 = arith.subf %369, %372 : vector<8x8xf32>
    %374 = math.exp %373 : vector<8x8xf32>
    %cst_134 = arith.constant dense<0.000000e+00> : vector<8xf32>
    %375 = vector.multi_reduction <add>, %374, %cst_134 [1] : vector<8x8xf32> to vector<8xf32>
    %376 = vector.shape_cast %375 : vector<8xf32> to vector<8x1xf32>
    %377 = tpu.reciprocal %376 {approx = true} : vector<8x1xf32> -> vector<8x1xf32>
    %378 = vector.broadcast %377 : vector<8x1xf32> to vector<8x8xf32>
    %379 = arith.mulf %374, %378 : vector<8x8xf32>
    %cst_135 = arith.constant dense<0.000000e+00> : vector<8x8xf32>
    %380 = tpu.matmul %379, %364, %cst_135 {dimension_numbers = #tpu.dot_dimension_numbers<[1], [0], [0], [1], [0, 0, 1, 1], [], []>} : vector<8x8xf32>, vector<8x8xf32>, vector<8x8xf32> -> vector<8x8xf32>
    %381 = vector.extract_strided_slice %284 {offsets = [8, 8], sizes = [8, 8], strides = [1, 1]} : vector<16x96xf32> to vector<8x8xf32>
    %382 = vector.extract_strided_slice %284 {offsets = [8, 40], sizes = [8, 8], strides = [1, 1]} : vector<16x96xf32> to vector<8x8xf32>
    %383 = vector.extract_strided_slice %284 {offsets = [8, 72], sizes = [8, 8], strides = [1, 1]} : vector<16x96xf32> to vector<8x8xf32>
    %cst_136 = arith.constant dense<0.000000e+00> : vector<8x8xf32>
    %384 = tpu.matmul %381, %382, %cst_136 {dimension_numbers = #tpu.dot_dimension_numbers<[1], [1], [0], [0], [0, 0, 1, 0], [], []>} : vector<8x8xf32>, vector<8x8xf32>, vector<8x8xf32> -> vector<8x8xf32>
    %cst_137 = arith.constant 0.353553385 : f32
    %385 = vector.broadcast %cst_137 : f32 to vector<8x8xf32>
    %386 = arith.mulf %384, %385 : vector<8x8xf32>
    %387 = vector.broadcast %27 : vector<1x8xf32> to vector<8x8xf32>
    %388 = arith.addf %386, %387 : vector<8x8xf32>
    %cst_138 = arith.constant dense<0xFF800000> : vector<8xf32>
    %389 = vector.multi_reduction <maximumf>, %388, %cst_138 [1] : vector<8x8xf32> to vector<8xf32>
    %390 = vector.shape_cast %389 : vector<8xf32> to vector<8x1xf32>
    %391 = vector.broadcast %390 : vector<8x1xf32> to vector<8x8xf32>
    %392 = arith.subf %388, %391 : vector<8x8xf32>
    %393 = math.exp %392 : vector<8x8xf32>
    %cst_139 = arith.constant dense<0.000000e+00> : vector<8xf32>
    %394 = vector.multi_reduction <add>, %393, %cst_139 [1] : vector<8x8xf32> to vector<8xf32>
    %395 = vector.shape_cast %394 : vector<8xf32> to vector<8x1xf32>
    %396 = tpu.reciprocal %395 {approx = true} : vector<8x1xf32> -> vector<8x1xf32>
    %397 = vector.broadcast %396 : vector<8x1xf32> to vector<8x8xf32>
    %398 = arith.mulf %393, %397 : vector<8x8xf32>
    %cst_140 = arith.constant dense<0.000000e+00> : vector<8x8xf32>
    %399 = tpu.matmul %398, %383, %cst_140 {dimension_numbers = #tpu.dot_dimension_numbers<[1], [0], [0], [1], [0, 0, 1, 1], [], []>} : vector<8x8xf32>, vector<8x8xf32>, vector<8x8xf32> -> vector<8x8xf32>
    %400 = vector.extract_strided_slice %284 {offsets = [8, 16], sizes = [8, 8], strides = [1, 1]} : vector<16x96xf32> to vector<8x8xf32>
    %401 = vector.extract_strided_slice %284 {offsets = [8, 48], sizes = [8, 8], strides = [1, 1]} : vector<16x96xf32> to vector<8x8xf32>
    %402 = vector.extract_strided_slice %284 {offsets = [8, 80], sizes = [8, 8], strides = [1, 1]} : vector<16x96xf32> to vector<8x8xf32>
    %cst_141 = arith.constant dense<0.000000e+00> : vector<8x8xf32>
    %403 = tpu.matmul %400, %401, %cst_141 {dimension_numbers = #tpu.dot_dimension_numbers<[1], [1], [0], [0], [0, 0, 1, 0], [], []>} : vector<8x8xf32>, vector<8x8xf32>, vector<8x8xf32> -> vector<8x8xf32>
    %cst_142 = arith.constant 0.353553385 : f32
    %404 = vector.broadcast %cst_142 : f32 to vector<8x8xf32>
    %405 = arith.mulf %403, %404 : vector<8x8xf32>
    %406 = vector.broadcast %27 : vector<1x8xf32> to vector<8x8xf32>
    %407 = arith.addf %405, %406 : vector<8x8xf32>
    %cst_143 = arith.constant dense<0xFF800000> : vector<8xf32>
    %408 = vector.multi_reduction <maximumf>, %407, %cst_143 [1] : vector<8x8xf32> to vector<8xf32>
    %409 = vector.shape_cast %408 : vector<8xf32> to vector<8x1xf32>
    %410 = vector.broadcast %409 : vector<8x1xf32> to vector<8x8xf32>
    %411 = arith.subf %407, %410 : vector<8x8xf32>
    %412 = math.exp %411 : vector<8x8xf32>
    %cst_144 = arith.constant dense<0.000000e+00> : vector<8xf32>
    %413 = vector.multi_reduction <add>, %412, %cst_144 [1] : vector<8x8xf32> to vector<8xf32>
    %414 = vector.shape_cast %413 : vector<8xf32> to vector<8x1xf32>
    %415 = tpu.reciprocal %414 {approx = true} : vector<8x1xf32> -> vector<8x1xf32>
    %416 = vector.broadcast %415 : vector<8x1xf32> to vector<8x8xf32>
    %417 = arith.mulf %412, %416 : vector<8x8xf32>
    %cst_145 = arith.constant dense<0.000000e+00> : vector<8x8xf32>
    %418 = tpu.matmul %417, %402, %cst_145 {dimension_numbers = #tpu.dot_dimension_numbers<[1], [0], [0], [1], [0, 0, 1, 1], [], []>} : vector<8x8xf32>, vector<8x8xf32>, vector<8x8xf32> -> vector<8x8xf32>
    %419 = vector.extract_strided_slice %284 {offsets = [8, 24], sizes = [8, 8], strides = [1, 1]} : vector<16x96xf32> to vector<8x8xf32>
    %420 = vector.extract_strided_slice %284 {offsets = [8, 56], sizes = [8, 8], strides = [1, 1]} : vector<16x96xf32> to vector<8x8xf32>
    %421 = vector.extract_strided_slice %284 {offsets = [8, 88], sizes = [8, 8], strides = [1, 1]} : vector<16x96xf32> to vector<8x8xf32>
    %cst_146 = arith.constant dense<0.000000e+00> : vector<8x8xf32>
    %422 = tpu.matmul %419, %420, %cst_146 {dimension_numbers = #tpu.dot_dimension_numbers<[1], [1], [0], [0], [0, 0, 1, 0], [], []>} : vector<8x8xf32>, vector<8x8xf32>, vector<8x8xf32> -> vector<8x8xf32>
    %cst_147 = arith.constant 0.353553385 : f32
    %423 = vector.broadcast %cst_147 : f32 to vector<8x8xf32>
    %424 = arith.mulf %422, %423 : vector<8x8xf32>
    %425 = vector.broadcast %27 : vector<1x8xf32> to vector<8x8xf32>
    %426 = arith.addf %424, %425 : vector<8x8xf32>
    %cst_148 = arith.constant dense<0xFF800000> : vector<8xf32>
    %427 = vector.multi_reduction <maximumf>, %426, %cst_148 [1] : vector<8x8xf32> to vector<8xf32>
    %428 = vector.shape_cast %427 : vector<8xf32> to vector<8x1xf32>
    %429 = vector.broadcast %428 : vector<8x1xf32> to vector<8x8xf32>
    %430 = arith.subf %426, %429 : vector<8x8xf32>
    %431 = math.exp %430 : vector<8x8xf32>
    %cst_149 = arith.constant dense<0.000000e+00> : vector<8xf32>
    %432 = vector.multi_reduction <add>, %431, %cst_149 [1] : vector<8x8xf32> to vector<8xf32>
    %433 = vector.shape_cast %432 : vector<8xf32> to vector<8x1xf32>
    %434 = tpu.reciprocal %433 {approx = true} : vector<8x1xf32> -> vector<8x1xf32>
    %435 = vector.broadcast %434 : vector<8x1xf32> to vector<8x8xf32>
    %436 = arith.mulf %431, %435 : vector<8x8xf32>
    %cst_150 = arith.constant dense<0.000000e+00> : vector<8x8xf32>
    %437 = tpu.matmul %436, %421, %cst_150 {dimension_numbers = #tpu.dot_dimension_numbers<[1], [0], [0], [1], [0, 0, 1, 1], [], []>} : vector<8x8xf32>, vector<8x8xf32>, vector<8x8xf32> -> vector<8x8xf32>
    %438 = tpu.concatenate %380, %399, %418, %437 in 1 : vector<8x8xf32>, vector<8x8xf32>, vector<8x8xf32>, vector<8x8xf32> -> vector<8x32xf32>
    %439 = tpu.concatenate %361, %438 in 0 : vector<8x32xf32>, vector<8x32xf32> -> vector<16x32xf32>
    %c1_151 = arith.constant 1 : index
    %c0_152 = arith.constant 0 : index
    %c0_153 = arith.constant 0 : index
    %440 = vector.load %arg6[%c1_151, %c0_152, %c0_153] : memref<2x32x32xf32, #tpu.memory_space<vmem>>, vector<1x32x32xf32>
    %441 = vector.shape_cast %440 : vector<1x32x32xf32> to vector<32x32xf32>
    %cst_154 = arith.constant dense<0.000000e+00> : vector<16x32xf32>
    %442 = tpu.matmul %439, %441, %cst_154 {dimension_numbers = #tpu.dot_dimension_numbers<[1], [0], [0], [1], [0, 0, 1, 1], [], []>} : vector<16x32xf32>, vector<32x32xf32>, vector<16x32xf32> -> vector<16x32xf32>
    %c1_155 = arith.constant 1 : index
    %c0_156 = arith.constant 0 : index
    %c0_157 = arith.constant 0 : index
    %443 = vector.load %arg7[%c1_155, %c0_156, %c0_157] : memref<2x1x32xf32, #tpu.memory_space<vmem>>, vector<1x1x32xf32>
    %444 = vector.shape_cast %443 : vector<1x1x32xf32> to vector<1x32xf32>
    %445 = vector.broadcast %444 : vector<1x32xf32> to vector<16x32xf32>
    %446 = arith.addf %442, %445 : vector<16x32xf32>
    %447 = arith.addf %446, %277 : vector<16x32xf32>
    %c1_158 = arith.constant 1 : index
    %c0_159 = arith.constant 0 : index
    %c0_160 = arith.constant 0 : index
    %448 = vector.load %arg8[%c1_158, %c0_159, %c0_160] : memref<2x1x32xf32, #tpu.memory_space<vmem>>, vector<1x1x32xf32>
    %449 = vector.shape_cast %448 : vector<1x1x32xf32> to vector<1x32xf32>
    %c1_161 = arith.constant 1 : index
    %c0_162 = arith.constant 0 : index
    %c0_163 = arith.constant 0 : index
    %450 = vector.load %arg9[%c1_161, %c0_162, %c0_163] : memref<2x1x32xf32, #tpu.memory_space<vmem>>, vector<1x1x32xf32>
    %451 = vector.shape_cast %450 : vector<1x1x32xf32> to vector<1x32xf32>
    %cst_164 = arith.constant dense<0.000000e+00> : vector<16xf32>
    %452 = vector.multi_reduction <add>, %447, %cst_164 [1] : vector<16x32xf32> to vector<16xf32>
    %453 = vector.shape_cast %452 : vector<16xf32> to vector<16x1xf32>
    %cst_165 = arith.constant 3.200000e+01 : f32
    %454 = vector.broadcast %cst_165 : f32 to vector<16x1xf32>
    %455 = arith.divf %453, %454 : vector<16x1xf32>
    %456 = vector.broadcast %455 : vector<16x1xf32> to vector<16x32xf32>
    %457 = arith.subf %447, %456 : vector<16x32xf32>
    %458 = arith.mulf %457, %457 : vector<16x32xf32>
    %cst_166 = arith.constant dense<0.000000e+00> : vector<16xf32>
    %459 = vector.multi_reduction <add>, %458, %cst_166 [1] : vector<16x32xf32> to vector<16xf32>
    %460 = vector.shape_cast %459 : vector<16xf32> to vector<16x1xf32>
    %cst_167 = arith.constant 3.200000e+01 : f32
    %461 = vector.broadcast %cst_167 : f32 to vector<16x1xf32>
    %462 = arith.divf %460, %461 : vector<16x1xf32>
    %463 = vector.broadcast %455 : vector<16x1xf32> to vector<16x32xf32>
    %464 = arith.subf %447, %463 : vector<16x32xf32>
    %cst_168 = arith.constant 9.99999996E-13 : f32
    %465 = vector.broadcast %cst_168 : f32 to vector<16x1xf32>
    %466 = arith.addf %462, %465 : vector<16x1xf32>
    %467 = math.rsqrt %466 : vector<16x1xf32>
    %468 = vector.broadcast %467 : vector<16x1xf32> to vector<16x32xf32>
    %469 = arith.mulf %464, %468 : vector<16x32xf32>
    %470 = vector.broadcast %449 : vector<1x32xf32> to vector<16x32xf32>
    %471 = arith.mulf %469, %470 : vector<16x32xf32>
    %472 = vector.broadcast %451 : vector<1x32xf32> to vector<16x32xf32>
    %473 = arith.addf %471, %472 : vector<16x32xf32>
    %c1_169 = arith.constant 1 : index
    %c0_170 = arith.constant 0 : index
    %c0_171 = arith.constant 0 : index
    %474 = vector.load %arg10[%c1_169, %c0_170, %c0_171] : memref<2x32x64xf32, #tpu.memory_space<vmem>>, vector<1x32x64xf32>
    %475 = vector.shape_cast %474 : vector<1x32x64xf32> to vector<32x64xf32>
    %cst_172 = arith.constant dense<0.000000e+00> : vector<16x64xf32>
    %476 = tpu.matmul %473, %475, %cst_172 {dimension_numbers = #tpu.dot_dimension_numbers<[1], [0], [0], [1], [0, 0, 1, 1], [], []>} : vector<16x32xf32>, vector<32x64xf32>, vector<16x64xf32> -> vector<16x64xf32>
    %c1_173 = arith.constant 1 : index
    %c0_174 = arith.constant 0 : index
    %c0_175 = arith.constant 0 : index
    %477 = vector.load %arg11[%c1_173, %c0_174, %c0_175] : memref<2x1x64xf32, #tpu.memory_space<vmem>>, vector<1x1x64xf32>
    %478 = vector.shape_cast %477 : vector<1x1x64xf32> to vector<1x64xf32>
    %479 = vector.broadcast %478 : vector<1x64xf32> to vector<16x64xf32>
    %480 = arith.addf %476, %479 : vector<16x64xf32>
    %cst_176 = arith.constant 5.000000e-01 : f32
    %481 = vector.broadcast %cst_176 : f32 to vector<16x64xf32>
    %482 = arith.mulf %481, %480 : vector<16x64xf32>
    %cst_177 = arith.constant 4.471500e-02 : f32
    %483 = vector.broadcast %cst_177 : f32 to vector<16x64xf32>
    %484 = arith.mulf %483, %480 : vector<16x64xf32>
    %485 = arith.mulf %484, %480 : vector<16x64xf32>
    %486 = arith.mulf %485, %480 : vector<16x64xf32>
    %487 = arith.addf %480, %486 : vector<16x64xf32>
    %cst_178 = arith.constant 0.797884583 : f32
    %488 = vector.broadcast %cst_178 : f32 to vector<16x64xf32>
    %489 = arith.mulf %488, %487 : vector<16x64xf32>
    %490 = math.tanh %489 : vector<16x64xf32>
    %cst_179 = arith.constant 1.000000e+00 : f32
    %491 = vector.broadcast %cst_179 : f32 to vector<16x64xf32>
    %492 = arith.addf %491, %490 : vector<16x64xf32>
    %493 = arith.mulf %482, %492 : vector<16x64xf32>
    %c1_180 = arith.constant 1 : index
    %c0_181 = arith.constant 0 : index
    %c0_182 = arith.constant 0 : index
    %494 = vector.load %arg12[%c1_180, %c0_181, %c0_182] : memref<2x64x32xf32, #tpu.memory_space<vmem>>, vector<1x64x32xf32>
    %495 = vector.shape_cast %494 : vector<1x64x32xf32> to vector<64x32xf32>
    %cst_183 = arith.constant dense<0.000000e+00> : vector<16x32xf32>
    %496 = tpu.matmul %493, %495, %cst_183 {dimension_numbers = #tpu.dot_dimension_numbers<[1], [0], [0], [1], [0, 0, 1, 1], [], []>} : vector<16x64xf32>, vector<64x32xf32>, vector<16x32xf32> -> vector<16x32xf32>
    %c1_184 = arith.constant 1 : index
    %c0_185 = arith.constant 0 : index
    %c0_186 = arith.constant 0 : index
    %497 = vector.load %arg13[%c1_184, %c0_185, %c0_186] : memref<2x1x32xf32, #tpu.memory_space<vmem>>, vector<1x1x32xf32>
    %498 = vector.shape_cast %497 : vector<1x1x32xf32> to vector<1x32xf32>
    %499 = vector.broadcast %498 : vector<1x32xf32> to vector<16x32xf32>
    %500 = arith.addf %496, %499 : vector<16x32xf32>
    %501 = arith.addf %500, %473 : vector<16x32xf32>
    %c1_187 = arith.constant 1 : index
    %c0_188 = arith.constant 0 : index
    %c0_189 = arith.constant 0 : index
    %502 = vector.load %arg14[%c1_187, %c0_188, %c0_189] : memref<2x1x32xf32, #tpu.memory_space<vmem>>, vector<1x1x32xf32>
    %503 = vector.shape_cast %502 : vector<1x1x32xf32> to vector<1x32xf32>
    %c1_190 = arith.constant 1 : index
    %c0_191 = arith.constant 0 : index
    %c0_192 = arith.constant 0 : index
    %504 = vector.load %arg15[%c1_190, %c0_191, %c0_192] : memref<2x1x32xf32, #tpu.memory_space<vmem>>, vector<1x1x32xf32>
    %505 = vector.shape_cast %504 : vector<1x1x32xf32> to vector<1x32xf32>
    %cst_193 = arith.constant dense<0.000000e+00> : vector<16xf32>
    %506 = vector.multi_reduction <add>, %501, %cst_193 [1] : vector<16x32xf32> to vector<16xf32>
    %507 = vector.shape_cast %506 : vector<16xf32> to vector<16x1xf32>
    %cst_194 = arith.constant 3.200000e+01 : f32
    %508 = vector.broadcast %cst_194 : f32 to vector<16x1xf32>
    %509 = arith.divf %507, %508 : vector<16x1xf32>
    %510 = vector.broadcast %509 : vector<16x1xf32> to vector<16x32xf32>
    %511 = arith.subf %501, %510 : vector<16x32xf32>
    %512 = arith.mulf %511, %511 : vector<16x32xf32>
    %cst_195 = arith.constant dense<0.000000e+00> : vector<16xf32>
    %513 = vector.multi_reduction <add>, %512, %cst_195 [1] : vector<16x32xf32> to vector<16xf32>
    %514 = vector.shape_cast %513 : vector<16xf32> to vector<16x1xf32>
    %cst_196 = arith.constant 3.200000e+01 : f32
    %515 = vector.broadcast %cst_196 : f32 to vector<16x1xf32>
    %516 = arith.divf %514, %515 : vector<16x1xf32>
    %517 = vector.broadcast %509 : vector<16x1xf32> to vector<16x32xf32>
    %518 = arith.subf %501, %517 : vector<16x32xf32>
    %cst_197 = arith.constant 9.99999996E-13 : f32
    %519 = vector.broadcast %cst_197 : f32 to vector<16x1xf32>
    %520 = arith.addf %516, %519 : vector<16x1xf32>
    %521 = math.rsqrt %520 : vector<16x1xf32>
    %522 = vector.broadcast %521 : vector<16x1xf32> to vector<16x32xf32>
    %523 = arith.mulf %518, %522 : vector<16x32xf32>
    %524 = vector.broadcast %503 : vector<1x32xf32> to vector<16x32xf32>
    %525 = arith.mulf %523, %524 : vector<16x32xf32>
    %526 = vector.broadcast %505 : vector<1x32xf32> to vector<16x32xf32>
    %527 = arith.addf %525, %526 : vector<16x32xf32>
    %528 = vector.extract_strided_slice %527 {offsets = [0, 0], sizes = [1, 32], strides = [1, 1]} : vector<16x32xf32> to vector<1x32xf32>
    %529 = vector.extract_strided_slice %527 {offsets = [8, 0], sizes = [1, 32], strides = [1, 1]} : vector<16x32xf32> to vector<1x32xf32>
    %530 = tpu.concatenate %528, %529 in 0 : vector<1x32xf32>, vector<1x32xf32> -> vector<2x32xf32>
    %c0_198 = arith.constant 0 : index
    %c0_199 = arith.constant 0 : index
    %531 = vector.load %arg16[%c0_198, %c0_199] : memref<32x32xf32, #tpu.memory_space<vmem>>, vector<32x32xf32>
    %cst_200 = arith.constant dense<0.000000e+00> : vector<2x32xf32>
    %532 = tpu.matmul %530, %531, %cst_200 {dimension_numbers = #tpu.dot_dimension_numbers<[1], [0], [0], [1], [0, 0, 1, 1], [], []>} : vector<2x32xf32>, vector<32x32xf32>, vector<2x32xf32> -> vector<2x32xf32>
    %c0_201 = arith.constant 0 : index
    %c0_202 = arith.constant 0 : index
    %533 = vector.load %arg17[%c0_201, %c0_202] : memref<1x32xf32, #tpu.memory_space<vmem>>, vector<1x32xf32>
    %534 = vector.broadcast %533 : vector<1x32xf32> to vector<2x32xf32>
    %535 = arith.addf %532, %534 : vector<2x32xf32>
    %536 = math.tanh %535 : vector<2x32xf32>
    %c0_203 = arith.constant 0 : index
    %c0_204 = arith.constant 0 : index
    %537 = vector.load %arg18[%c0_203, %c0_204] : memref<32x128xf32, #tpu.memory_space<vmem>>, vector<32x128xf32>
    %cst_205 = arith.constant dense<0.000000e+00> : vector<2x128xf32>
    %538 = tpu.matmul %536, %537, %cst_205 {dimension_numbers = #tpu.dot_dimension_numbers<[1], [0], [0], [1], [0, 0, 1, 1], [], []>} : vector<2x32xf32>, vector<32x128xf32>, vector<2x128xf32> -> vector<2x128xf32>
    %c0_206 = arith.constant 0 : index
    %c0_207 = arith.constant 0 : index
    %539 = vector.load %arg19[%c0_206, %c0_207] : memref<1x128xf32, #tpu.memory_space<vmem>>, vector<1x128xf32>
    %540 = vector.broadcast %539 : vector<1x128xf32> to vector<2x128xf32>
    %541 = arith.addf %538, %540 : vector<2x128xf32>
    %c0_208 = arith.constant 0 : index
    %c0_209 = arith.constant 0 : index
    %542 = vector.load %arg20[%c0_208, %c0_209] : memref<2x128xf32, #tpu.memory_space<vmem>>, vector<2x128xf32>
    tpu.vector_store %arg20[%c0_208, %c0_209], %541 {strides = array<i32>} : memref<2x128xf32, #tpu.memory_space<vmem>>, vector<2x128xf32>,
    return
  }
}

</mosaic_0001>

<llo_original>
// kernel: tpu_custom_call.1
$region0: #{tpu_custom_call.1}
  #allocation0 [shape = 'u32[]', space=smem, size = 0x4, offset = 0x4, fixed_abs, tag = 'smem constant byte address 0x4 - core index']
  #allocation1 [shape = 'u32[144,128]{1,0:T(1,128)}', space=vmem, size = 0x12000, scoped, tag = 'internal scratch']
  %s0 = inlined_call_operand.hbm [shape: f32[16,32], index: 0, kind: input, shape index: {}]
  %s1 = inlined_call_operand.hbm [shape: f32[2,8], index: 1, kind: input, shape index: {}]
  %s2 = inlined_call_operand.hbm [shape: f32[1,32], index: 2, kind: input, shape index: {}]
  %s3 = inlined_call_operand.hbm [shape: f32[1,32], index: 3, kind: input, shape index: {}]
  %s4 = inlined_call_operand.vmem [shape: f32[2,32,96], index: 4, kind: input, shape index: {}]
  %s5 = inlined_call_operand.hbm [shape: f32[2,1,96], index: 5, kind: input, shape index: {}]
  %s6 = inlined_call_operand.vmem [shape: f32[2,32,32], index: 6, kind: input, shape index: {}]
  %s7 = inlined_call_operand.hbm [shape: f32[2,1,32], index: 7, kind: input, shape index: {}]
  %s8 = inlined_call_operand.hbm [shape: f32[2,1,32], index: 8, kind: input, shape index: {}]
  %s9 = inlined_call_operand.hbm [shape: f32[2,1,32], index: 9, kind: input, shape index: {}]
  %s10 = inlined_call_operand.vmem [shape: f32[2,32,64], index: 10, kind: input, shape index: {}]
  %s11 = inlined_call_operand.hbm [shape: f32[2,1,64], index: 11, kind: input, shape index: {}]
  %s12 = inlined_call_operand.vmem [shape: f32[2,64,32], index: 12, kind: input, shape index: {}]
  %s13 = inlined_call_operand.hbm [shape: f32[2,1,32], index: 13, kind: input, shape index: {}]
  %s14 = inlined_call_operand.hbm [shape: f32[2,1,32], index: 14, kind: input, shape index: {}]
  %s15 = inlined_call_operand.hbm [shape: f32[2,1,32], index: 15, kind: input, shape index: {}]
  %s16 = inlined_call_operand.hbm [shape: f32[32,32], index: 16, kind: input, shape index: {}]
  %s17 = inlined_call_operand.hbm [shape: f32[1,32], index: 17, kind: input, shape index: {}]
  %s18 = inlined_call_operand.vmem [shape: f32[32,128], index: 18, kind: input, shape index: {}]
  %s19 = inlined_call_operand.hbm [shape: f32[1,128], index: 19, kind: input, shape index: {}]
  %s20 = inlined_call_operand.hbm [shape: f32[2,128], index: 20, kind: output, shape index: {}]
  %s21 = sld [smem:[#allocation0]]
  $region150: #{tpu_custom_call.1} parent=0
    _
  %s23 = ssub.s32 1, %s21
  %s24 = scalar_select 0, %s23, %s21
  $region1: #{tpu_custom_call.1} parent=0
    #allocation2 [shape = 'u8[8192]{0}', space=vmem, size = 0x2000, scoped, tag = 'input window, operand 0, single buffered']
    #allocation3 [shape = 's32[1]{0}', space=sflag, size = 0x4, scoped, tag = 'scoped memory for tpu_custom_call.1']
    #allocation4 [shape = 's32[1]{0}', space=sflag, size = 0x4, scoped, tag = 'scoped memory for tpu_custom_call.1']
    #allocation5 [shape = 'u8[1024]{0}', space=vmem, size = 0x400, scoped, tag = 'input window, operand 1, single buffered']
    #allocation6 [shape = 's32[1]{0}', space=sflag, size = 0x4, scoped, tag = 'scoped memory for tpu_custom_call.1']
    #allocation7 [shape = 'u8[512]{0}', space=vmem, size = 0x400, scoped, tag = 'input window, operand 2, single buffered']
    #allocation8 [shape = 'u8[512]{0}', space=vmem, size = 0x400, scoped, tag = 'input window, operand 3, single buffered']
    #allocation9 [shape = 's32[1]{0}', space=sflag, size = 0x4, scoped, tag = 'scoped memory for tpu_custom_call.1']
    #allocation10 [shape = 'u8[1024]{0}', space=vmem, size = 0x400, scoped, tag = 'input window, operand 5, single buffered']
    #allocation11 [shape = 'u8[1024]{0}', space=vmem, size = 0x400, scoped, tag = 'input window, operand 7, single buffered']
    #allocation12 [shape = 's32[1]{0}', space=sflag, size = 0x4, scoped, tag = 'scoped memory for tpu_custom_call.1']
    #allocation13 [shape = 'u8[1024]{0}', space=vmem, size = 0x400, scoped, tag = 'input window, operand 8, single buffered']
    #allocation14 [shape = 'u8[1024]{0}', space=vmem, size = 0x400, scoped, tag = 'input window, operand 9, single buffered']
    #allocation15 [shape = 's32[1]{0}', space=sflag, size = 0x4, scoped, tag = 'scoped memory for tpu_custom_call.1']
    #allocation16 [shape = 'u8[1024]{0}', space=vmem, size = 0x400, scoped, tag = 'input window, operand 11, single buffered']
    #allocation17 [shape = 'u8[1024]{0}', space=vmem, size = 0x400, scoped, tag = 'input window, operand 13, single buffered']
    #allocation18 [shape = 's32[1]{0}', space=sflag, size = 0x4, scoped, tag = 'scoped memory for tpu_custom_call.1']
    #allocation19 [shape = 'u8[1024]{0}', space=vmem, size = 0x400, scoped, tag = 'input window, operand 14, single buffered']
    #allocation20 [shape = 'u8[1024]{0}', space=vmem, size = 0x400, scoped, tag = 'input window, operand 15, single buffered']
    #allocation21 [shape = 's32[1]{0}', space=sflag, size = 0x4, scoped, tag = 'scoped memory for tpu_custom_call.1']
    #allocation22 [shape = 'u8[16384]{0}', space=vmem, size = 0x4000, scoped, tag = 'input window, operand 16, single buffered']
    #allocation23 [shape = 'u8[512]{0}', space=vmem, size = 0x400, scoped, tag = 'input window, operand 17, single buffered']
    #allocation24 [shape = 's32[1]{0}', space=sflag, size = 0x4, scoped, tag = 'scoped memory for tpu_custom_call.1']
    #allocation25 [shape = 'u8[512]{0}', space=vmem, size = 0x400, scoped, tag = 'input window, operand 19, single buffered']
    #allocation26 [shape = 'u8[1024]{0}', space=vmem, size = 0x400, scoped, tag = 'output window, operand 0, single buffered']
    %25 = vsyncpa [#allocation3], 0
    %26 = vsyncpa [#allocation6], 0
    %27 = vsyncpa [#allocation9], 0
    %28 = vsyncpa [#allocation12], 0
    %29 = vsyncpa [#allocation15], 0
    %30 = vsyncpa [#allocation18], 0
    %31 = vsyncpa [#allocation21], 0
    %32 = vsyncpa [#allocation24], 0
    %33 = vsyncpa [#allocation4], 0
    // Predicated region
    $region2: #{tpu_custom_call.1} parent=1 // pred_check
      _
    $region3: #{tpu_custom_call.1} parent=1 // pred_check_branch
      %35 = sbr.rel (0) target = $region5
    $region4: #{tpu_custom_call.1} parent=1 // pred_region
      %s37 = ssub.s32 256, 256
      %38 = vsyncadd [#allocation3], %s37
      %s39 = sshll.u32 [#allocation2], 4
      %s40 = int_to_ptr.vmem [resolvable:$true] %s39
      %45 = dma.hbm_to_vmem [thread:$0]  %s0, 256, %s40, [#allocation3], 128, 128, 8
    $region5: #{tpu_custom_call.1} parent=1 // pred_fallthru
      _
    // Predicated region
    $region6: #{tpu_custom_call.1} parent=1 // pred_check
      _
    $region7: #{tpu_custom_call.1} parent=1 // pred_check_branch
      %47 = sbr.rel (0) target = $region9
    $region8: #{tpu_custom_call.1} parent=1 // pred_region
      %s49 = ssub.s32 32, 32
      %50 = vsyncadd [#allocation6], %s49
      %s52 = sshll.u32 [#allocation5], 4
      %s53 = int_to_ptr.vmem [resolvable:$true] %s52
      %55 = dma.hbm_to_vmem [thread:$0]  %s1, 32, %s53, [#allocation6]
    $region9: #{tpu_custom_call.1} parent=1 // pred_fallthru
      _
    // Predicated region
    $region10: #{tpu_custom_call.1} parent=1 // pred_check
      _
    $region11: #{tpu_custom_call.1} parent=1 // pred_check_branch
      %57 = sbr.rel (0) target = $region13
    $region12: #{tpu_custom_call.1} parent=1 // pred_region
      %s59 = ssub.s32 16, 16
      %60 = vsyncadd [#allocation6], %s59
      %s62 = sshll.u32 [#allocation7], 4
      %s63 = int_to_ptr.vmem [resolvable:$true] %s62
      %65 = dma.hbm_to_vmem [thread:$0]  %s2, 16, %s63, [#allocation6]
    $region13: #{tpu_custom_call.1} parent=1 // pred_fallthru
      _
    // Predicated region
    $region14: #{tpu_custom_call.1} parent=1 // pred_check
      _
    $region15: #{tpu_custom_call.1} parent=1 // pred_check_branch
      %67 = sbr.rel (0) target = $region17
    $region16: #{tpu_custom_call.1} parent=1 // pred_region
      %s69 = ssub.s32 16, 16
      %70 = vsyncadd [#allocation9], %s69
      %s72 = sshll.u32 [#allocation8], 4
      %s73 = int_to_ptr.vmem [resolvable:$true] %s72
      %75 = dma.hbm_to_vmem [thread:$0]  %s3, 16, %s73, [#allocation9]
    $region17: #{tpu_custom_call.1} parent=1 // pred_fallthru
      _
    // Predicated region
    $region18: #{tpu_custom_call.1} parent=1 // pred_check
      _
    $region19: #{tpu_custom_call.1} parent=1 // pred_check_branch
      %77 = sbr.rel (0) target = $region21
    $region20: #{tpu_custom_call.1} parent=1 // pred_region
      _
    $region21: #{tpu_custom_call.1} parent=1 // pred_fallthru
      _
    // Predicated region
    $region22: #{tpu_custom_call.1} parent=1 // pred_check
      _
    $region23: #{tpu_custom_call.1} parent=1 // pred_check_branch
      %79 = sbr.rel (0) target = $region25
    $region24: #{tpu_custom_call.1} parent=1 // pred_region
      %s81 = ssub.s32 32, 32
      %82 = vsyncadd [#allocation9], %s81
      %s83 = sshll.u32 [#allocation10], 4
      %s84 = int_to_ptr.vmem [resolvable:$true] %s83
      %89 = dma.hbm_to_vmem [thread:$0]  %s5, 32, %s84, [#allocation9], 16, 16, 1
    $region25: #{tpu_custom_call.1} parent=1 // pred_fallthru
      _
    // Predicated region
    $region26: #{tpu_custom_call.1} parent=1 // pred_check
      _
    $region27: #{tpu_custom_call.1} parent=1 // pred_check_branch
      %91 = sbr.rel (0) target = $region29
    $region28: #{tpu_custom_call.1} parent=1 // pred_region
      _
    $region29: #{tpu_custom_call.1} parent=1 // pred_fallthru
      _
    // Predicated region
    $region30: #{tpu_custom_call.1} parent=1 // pred_check
      _
    $region31: #{tpu_custom_call.1} parent=1 // pred_check_branch
      %93 = sbr.rel (0) target = $region33
    $region32: #{tpu_custom_call.1} parent=1 // pred_region
      %s95 = ssub.s32 32, 32
      %96 = vsyncadd [#allocation12], %s95
      %s97 = sshll.u32 [#allocation11], 4
      %s98 = int_to_ptr.vmem [resolvable:$true] %s97
      %103 = dma.hbm_to_vmem [thread:$0]  %s7, 32, %s98, [#allocation12], 16, 16, 1
    $region33: #{tpu_custom_call.1} parent=1 // pred_fallthru
      _
    // Predicated region
    $region34: #{tpu_custom_call.1} parent=1 // pred_check
      _
    $region35: #{tpu_custom_call.1} parent=1 // pred_check_branch
      %105 = sbr.rel (0) target = $region37
    $region36: #{tpu_custom_call.1} parent=1 // pred_region
      %s107 = ssub.s32 32, 32
      %108 = vsyncadd [#allocation12], %s107
      %s109 = sshll.u32 [#allocation13], 4
      %s110 = int_to_ptr.vmem [resolvable:$true] %s109
      %115 = dma.hbm_to_vmem [thread:$0]  %s8, 32, %s110, [#allocation12], 16, 16, 1
    $region37: #{tpu_custom_call.1} parent=1 // pred_fallthru
      _
    // Predicated region
    $region38: #{tpu_custom_call.1} parent=1 // pred_check
      _
    $region39: #{tpu_custom_call.1} parent=1 // pred_check_branch
      %117 = sbr.rel (0) target = $region41
    $region40: #{tpu_custom_call.1} parent=1 // pred_region
      %s119 = ssub.s32 32, 32
      %120 = vsyncadd [#allocation15], %s119
      %s121 = sshll.u32 [#allocation14], 4
      %s122 = int_to_ptr.vmem [resolvable:$true] %s121
      %127 = dma.hbm_to_vmem [thread:$0]  %s9, 32, %s122, [#allocation15], 16, 16, 1
    $region41: #{tpu_custom_call.1} parent=1 // pred_fallthru
      _
    // Predicated region
    $region42: #{tpu_custom_call.1} parent=1 // pred_check
      _
    $region43: #{tpu_custom_call.1} parent=1 // pred_check_branch
      %129 = sbr.rel (0) target = $region45
    $region44: #{tpu_custom_call.1} parent=1 // pred_region
      _
    $region45: #{tpu_custom_call.1} parent=1 // pred_fallthru
      _
    // Predicated region
    $region46: #{tpu_custom_call.1} parent=1 // pred_check
      _
    $region47: #{tpu_custom_call.1} parent=1 // pred_check_branch
      %131 = sbr.rel (0) target = $region49
    $region48: #{tpu_custom_call.1} parent=1 // pred_region
      %s133 = ssub.s32 32, 32
      %134 = vsyncadd [#allocation15], %s133
      %s135 = sshll.u32 [#allocation16], 4
      %s136 = int_to_ptr.vmem [resolvable:$true] %s135
      %141 = dma.hbm_to_vmem [thread:$0]  %s11, 32, %s136, [#allocation15], 16, 16, 1
    $region49: #{tpu_custom_call.1} parent=1 // pred_fallthru
      _
    // Predicated region
    $region50: #{tpu_custom_call.1} parent=1 // pred_check
      _
    $region51: #{tpu_custom_call.1} parent=1 // pred_check_branch
      %143 = sbr.rel (0) target = $region53
    $region52: #{tpu_custom_call.1} parent=1 // pred_region
      _
    $region53: #{tpu_custom_call.1} parent=1 // pred_fallthru
      _
    // Predicated region
    $region54: #{tpu_custom_call.1} parent=1 // pred_check
      _
    $region55: #{tpu_custom_call.1} parent=1 // pred_check_branch
      %145 = sbr.rel (0) target = $region57
    $region56: #{tpu_custom_call.1} parent=1 // pred_region
      %s147 = ssub.s32 32, 32
      %148 = vsyncadd [#allocation18], %s147
      %s149 = sshll.u32 [#allocation17], 4
      %s150 = int_to_ptr.vmem [resolvable:$true] %s149
      %155 = dma.hbm_to_vmem [thread:$0]  %s13, 32, %s150, [#allocation18], 16, 16, 1
    $region57: #{tpu_custom_call.1} parent=1 // pred_fallthru
      _
    // Predicated region
    $region58: #{tpu_custom_call.1} parent=1 // pred_check
      _
    $region59: #{tpu_custom_call.1} parent=1 // pred_check_branch
      %157 = sbr.rel (0) target = $region61
    $region60: #{tpu_custom_call.1} parent=1 // pred_region
      %s159 = ssub.s32 32, 32
      %160 = vsyncadd [#allocation18], %s159
      %s161 = sshll.u32 [#allocation19], 4
      %s162 = int_to_ptr.vmem [resolvable:$true] %s161
      %167 = dma.hbm_to_vmem [thread:$0]  %s14, 32, %s162, [#allocation18], 16, 16, 1
    $region61: #{tpu_custom_call.1} parent=1 // pred_fallthru
      _
    // Predicated region
    $region62: #{tpu_custom_call.1} parent=1 // pred_check
      _
    $region63: #{tpu_custom_call.1} parent=1 // pred_check_branch
      %169 = sbr.rel (0) target = $region65
    $region64: #{tpu_custom_call.1} parent=1 // pred_region
      %s171 = ssub.s32 32, 32
      %172 = vsyncadd [#allocation21], %s171
      %s173 = sshll.u32 [#allocation20], 4
      %s174 = int_to_ptr.vmem [resolvable:$true] %s173
      %179 = dma.hbm_to_vmem [thread:$0]  %s15, 32, %s174, [#allocation21], 16, 16, 1
    $region65: #{tpu_custom_call.1} parent=1 // pred_fallthru
      _
    // Predicated region
    $region66: #{tpu_custom_call.1} parent=1 // pred_check
      _
    $region67: #{tpu_custom_call.1} parent=1 // pred_check_branch
      %181 = sbr.rel (0) target = $region69
    $region68: #{tpu_custom_call.1} parent=1 // pred_region
      %s183 = ssub.s32 512, 512
      %184 = vsyncadd [#allocation21], %s183
      %s185 = sshll.u32 [#allocation22], 4
      %s186 = int_to_ptr.vmem [resolvable:$true] %s185
      %191 = dma.hbm_to_vmem [thread:$0]  %s16, 512, %s186, [#allocation21], 128, 128, 8
    $region69: #{tpu_custom_call.1} parent=1 // pred_fallthru
      _
    // Predicated region
    $region70: #{tpu_custom_call.1} parent=1 // pred_check
      _
    $region71: #{tpu_custom_call.1} parent=1 // pred_check_branch
      %193 = sbr.rel (0) target = $region73
    $region72: #{tpu_custom_call.1} parent=1 // pred_region
      %s195 = ssub.s32 16, 16
      %196 = vsyncadd [#allocation24], %s195
      %s198 = sshll.u32 [#allocation23], 4
      %s199 = int_to_ptr.vmem [resolvable:$true] %s198
      %201 = dma.hbm_to_vmem [thread:$0]  %s17, 16, %s199, [#allocation24]
    $region73: #{tpu_custom_call.1} parent=1 // pred_fallthru
      _
    // Predicated region
    $region74: #{tpu_custom_call.1} parent=1 // pred_check
      _
    $region75: #{tpu_custom_call.1} parent=1 // pred_check_branch
      %203 = sbr.rel (0) target = $region77
    $region76: #{tpu_custom_call.1} parent=1 // pred_region
      _
    $region77: #{tpu_custom_call.1} parent=1 // pred_fallthru
      _
    // Predicated region
    $region78: #{tpu_custom_call.1} parent=1 // pred_check
      _
    $region79: #{tpu_custom_call.1} parent=1 // pred_check_branch
      %205 = sbr.rel (0) target = $region81
    $region80: #{tpu_custom_call.1} parent=1 // pred_region
      %s207 = ssub.s32 16, 16
      %208 = vsyncadd [#allocation24], %s207
      %s210 = sshll.u32 [#allocation25], 4
      %s211 = int_to_ptr.vmem [resolvable:$true] %s210
      %213 = dma.hbm_to_vmem [thread:$0]  %s19, 16, %s211, [#allocation24]
    $region81: #{tpu_custom_call.1} parent=1 // pred_fallthru
      _
    // Predicated region
    $region82: #{tpu_custom_call.1} parent=1 // pred_check
      _
    $region83: #{tpu_custom_call.1} parent=1 // pred_check_branch
      %215 = sbr.rel (0) target = $region85
    $region84: #{tpu_custom_call.1} parent=1 // pred_region
      %216 = dma.done [#allocation3], 256
    $region85: #{tpu_custom_call.1} parent=1 // pred_fallthru
      _
    // Predicated region
    $region86: #{tpu_custom_call.1} parent=1 // pred_check
      _
    $region87: #{tpu_custom_call.1} parent=1 // pred_check_branch
      %218 = sbr.rel (0) target = $region89
    $region88: #{tpu_custom_call.1} parent=1 // pred_region
      %219 = dma.done [#allocation6], 32
    $region89: #{tpu_custom_call.1} parent=1 // pred_fallthru
      _
    // Predicated region
    $region90: #{tpu_custom_call.1} parent=1 // pred_check
      _
    $region91: #{tpu_custom_call.1} parent=1 // pred_check_branch
      %221 = sbr.rel (0) target = $region93
    $region92: #{tpu_custom_call.1} parent=1 // pred_region
      %222 = dma.done [#allocation6], 16
    $region93: #{tpu_custom_call.1} parent=1 // pred_fallthru
      _
    // Predicated region
    $region94: #{tpu_custom_call.1} parent=1 // pred_check
      _
    $region95: #{tpu_custom_call.1} parent=1 // pred_check_branch
      %224 = sbr.rel (0) target = $region97
    $region96: #{tpu_custom_call.1} parent=1 // pred_region
      %225 = dma.done [#allocation9], 16
    $region97: #{tpu_custom_call.1} parent=1 // pred_fallthru
      _
    // Predicated region
    $region98: #{tpu_custom_call.1} parent=1 // pred_check
      _
    $region99: #{tpu_custom_call.1} parent=1 // pred_check_branch
      %227 = sbr.rel (0) target = $region101
    $region100: #{tpu_custom_call.1} parent=1 // pred_region
      %228 = dma.done [#allocation9], 32
    $region101: #{tpu_custom_call.1} parent=1 // pred_fallthru
      _
    // Predicated region
    $region102: #{tpu_custom_call.1} parent=1 // pred_check
      _
    $region103: #{tpu_custom_call.1} parent=1 // pred_check_branch
      %230 = sbr.rel (0) target = $region105
    $region104: #{tpu_custom_call.1} parent=1 // pred_region
      %231 = dma.done [#allocation12], 32
    $region105: #{tpu_custom_call.1} parent=1 // pred_fallthru
      _
    // Predicated region
    $region106: #{tpu_custom_call.1} parent=1 // pred_check
      _
    $region107: #{tpu_custom_call.1} parent=1 // pred_check_branch
      %233 = sbr.rel (0) target = $region109
    $region108: #{tpu_custom_call.1} parent=1 // pred_region
      %234 = dma.done [#allocation12], 32
    $region109: #{tpu_custom_call.1} parent=1 // pred_fallthru
      _
    // Predicated region
    $region110: #{tpu_custom_call.1} parent=1 // pred_check
      _
    $region111: #{tpu_custom_call.1} parent=1 // pred_check_branch
      %236 = sbr.rel (0) target = $region113
    $region112: #{tpu_custom_call.1} parent=1 // pred_region
      %237 = dma.done [#allocation15], 32
    $region113: #{tpu_custom_call.1} parent=1 // pred_fallthru
      _
    // Predicated region
    $region114: #{tpu_custom_call.1} parent=1 // pred_check
      _
    $region115: #{tpu_custom_call.1} parent=1 // pred_check_branch
      %239 = sbr.rel (0) target = $region117
    $region116: #{tpu_custom_call.1} parent=1 // pred_region
      %240 = dma.done [#allocation15], 32
    $region117: #{tpu_custom_call.1} parent=1 // pred_fallthru
      _
    // Predicated region
    $region118: #{tpu_custom_call.1} parent=1 // pred_check
      _
    $region119: #{tpu_custom_call.1} parent=1 // pred_check_branch
      %242 = sbr.rel (0) target = $region121
    $region120: #{tpu_custom_call.1} parent=1 // pred_region
      %243 = dma.done [#allocation18], 32
    $region121: #{tpu_custom_call.1} parent=1 // pred_fallthru
      _
    // Predicated region
    $region122: #{tpu_custom_call.1} parent=1 // pred_check
      _
    $region123: #{tpu_custom_call.1} parent=1 // pred_check_branch
      %245 = sbr.rel (0) target = $region125
    $region124: #{tpu_custom_call.1} parent=1 // pred_region
      %246 = dma.done [#allocation18], 32
    $region125: #{tpu_custom_call.1} parent=1 // pred_fallthru
      _
    // Predicated region
    $region126: #{tpu_custom_call.1} parent=1 // pred_check
      _
    $region127: #{tpu_custom_call.1} parent=1 // pred_check_branch
      %248 = sbr.rel (0) target = $region129
    $region128: #{tpu_custom_call.1} parent=1 // pred_region
      %249 = dma.done [#allocation21], 32
    $region129: #{tpu_custom_call.1} parent=1 // pred_fallthru
      _
    // Predicated region
    $region130: #{tpu_custom_call.1} parent=1 // pred_check
      _
    $region131: #{tpu_custom_call.1} parent=1 // pred_check_branch
      %251 = sbr.rel (0) target = $region133
    $region132: #{tpu_custom_call.1} parent=1 // pred_region
      %252 = dma.done [#allocation21], 512
    $region133: #{tpu_custom_call.1} parent=1 // pred_fallthru
      _
    // Predicated region
    $region134: #{tpu_custom_call.1} parent=1 // pred_check
      _
    $region135: #{tpu_custom_call.1} parent=1 // pred_check_branch
      %254 = sbr.rel (0) target = $region137
    $region136: #{tpu_custom_call.1} parent=1 // pred_region
      %255 = dma.done [#allocation24], 16
    $region137: #{tpu_custom_call.1} parent=1 // pred_fallthru
      _
    // Predicated region
    $region138: #{tpu_custom_call.1} parent=1 // pred_check
      _
    $region139: #{tpu_custom_call.1} parent=1 // pred_check_branch
      %257 = sbr.rel (0) target = $region141
    $region140: #{tpu_custom_call.1} parent=1 // pred_region
      %258 = dma.done [#allocation24], 16
    $region141: #{tpu_custom_call.1} parent=1 // pred_fallthru
      _
    %v259 = vld [vmem:[#allocation2] sm:$0xff]
    %v260 = vld [vmem:[#allocation2 + $0x8] sm:$0xff]
    %v261 = vld [vmem:[#allocation7] sm:$0x1]
    %v262 = vld [vmem:[#allocation8] sm:$0x1]
    %vm263 = vcmask 261120
    %v264 = vsel %vm263, %v259, 0.0
    %265 = vadd.xlane.f32.xlu0 %v264
    %v266 = vpop.xlane.xlu0 %265
    %v267 = vsel %vm263, %v260, 0.0
    %268 = vadd.xlane.f32.xlu0 %v267
    %v269 = vpop.xlane.xlu0 %268
    %v270 = vrcp.pop 32.0
    %v271 = vmul.f32 %v266, %v270
    %v272 = vmul.f32 %v269, %v270
    %v273 = vsub.f32 %v259, %v271
    %v274 = vsub.f32 %v260, %v272
    %v275 = vmul.f32 %v273, %v273
    %v276 = vmul.f32 %v274, %v274
    %v277 = vsel %vm263, %v275, 0.0
    %278 = vadd.xlane.f32.xlu0 %v277
    %v279 = vpop.xlane.xlu0 %278
    %v280 = vsel %vm263, %v276, 0.0
    %281 = vadd.xlane.f32.xlu0 %v280
    %v282 = vpop.xlane.xlu0 %281
    %v283 = vmul.f32 %v279, %v270
    %v284 = vmul.f32 %v282, %v270
    %v285 = vadd.f32 %v283, 1e-12
    %v286 = vadd.f32 %v284, 1e-12
    %v287 = vrsqrt.pop %v285
    %v288 = vrsqrt.pop %v286
    %v289 = vmul.f32 %v273, %v287
    %v290 = vmul.f32 %v274, %v288
    %v292 = vlaneseq
    %v293 = vshrl.u32 %v292, 7
    %v294 = vsub.s32 0, %v293
    %v295 = vrot.slane %v261, %v294
    %v297 = vmul.f32 %v289, %v295
    %v298 = vmul.f32 %v290, %v295
    %v300 = vlaneseq
    %v301 = vshrl.u32 %v300, 7
    %v302 = vsub.s32 0, %v301
    %v303 = vrot.slane %v262, %v302
    %v305 = vadd.f32 %v297, %v303
    %v306 = vadd.f32 %v298, %v303
    %v307 = vld [vmem:[#allocation5] sm:$0x3]
    %v308 = vld [vmem:[%s4] sm:$0xff]
    %v309 = vld [vmem:[%s4 + $0x8] sm:$0xff]
    %v310 = vld [vmem:[%s4 + $0x10] sm:$0xff]
    %v311 = vld [vmem:[%s4 + $0x18] sm:$0xff]
    %v312 = vld [vmem:[#allocation10] sm:$0x1]
    %v314 = vlaneseq
    %v315 = vshrl.u32 %v314, 7
    %v316 = vsub.s32 0, %v315
    %v317 = vrot.slane %v312, %v316
    %v320 = vsel %vm263, %v305, 0
    %v323 = vsel %vm263, %v306, 0
    %325 = vmatprep.subr.mxu0 0.0
    %326 = vmatpush1.msra.mxu0 0.0
    %327 = vmatprep.subr.mxu0 0.0
    %328 = vmatpush1.msra.mxu0 0.0
    %329 = vmatprep.subr.mxu0 0.0
    %330 = vmatpush1.msra.mxu0 0.0
    %331 = vmatprep.subr.mxu0 0.0
    %332 = vmatpush1.msra.mxu0 0.0
    %333 = vmatprep.subr.mxu0 0.0
    %334 = vmatpush1.msra.mxu0 0.0
    %335 = vmatprep.subr.mxu0 0.0
    %336 = vmatpush1.msra.mxu0 0.0
    %337 = vmatprep.subr.mxu0 0.0
    %338 = vmatpush1.msra.mxu0 0.0
    %339 = vmatprep.subr.mxu0 0.0
    %340 = vmatpush1.msra.mxu0 0.0
    %341 = vmatprep.subr.mxu0 0.0
    %342 = vmatpush1.msra.mxu0 0.0
    %343 = vmatprep.subr.mxu0 0.0
    %344 = vmatpush1.msra.mxu0 0.0
    %345 = vmatprep.subr.mxu0 0.0
    %346 = vmatpush1.msra.mxu0 0.0
    %347 = vmatprep.subr.mxu0 0.0
    %348 = vmatpush1.msra.mxu0 0.0
    %349 = vmatprep.subr.mxu0 0.0
    %350 = vmatpush1.msra.mxu0 %v311
    %351 = vmatprep.subr.mxu0 0.0
    %352 = vmatpush1.msra.mxu0 %v310
    %353 = vmatprep.subr.mxu0 0.0
    %354 = vmatpush1.msra.mxu0 %v309
    %355 = vmatprep.subr.mxu0 0.0
    %356 = vmatpush1.msra.mxu0 %v308
    %357 = vmatprep.subr.mxu0 0.0
    %358 = vmatpush2.msra.mxu0 0.0
    %359 = vmatprep.subr.mxu0 0.0
    %360 = vmatpush2.msra.mxu0 0.0
    %361 = vmatprep.subr.mxu0 0.0
    %362 = vmatpush2.msra.mxu0 0.0
    %363 = vmatprep.subr.mxu0 0.0
    %364 = vmatpush2.msra.mxu0 0.0
    %365 = vmatprep.subr.mxu0 0.0
    %366 = vmatpush2.msra.mxu0 0.0
    %367 = vmatprep.subr.mxu0 0.0
    %368 = vmatpush2.msra.mxu0 0.0
    %369 = vmatprep.subr.mxu0 0.0
    %370 = vmatpush2.msra.mxu0 0.0
    %371 = vmatprep.subr.mxu0 0.0
    %372 = vmatpush2.msra.mxu0 0.0
    %373 = vmatprep.subr.mxu0 0.0
    %374 = vmatpush2.msra.mxu0 0.0
    %375 = vmatprep.subr.mxu0 0.0
    %376 = vmatpush2.msra.mxu0 0.0
    %377 = vmatprep.subr.mxu0 0.0
    %378 = vmatpush2.msra.mxu0 0.0
    %379 = vmatprep.subr.mxu0 0.0
    %380 = vmatpush2.msra.mxu0 0.0
    %381 = vmatprep.subr.mxu0 0.0
    %382 = vmatpush2.msra.mxu0 0.0
    %383 = vmatprep.subr.mxu0 0.0
    %384 = vmatpush2.msra.mxu0 0.0
    %385 = vmatprep.subr.mxu0 0.0
    %386 = vmatpush2.msra.mxu0 0.0
    %387 = vmatprep.subr.mxu0 0.0
    %388 = vmatpush2.msra.mxu0 0.0
    %389 = vmatprep.mubr.f32.mxu0 0.0
    %390 = vmatmul.mubr.f32.gmra.mxu0 %v320
    %v391 = vpop.f32.mrf.mxu0
    %v392 = vadd.f32 %v317, %v391
    %v393 = vpop.f32.mrf.mxu0
    %394 = vmatprep.mubr.f32.mxu0 0.0
    %395 = vmatmul.mubr.f32.gmra.mxu0 %v323
    %v396 = vpop.f32.mrf.mxu0
    %v397 = vadd.f32 %v317, %v396
    %v398 = vpop.f32.mrf.mxu0
    %399 = vdwg.mxu0
    %401 = vrot.lane.b32.xlu0 %v392, 96
    %v402 = vpop.permute.xlu0 %401
    %vm403 = vcmask 64512
    %v404 = vsel %vm403, %v392, 0
    %v406 = vsel %vm403, %v402, 0
    %408 = vmatprep.subr.mxu0 0.0
    %409 = vmatpush1.xpose.msra.mxu0 0.0
    %410 = vmatprep.subr.mxu0 0.0
    %411 = vmatpush1.xpose.msra.mxu0 0.0
    %412 = vmatprep.subr.mxu0 0.0
    %413 = vmatpush1.xpose.msra.mxu0 0.0
    %414 = vmatprep.subr.mxu0 0.0
    %415 = vmatpush1.xpose.msra.mxu0 0.0
    %416 = vmatprep.subr.mxu0 0.0
    %417 = vmatpush1.xpose.msra.mxu0 0.0
    %418 = vmatprep.subr.mxu0 0.0
    %419 = vmatpush1.xpose.msra.mxu0 0.0
    %420 = vmatprep.subr.mxu0 0.0
    %421 = vmatpush1.xpose.msra.mxu0 0.0
    %422 = vmatprep.subr.mxu0 0.0
    %423 = vmatpush1.xpose.msra.mxu0 0.0
    %424 = vmatprep.subr.mxu0 0.0
    %425 = vmatpush1.xpose.msra.mxu0 0.0
    %426 = vmatprep.subr.mxu0 0.0
    %427 = vmatpush1.xpose.msra.mxu0 0.0
    %428 = vmatprep.subr.mxu0 0.0
    %429 = vmatpush1.xpose.msra.mxu0 0.0
    %430 = vmatprep.subr.mxu0 0.0
    %431 = vmatpush1.xpose.msra.mxu0 0.0
    %432 = vmatprep.subr.mxu0 0.0
    %433 = vmatpush1.xpose.msra.mxu0 0.0
    %434 = vmatprep.subr.mxu0 0.0
    %435 = vmatpush1.xpose.msra.mxu0 0.0
    %436 = vmatprep.subr.mxu0 0.0
    %437 = vmatpush1.xpose.msra.mxu0 0.0
    %438 = vmatprep.subr.mxu0 0.0
    %439 = vmatpush1.xpose.msra.mxu0 %v406
    %440 = vmatprep.subr.mxu0 0.0
    %441 = vmatpush2.xpose.msra.mxu0 0.0
    %442 = vmatprep.subr.mxu0 0.0
    %443 = vmatpush2.xpose.msra.mxu0 0.0
    %444 = vmatprep.subr.mxu0 0.0
    %445 = vmatpush2.xpose.msra.mxu0 0.0
    %446 = vmatprep.subr.mxu0 0.0
    %447 = vmatpush2.xpose.msra.mxu0 0.0
    %448 = vmatprep.subr.mxu0 0.0
    %449 = vmatpush2.xpose.msra.mxu0 0.0
    %450 = vmatprep.subr.mxu0 0.0
    %451 = vmatpush2.xpose.msra.mxu0 0.0
    %452 = vmatprep.subr.mxu0 0.0
    %453 = vmatpush2.xpose.msra.mxu0 0.0
    %454 = vmatprep.subr.mxu0 0.0
    %455 = vmatpush2.xpose.msra.mxu0 0.0
    %456 = vmatprep.subr.mxu0 0.0
    %457 = vmatpush2.xpose.msra.mxu0 0.0
    %458 = vmatprep.subr.mxu0 0.0
    %459 = vmatpush2.xpose.msra.mxu0 0.0
    %460 = vmatprep.subr.mxu0 0.0
    %461 = vmatpush2.xpose.msra.mxu0 0.0
    %462 = vmatprep.subr.mxu0 0.0
    %463 = vmatpush2.xpose.msra.mxu0 0.0
    %464 = vmatprep.subr.mxu0 0.0
    %465 = vmatpush2.xpose.msra.mxu0 0.0
    %466 = vmatprep.subr.mxu0 0.0
    %467 = vmatpush2.xpose.msra.mxu0 0.0
    %468 = vmatprep.subr.mxu0 0.0
    %469 = vmatpush2.xpose.msra.mxu0 0.0
    %470 = vmatprep.subr.mxu0 0.0
    %471 = vmatpush2.xpose.msra.mxu0 0.0
    %472 = vmatprep.mubr.f32.mxu0 0.0
    %473 = vmatmul.mubr.f32.gmra.mxu0 %v404
    %v474 = vpop.f32.mrf.mxu0
    %v475 = vadd.f32 0.0, %v474
    %v476 = vpop.f32.mrf.mxu0
    %477 = vdwg.mxu0
    %v478 = vmul.f32 %v475, 0.35355338
    %v479 = vlaneseq
    %v480 = vshrl.u32 %v479, 7
    %v481 = vsub.s32 0, %v480
    %v482 = vrot.slane %v307, %v481
    %v483 = vadd.f32 %v478, %v482
    %v484 = vsel %vm403, %v483, -inf
    %485 = vmax.xlane.f32.xlu0 %v484
    %v486 = vpop.xlane.xlu0 %485
    %v487 = vsub.f32 %v483, %v486
    %v488 = vmul.f32 %v487, 1.442695
    %v489 = vpow.pop %v488
    %v490 = vsel %vm403, %v489, 0.0
    %491 = vadd.xlane.f32.xlu0 %v490
    %v492 = vpop.xlane.xlu0 %491
    %v493 = vrcp.pop %v492
    %v494 = vmul.f32 %v489, %v493
    %495 = vrot.lane.b32.xlu0 %v392, 64
    %v496 = vpop.permute.xlu0 %495
    %v499 = vsel %vm403, %v494, 0
    %501 = vmatprep.subr.mxu0 0.0
    %502 = vmatpush1.msra.mxu0 0.0
    %503 = vmatprep.subr.mxu0 0.0
    %504 = vmatpush1.msra.mxu0 0.0
    %505 = vmatprep.subr.mxu0 0.0
    %506 = vmatpush1.msra.mxu0 0.0
    %507 = vmatprep.subr.mxu0 0.0
    %508 = vmatpush1.msra.mxu0 0.0
    %509 = vmatprep.subr.mxu0 0.0
    %510 = vmatpush1.msra.mxu0 0.0
    %511 = vmatprep.subr.mxu0 0.0
    %512 = vmatpush1.msra.mxu0 0.0
    %513 = vmatprep.subr.mxu0 0.0
    %514 = vmatpush1.msra.mxu0 0.0
    %515 = vmatprep.subr.mxu0 0.0
    %516 = vmatpush1.msra.mxu0 0.0
    %517 = vmatprep.subr.mxu0 0.0
    %518 = vmatpush1.msra.mxu0 0.0
    %519 = vmatprep.subr.mxu0 0.0
    %520 = vmatpush1.msra.mxu0 0.0
    %521 = vmatprep.subr.mxu0 0.0
    %522 = vmatpush1.msra.mxu0 0.0
    %523 = vmatprep.subr.mxu0 0.0
    %524 = vmatpush1.msra.mxu0 0.0
    %525 = vmatprep.subr.mxu0 0.0
    %526 = vmatpush1.msra.mxu0 0.0
    %527 = vmatprep.subr.mxu0 0.0
    %528 = vmatpush1.msra.mxu0 0.0
    %529 = vmatprep.subr.mxu0 0.0
    %530 = vmatpush1.msra.mxu0 0.0
    %531 = vmatprep.subr.mxu0 0.0
    %532 = vmatpush1.msra.mxu0 %v496
    %533 = vmatprep.subr.mxu0 0.0
    %534 = vmatpush2.msra.mxu0 0.0
    %535 = vmatprep.subr.mxu0 0.0
    %536 = vmatpush2.msra.mxu0 0.0
    %537 = vmatprep.subr.mxu0 0.0
    %538 = vmatpush2.msra.mxu0 0.0
    %539 = vmatprep.subr.mxu0 0.0
    %540 = vmatpush2.msra.mxu0 0.0
    %541 = vmatprep.subr.mxu0 0.0
    %542 = vmatpush2.msra.mxu0 0.0
    %543 = vmatprep.subr.mxu0 0.0
    %544 = vmatpush2.msra.mxu0 0.0
    %545 = vmatprep.subr.mxu0 0.0
    %546 = vmatpush2.msra.mxu0 0.0
    %547 = vmatprep.subr.mxu0 0.0
    %548 = vmatpush2.msra.mxu0 0.0
    %549 = vmatprep.subr.mxu0 0.0
    %550 = vmatpush2.msra.mxu0 0.0
    %551 = vmatprep.subr.mxu0 0.0
    %552 = vmatpush2.msra.mxu0 0.0
    %553 = vmatprep.subr.mxu0 0.0
    %554 = vmatpush2.msra.mxu0 0.0
    %555 = vmatprep.subr.mxu0 0.0
    %556 = vmatpush2.msra.mxu0 0.0
    %557 = vmatprep.subr.mxu0 0.0
    %558 = vmatpush2.msra.mxu0 0.0
    %559 = vmatprep.subr.mxu0 0.0
    %560 = vmatpush2.msra.mxu0 0.0
    %561 = vmatprep.subr.mxu0 0.0
    %562 = vmatpush2.msra.mxu0 0.0
    %563 = vmatprep.subr.mxu0 0.0
    %564 = vmatpush2.msra.mxu0 0.0
    %565 = vmatprep.mubr.f32.mxu0 0.0
    %566 = vmatmul.mubr.f32.gmra.mxu0 %v499
    %v567 = vpop.f32.mrf.mxu0
    %v568 = vadd.f32 0.0, %v567
    %v569 = vpop.f32.mrf.mxu0
    %570 = vdwg.mxu0
    %571 = vrot.lane.b32.xlu0 %v392, 120
    %v572 = vpop.permute.xlu0 %571
    %573 = vrot.lane.b32.xlu0 %v392, 88
    %v574 = vpop.permute.xlu0 %573
    %v575 = vsel %vm403, %v572, 0
    %v577 = vsel %vm403, %v574, 0
    %579 = vmatprep.subr.mxu0 0.0
    %580 = vmatpush1.xpose.msra.mxu0 0.0
    %581 = vmatprep.subr.mxu0 0.0
    %582 = vmatpush1.xpose.msra.mxu0 0.0
    %583 = vmatprep.subr.mxu0 0.0
    %584 = vmatpush1.xpose.msra.mxu0 0.0
    %585 = vmatprep.subr.mxu0 0.0
    %586 = vmatpush1.xpose.msra.mxu0 0.0
    %587 = vmatprep.subr.mxu0 0.0
    %588 = vmatpush1.xpose.msra.mxu0 0.0
    %589 = vmatprep.subr.mxu0 0.0
    %590 = vmatpush1.xpose.msra.mxu0 0.0
    %591 = vmatprep.subr.mxu0 0.0
    %592 = vmatpush1.xpose.msra.mxu0 0.0
    %593 = vmatprep.subr.mxu0 0.0
    %594 = vmatpush1.xpose.msra.mxu0 0.0
    %595 = vmatprep.subr.mxu0 0.0
    %596 = vmatpush1.xpose.msra.mxu0 0.0
    %597 = vmatprep.subr.mxu0 0.0
    %598 = vmatpush1.xpose.msra.mxu0 0.0
    %599 = vmatprep.subr.mxu0 0.0
    %600 = vmatpush1.xpose.msra.mxu0 0.0
    %601 = vmatprep.subr.mxu0 0.0
    %602 = vmatpush1.xpose.msra.mxu0 0.0
    %603 = vmatprep.subr.mxu0 0.0
    %604 = vmatpush1.xpose.msra.mxu0 0.0
    %605 = vmatprep.subr.mxu0 0.0
    %606 = vmatpush1.xpose.msra.mxu0 0.0
    %607 = vmatprep.subr.mxu0 0.0
    %608 = vmatpush1.xpose.msra.mxu0 0.0
    %609 = vmatprep.subr.mxu0 0.0
    %610 = vmatpush1.xpose.msra.mxu0 %v577
    %611 = vmatprep.subr.mxu0 0.0
    %612 = vmatpush2.xpose.msra.mxu0 0.0
    %613 = vmatprep.subr.mxu0 0.0
    %614 = vmatpush2.xpose.msra.mxu0 0.0
    %615 = vmatprep.subr.mxu0 0.0
    %616 = vmatpush2.xpose.msra.mxu0 0.0
    %617 = vmatprep.subr.mxu0 0.0
    %618 = vmatpush2.xpose.msra.mxu0 0.0
    %619 = vmatprep.subr.mxu0 0.0
    %620 = vmatpush2.xpose.msra.mxu0 0.0
    %621 = vmatprep.subr.mxu0 0.0
    %622 = vmatpush2.xpose.msra.mxu0 0.0
    %623 = vmatprep.subr.mxu0 0.0
    %624 = vmatpush2.xpose.msra.mxu0 0.0
    %625 = vmatprep.subr.mxu0 0.0
    %626 = vmatpush2.xpose.msra.mxu0 0.0
    %627 = vmatprep.subr.mxu0 0.0
    %628 = vmatpush2.xpose.msra.mxu0 0.0
    %629 = vmatprep.subr.mxu0 0.0
    %630 = vmatpush2.xpose.msra.mxu0 0.0
    %631 = vmatprep.subr.mxu0 0.0
    %632 = vmatpush2.xpose.msra.mxu0 0.0
    %633 = vmatprep.subr.mxu0 0.0
    %634 = vmatpush2.xpose.msra.mxu0 0.0
    %635 = vmatprep.subr.mxu0 0.0
    %636 = vmatpush2.xpose.msra.mxu0 0.0
    %637 = vmatprep.subr.mxu0 0.0
    %638 = vmatpush2.xpose.msra.mxu0 0.0
    %639 = vmatprep.subr.mxu0 0.0
    %640 = vmatpush2.xpose.msra.mxu0 0.0
    %641 = vmatprep.subr.mxu0 0.0
    %642 = vmatpush2.xpose.msra.mxu0 0.0
    %643 = vmatprep.mubr.f32.mxu0 0.0
    %644 = vmatmul.mubr.f32.gmra.mxu0 %v575
    %v645 = vpop.f32.mrf.mxu0
    %v646 = vadd.f32 0.0, %v645
    %v647 = vpop.f32.mrf.mxu0
    %648 = vdwg.mxu0
    %v649 = vmul.f32 %v646, 0.35355338
    %v650 = vadd.f32 %v649, %v482
    %v651 = vsel %vm403, %v650, -inf
    %652 = vmax.xlane.f32.xlu0 %v651
    %v653 = vpop.xlane.xlu0 %652
    %v654 = vsub.f32 %v650, %v653
    %v655 = vmul.f32 %v654, 1.442695
    %v656 = vpow.pop %v655
    %v657 = vsel %vm403, %v656, 0.0
    %658 = vadd.xlane.f32.xlu0 %v657
    %v659 = vpop.xlane.xlu0 %658
    %v660 = vrcp.pop %v659
    %v661 = vmul.f32 %v656, %v660
    %662 = vrot.lane.b32.xlu0 %v392, 56
    %v663 = vpop.permute.xlu0 %662
    %v666 = vsel %vm403, %v661, 0
    %668 = vmatprep.subr.mxu0 0.0
    %669 = vmatpush1.msra.mxu0 0.0
    %670 = vmatprep.subr.mxu0 0.0
    %671 = vmatpush1.msra.mxu0 0.0
    %672 = vmatprep.subr.mxu0 0.0
    %673 = vmatpush1.msra.mxu0 0.0
    %674 = vmatprep.subr.mxu0 0.0
    %675 = vmatpush1.msra.mxu0 0.0
    %676 = vmatprep.subr.mxu0 0.0
    %677 = vmatpush1.msra.mxu0 0.0
    %678 = vmatprep.subr.mxu0 0.0
    %679 = vmatpush1.msra.mxu0 0.0
    %680 = vmatprep.subr.mxu0 0.0
    %681 = vmatpush1.msra.mxu0 0.0
    %682 = vmatprep.subr.mxu0 0.0
    %683 = vmatpush1.msra.mxu0 0.0
    %684 = vmatprep.subr.mxu0 0.0
    %685 = vmatpush1.msra.mxu0 0.0
    %686 = vmatprep.subr.mxu0 0.0
    %687 = vmatpush1.msra.mxu0 0.0
    %688 = vmatprep.subr.mxu0 0.0
    %689 = vmatpush1.msra.mxu0 0.0
    %690 = vmatprep.subr.mxu0 0.0
    %691 = vmatpush1.msra.mxu0 0.0
    %692 = vmatprep.subr.mxu0 0.0
    %693 = vmatpush1.msra.mxu0 0.0
    %694 = vmatprep.subr.mxu0 0.0
    %695 = vmatpush1.msra.mxu0 0.0
    %696 = vmatprep.subr.mxu0 0.0
    %697 = vmatpush1.msra.mxu0 0.0
    %698 = vmatprep.subr.mxu0 0.0
    %699 = vmatpush1.msra.mxu0 %v663
    %700 = vmatprep.subr.mxu0 0.0
    %701 = vmatpush2.msra.mxu0 0.0
    %702 = vmatprep.subr.mxu0 0.0
    %703 = vmatpush2.msra.mxu0 0.0
    %704 = vmatprep.subr.mxu0 0.0
    %705 = vmatpush2.msra.mxu0 0.0
    %706 = vmatprep.subr.mxu0 0.0
    %707 = vmatpush2.msra.mxu0 0.0
    %708 = vmatprep.subr.mxu0 0.0
    %709 = vmatpush2.msra.mxu0 0.0
    %710 = vmatprep.subr.mxu0 0.0
    %711 = vmatpush2.msra.mxu0 0.0
    %712 = vmatprep.subr.mxu0 0.0
    %713 = vmatpush2.msra.mxu0 0.0
    %714 = vmatprep.subr.mxu0 0.0
    %715 = vmatpush2.msra.mxu0 0.0
    %716 = vmatprep.subr.mxu0 0.0
    %717 = vmatpush2.msra.mxu0 0.0
    %718 = vmatprep.subr.mxu0 0.0
    %719 = vmatpush2.msra.mxu0 0.0
    %720 = vmatprep.subr.mxu0 0.0
    %721 = vmatpush2.msra.mxu0 0.0
    %722 = vmatprep.subr.mxu0 0.0
    %723 = vmatpush2.msra.mxu0 0.0
    %724 = vmatprep.subr.mxu0 0.0
    %725 = vmatpush2.msra.mxu0 0.0
    %726 = vmatprep.subr.mxu0 0.0
    %727 = vmatpush2.msra.mxu0 0.0
    %728 = vmatprep.subr.mxu0 0.0
    %729 = vmatpush2.msra.mxu0 0.0
    %730 = vmatprep.subr.mxu0 0.0
    %731 = vmatpush2.msra.mxu0 0.0
    %732 = vmatprep.mubr.f32.mxu0 0.0
    %733 = vmatmul.mubr.f32.gmra.mxu0 %v666
    %v734 = vpop.f32.mrf.mxu0
    %v735 = vadd.f32 0.0, %v734
    %v736 = vpop.f32.mrf.mxu0
    %737 = vdwg.mxu0
    %738 = vrot.lane.b32.xlu0 %v392, 112
    %v739 = vpop.permute.xlu0 %738
    %740 = vrot.lane.b32.xlu0 %v392, 80
    %v741 = vpop.permute.xlu0 %740
    %v742 = vsel %vm403, %v739, 0
    %v744 = vsel %vm403, %v741, 0
    %746 = vmatprep.subr.mxu0 0.0
    %747 = vmatpush1.xpose.msra.mxu0 0.0
    %748 = vmatprep.subr.mxu0 0.0
    %749 = vmatpush1.xpose.msra.mxu0 0.0
    %750 = vmatprep.subr.mxu0 0.0
    %751 = vmatpush1.xpose.msra.mxu0 0.0
    %752 = vmatprep.subr.mxu0 0.0
    %753 = vmatpush1.xpose.msra.mxu0 0.0
    %754 = vmatprep.subr.mxu0 0.0
    %755 = vmatpush1.xpose.msra.mxu0 0.0
    %756 = vmatprep.subr.mxu0 0.0
    %757 = vmatpush1.xpose.msra.mxu0 0.0
    %758 = vmatprep.subr.mxu0 0.0
    %759 = vmatpush1.xpose.msra.mxu0 0.0
    %760 = vmatprep.subr.mxu0 0.0
    %761 = vmatpush1.xpose.msra.mxu0 0.0
    %762 = vmatprep.subr.mxu0 0.0
    %763 = vmatpush1.xpose.msra.mxu0 0.0
    %764 = vmatprep.subr.mxu0 0.0
    %765 = vmatpush1.xpose.msra.mxu0 0.0
    %766 = vmatprep.subr.mxu0 0.0
    %767 = vmatpush1.xpose.msra.mxu0 0.0
    %768 = vmatprep.subr.mxu0 0.0
    %769 = vmatpush1.xpose.msra.mxu0 0.0
    %770 = vmatprep.subr.mxu0 0.0
    %771 = vmatpush1.xpose.msra.mxu0 0.0
    %772 = vmatprep.subr.mxu0 0.0
    %773 = vmatpush1.xpose.msra.mxu0 0.0
    %774 = vmatprep.subr.mxu0 0.0
    %775 = vmatpush1.xpose.msra.mxu0 0.0
    %776 = vmatprep.subr.mxu0 0.0
    %777 = vmatpush1.xpose.msra.mxu0 %v744
    %778 = vmatprep.subr.mxu0 0.0
    %779 = vmatpush2.xpose.msra.mxu0 0.0
    %780 = vmatprep.subr.mxu0 0.0
    %781 = vmatpush2.xpose.msra.mxu0 0.0
    %782 = vmatprep.subr.mxu0 0.0
    %783 = vmatpush2.xpose.msra.mxu0 0.0
    %784 = vmatprep.subr.mxu0 0.0
    %785 = vmatpush2.xpose.msra.mxu0 0.0
    %786 = vmatprep.subr.mxu0 0.0
    %787 = vmatpush2.xpose.msra.mxu0 0.0
    %788 = vmatprep.subr.mxu0 0.0
    %789 = vmatpush2.xpose.msra.mxu0 0.0
    %790 = vmatprep.subr.mxu0 0.0
    %791 = vmatpush2.xpose.msra.mxu0 0.0
    %792 = vmatprep.subr.mxu0 0.0
    %793 = vmatpush2.xpose.msra.mxu0 0.0
    %794 = vmatprep.subr.mxu0 0.0
    %795 = vmatpush2.xpose.msra.mxu0 0.0
    %796 = vmatprep.subr.mxu0 0.0
    %797 = vmatpush2.xpose.msra.mxu0 0.0
    %798 = vmatprep.subr.mxu0 0.0
    %799 = vmatpush2.xpose.msra.mxu0 0.0
    %800 = vmatprep.subr.mxu0 0.0
    %801 = vmatpush2.xpose.msra.mxu0 0.0
    %802 = vmatprep.subr.mxu0 0.0
    %803 = vmatpush2.xpose.msra.mxu0 0.0
    %804 = vmatprep.subr.mxu0 0.0
    %805 = vmatpush2.xpose.msra.mxu0 0.0
    %806 = vmatprep.subr.mxu0 0.0
    %807 = vmatpush2.xpose.msra.mxu0 0.0
    %808 = vmatprep.subr.mxu0 0.0
    %809 = vmatpush2.xpose.msra.mxu0 0.0
    %810 = vmatprep.mubr.f32.mxu0 0.0
    %811 = vmatmul.mubr.f32.gmra.mxu0 %v742
    %v812 = vpop.f32.mrf.mxu0
    %v813 = vadd.f32 0.0, %v812
    %v814 = vpop.f32.mrf.mxu0
    %815 = vdwg.mxu0
    %v816 = vmul.f32 %v813, 0.35355338
    %v817 = vadd.f32 %v816, %v482
    %v818 = vsel %vm403, %v817, -inf
    %819 = vmax.xlane.f32.xlu0 %v818
    %v820 = vpop.xlane.xlu0 %819
    %v821 = vsub.f32 %v817, %v820
    %v822 = vmul.f32 %v821, 1.442695
    %v823 = vpow.pop %v822
    %v824 = vsel %vm403, %v823, 0.0
    %825 = vadd.xlane.f32.xlu0 %v824
    %v826 = vpop.xlane.xlu0 %825
    %v827 = vrcp.pop %v826
    %v828 = vmul.f32 %v823, %v827
    %829 = vrot.lane.b32.xlu0 %v392, 48
    %v830 = vpop.permute.xlu0 %829
    %v833 = vsel %vm403, %v828, 0
    %835 = vmatprep.subr.mxu0 0.0
    %836 = vmatpush1.msra.mxu0 0.0
    %837 = vmatprep.subr.mxu0 0.0
    %838 = vmatpush1.msra.mxu0 0.0
    %839 = vmatprep.subr.mxu0 0.0
    %840 = vmatpush1.msra.mxu0 0.0
    %841 = vmatprep.subr.mxu0 0.0
    %842 = vmatpush1.msra.mxu0 0.0
    %843 = vmatprep.subr.mxu0 0.0
    %844 = vmatpush1.msra.mxu0 0.0
    %845 = vmatprep.subr.mxu0 0.0
    %846 = vmatpush1.msra.mxu0 0.0
    %847 = vmatprep.subr.mxu0 0.0
    %848 = vmatpush1.msra.mxu0 0.0
    %849 = vmatprep.subr.mxu0 0.0
    %850 = vmatpush1.msra.mxu0 0.0
    %851 = vmatprep.subr.mxu0 0.0
    %852 = vmatpush1.msra.mxu0 0.0
    %853 = vmatprep.subr.mxu0 0.0
    %854 = vmatpush1.msra.mxu0 0.0
    %855 = vmatprep.subr.mxu0 0.0
    %856 = vmatpush1.msra.mxu0 0.0
    %857 = vmatprep.subr.mxu0 0.0
    %858 = vmatpush1.msra.mxu0 0.0
    %859 = vmatprep.subr.mxu0 0.0
    %860 = vmatpush1.msra.mxu0 0.0
    %861 = vmatprep.subr.mxu0 0.0
    %862 = vmatpush1.msra.mxu0 0.0
    %863 = vmatprep.subr.mxu0 0.0
    %864 = vmatpush1.msra.mxu0 0.0
    %865 = vmatprep.subr.mxu0 0.0
    %866 = vmatpush1.msra.mxu0 %v830
    %867 = vmatprep.subr.mxu0 0.0
    %868 = vmatpush2.msra.mxu0 0.0
    %869 = vmatprep.subr.mxu0 0.0
    %870 = vmatpush2.msra.mxu0 0.0
    %871 = vmatprep.subr.mxu0 0.0
    %872 = vmatpush2.msra.mxu0 0.0
    %873 = vmatprep.subr.mxu0 0.0
    %874 = vmatpush2.msra.mxu0 0.0
    %875 = vmatprep.subr.mxu0 0.0
    %876 = vmatpush2.msra.mxu0 0.0
    %877 = vmatprep.subr.mxu0 0.0
    %878 = vmatpush2.msra.mxu0 0.0
    %879 = vmatprep.subr.mxu0 0.0
    %880 = vmatpush2.msra.mxu0 0.0
    %881 = vmatprep.subr.mxu0 0.0
    %882 = vmatpush2.msra.mxu0 0.0
    %883 = vmatprep.subr.mxu0 0.0
    %884 = vmatpush2.msra.mxu0 0.0
    %885 = vmatprep.subr.mxu0 0.0
    %886 = vmatpush2.msra.mxu0 0.0
    %887 = vmatprep.subr.mxu0 0.0
    %888 = vmatpush2.msra.mxu0 0.0
    %889 = vmatprep.subr.mxu0 0.0
    %890 = vmatpush2.msra.mxu0 0.0
    %891 = vmatprep.subr.mxu0 0.0
    %892 = vmatpush2.msra.mxu0 0.0
    %893 = vmatprep.subr.mxu0 0.0
    %894 = vmatpush2.msra.mxu0 0.0
    %895 = vmatprep.subr.mxu0 0.0
    %896 = vmatpush2.msra.mxu0 0.0
    %897 = vmatprep.subr.mxu0 0.0
    %898 = vmatpush2.msra.mxu0 0.0
    %899 = vmatprep.mubr.f32.mxu0 0.0
    %900 = vmatmul.mubr.f32.gmra.mxu0 %v833
    %v901 = vpop.f32.mrf.mxu0
    %v902 = vadd.f32 0.0, %v901
    %v903 = vpop.f32.mrf.mxu0
    %904 = vdwg.mxu0
    %905 = vrot.lane.b32.xlu0 %v392, 104
    %v906 = vpop.permute.xlu0 %905
    %907 = vrot.lane.b32.xlu0 %v392, 72
    %v908 = vpop.permute.xlu0 %907
    %v909 = vsel %vm403, %v906, 0
    %v911 = vsel %vm403, %v908, 0
    %913 = vmatprep.subr.mxu0 0.0
    %914 = vmatpush1.xpose.msra.mxu0 0.0
    %915 = vmatprep.subr.mxu0 0.0
    %916 = vmatpush1.xpose.msra.mxu0 0.0
    %917 = vmatprep.subr.mxu0 0.0
    %918 = vmatpush1.xpose.msra.mxu0 0.0
    %919 = vmatprep.subr.mxu0 0.0
    %920 = vmatpush1.xpose.msra.mxu0 0.0
    %921 = vmatprep.subr.mxu0 0.0
    %922 = vmatpush1.xpose.msra.mxu0 0.0
    %923 = vmatprep.subr.mxu0 0.0
    %924 = vmatpush1.xpose.msra.mxu0 0.0
    %925 = vmatprep.subr.mxu0 0.0
    %926 = vmatpush1.xpose.msra.mxu0 0.0
    %927 = vmatprep.subr.mxu0 0.0
    %928 = vmatpush1.xpose.msra.mxu0 0.0
    %929 = vmatprep.subr.mxu0 0.0
    %930 = vmatpush1.xpose.msra.mxu0 0.0
    %931 = vmatprep.subr.mxu0 0.0
    %932 = vmatpush1.xpose.msra.mxu0 0.0
    %933 = vmatprep.subr.mxu0 0.0
    %934 = vmatpush1.xpose.msra.mxu0 0.0
    %935 = vmatprep.subr.mxu0 0.0
    %936 = vmatpush1.xpose.msra.mxu0 0.0
    %937 = vmatprep.subr.mxu0 0.0
    %938 = vmatpush1.xpose.msra.mxu0 0.0
    %939 = vmatprep.subr.mxu0 0.0
    %940 = vmatpush1.xpose.msra.mxu0 0.0
    %941 = vmatprep.subr.mxu0 0.0
    %942 = vmatpush1.xpose.msra.mxu0 0.0
    %943 = vmatprep.subr.mxu0 0.0
    %944 = vmatpush1.xpose.msra.mxu0 %v911
    %945 = vmatprep.subr.mxu0 0.0
    %946 = vmatpush2.xpose.msra.mxu0 0.0
    %947 = vmatprep.subr.mxu0 0.0
    %948 = vmatpush2.xpose.msra.mxu0 0.0
    %949 = vmatprep.subr.mxu0 0.0
    %950 = vmatpush2.xpose.msra.mxu0 0.0
    %951 = vmatprep.subr.mxu0 0.0
    %952 = vmatpush2.xpose.msra.mxu0 0.0
    %953 = vmatprep.subr.mxu0 0.0
    %954 = vmatpush2.xpose.msra.mxu0 0.0
    %955 = vmatprep.subr.mxu0 0.0
    %956 = vmatpush2.xpose.msra.mxu0 0.0
    %957 = vmatprep.subr.mxu0 0.0
    %958 = vmatpush2.xpose.msra.mxu0 0.0
    %959 = vmatprep.subr.mxu0 0.0
    %960 = vmatpush2.xpose.msra.mxu0 0.0
    %961 = vmatprep.subr.mxu0 0.0
    %962 = vmatpush2.xpose.msra.mxu0 0.0
    %963 = vmatprep.subr.mxu0 0.0
    %964 = vmatpush2.xpose.msra.mxu0 0.0
    %965 = vmatprep.subr.mxu0 0.0
    %966 = vmatpush2.xpose.msra.mxu0 0.0
    %967 = vmatprep.subr.mxu0 0.0
    %968 = vmatpush2.xpose.msra.mxu0 0.0
    %969 = vmatprep.subr.mxu0 0.0
    %970 = vmatpush2.xpose.msra.mxu0 0.0
    %971 = vmatprep.subr.mxu0 0.0
    %972 = vmatpush2.xpose.msra.mxu0 0.0
    %973 = vmatprep.subr.mxu0 0.0
    %974 = vmatpush2.xpose.msra.mxu0 0.0
    %975 = vmatprep.subr.mxu0 0.0
    %976 = vmatpush2.xpose.msra.mxu0 0.0
    %977 = vmatprep.mubr.f32.mxu0 0.0
    %978 = vmatmul.mubr.f32.gmra.mxu0 %v909
    %v979 = vpop.f32.mrf.mxu0
    %v980 = vadd.f32 0.0, %v979
    %v981 = vpop.f32.mrf.mxu0
    %982 = vdwg.mxu0
    %v983 = vmul.f32 %v980, 0.35355338
    %v984 = vadd.f32 %v983, %v482
    %v985 = vsel %vm403, %v984, -inf
    %986 = vmax.xlane.f32.xlu0 %v985
    %v987 = vpop.xlane.xlu0 %986
    %v988 = vsub.f32 %v984, %v987
    %v989 = vmul.f32 %v988, 1.442695
    %v990 = vpow.pop %v989
    %v991 = vsel %vm403, %v990, 0.0
    %992 = vadd.xlane.f32.xlu0 %v991
    %v993 = vpop.xlane.xlu0 %992
    %v994 = vrcp.pop %v993
    %v995 = vmul.f32 %v990, %v994
    %996 = vrot.lane.b32.xlu0 %v392, 40
    %v997 = vpop.permute.xlu0 %996
    %v1000 = vsel %vm403, %v995, 0
    %1002 = vmatprep.subr.mxu0 0.0
    %1003 = vmatpush1.msra.mxu0 0.0
    %1004 = vmatprep.subr.mxu0 0.0
    %1005 = vmatpush1.msra.mxu0 0.0
    %1006 = vmatprep.subr.mxu0 0.0
    %1007 = vmatpush1.msra.mxu0 0.0
    %1008 = vmatprep.subr.mxu0 0.0
    %1009 = vmatpush1.msra.mxu0 0.0
    %1010 = vmatprep.subr.mxu0 0.0
    %1011 = vmatpush1.msra.mxu0 0.0
    %1012 = vmatprep.subr.mxu0 0.0
    %1013 = vmatpush1.msra.mxu0 0.0
    %1014 = vmatprep.subr.mxu0 0.0
    %1015 = vmatpush1.msra.mxu0 0.0
    %1016 = vmatprep.subr.mxu0 0.0
    %1017 = vmatpush1.msra.mxu0 0.0
    %1018 = vmatprep.subr.mxu0 0.0
    %1019 = vmatpush1.msra.mxu0 0.0
    %1020 = vmatprep.subr.mxu0 0.0
    %1021 = vmatpush1.msra.mxu0 0.0
    %1022 = vmatprep.subr.mxu0 0.0
    %1023 = vmatpush1.msra.mxu0 0.0
    %1024 = vmatprep.subr.mxu0 0.0
    %1025 = vmatpush1.msra.mxu0 0.0
    %1026 = vmatprep.subr.mxu0 0.0
    %1027 = vmatpush1.msra.mxu0 0.0
    %1028 = vmatprep.subr.mxu0 0.0
    %1029 = vmatpush1.msra.mxu0 0.0
    %1030 = vmatprep.subr.mxu0 0.0
    %1031 = vmatpush1.msra.mxu0 0.0
    %1032 = vmatprep.subr.mxu0 0.0
    %1033 = vmatpush1.msra.mxu0 %v997
    %1034 = vmatprep.subr.mxu0 0.0
    %1035 = vmatpush2.msra.mxu0 0.0
    %1036 = vmatprep.subr.mxu0 0.0
    %1037 = vmatpush2.msra.mxu0 0.0
    %1038 = vmatprep.subr.mxu0 0.0
    %1039 = vmatpush2.msra.mxu0 0.0
    %1040 = vmatprep.subr.mxu0 0.0
    %1041 = vmatpush2.msra.mxu0 0.0
    %1042 = vmatprep.subr.mxu0 0.0
    %1043 = vmatpush2.msra.mxu0 0.0
    %1044 = vmatprep.subr.mxu0 0.0
    %1045 = vmatpush2.msra.mxu0 0.0
    %1046 = vmatprep.subr.mxu0 0.0
    %1047 = vmatpush2.msra.mxu0 0.0
    %1048 = vmatprep.subr.mxu0 0.0
    %1049 = vmatpush2.msra.mxu0 0.0
    %1050 = vmatprep.subr.mxu0 0.0
    %1051 = vmatpush2.msra.mxu0 0.0
    %1052 = vmatprep.subr.mxu0 0.0
    %1053 = vmatpush2.msra.mxu0 0.0
    %1054 = vmatprep.subr.mxu0 0.0
    %1055 = vmatpush2.msra.mxu0 0.0
    %1056 = vmatprep.subr.mxu0 0.0
    %1057 = vmatpush2.msra.mxu0 0.0
    %1058 = vmatprep.subr.mxu0 0.0
    %1059 = vmatpush2.msra.mxu0 0.0
    %1060 = vmatprep.subr.mxu0 0.0
    %1061 = vmatpush2.msra.mxu0 0.0
    %1062 = vmatprep.subr.mxu0 0.0
    %1063 = vmatpush2.msra.mxu0 0.0
    %1064 = vmatprep.subr.mxu0 0.0
    %1065 = vmatpush2.msra.mxu0 0.0
    %1066 = vmatprep.mubr.f32.mxu0 0.0
    %1067 = vmatmul.mubr.f32.gmra.mxu0 %v1000
    %v1068 = vpop.f32.mrf.mxu0
    %v1069 = vadd.f32 0.0, %v1068
    %v1070 = vpop.f32.mrf.mxu0
    %1071 = vdwg.mxu0
    %1073 = vrot.lane.b32.xlu0 %v735, 8
    %v1074 = vpop.permute.xlu0 %1073
    %1077 = vrot.lane.b32.xlu0 %v902, 16
    %v1078 = vpop.permute.xlu0 %1077
    %1081 = vrot.lane.b32.xlu0 %v1069, 24
    %v1082 = vpop.permute.xlu0 %1081
    %v1084 = vsel %vm403, %v568, %v1074
    %vm1085 = vcmask 130048
    %v1086 = vsel %vm1085, %v1084, %v1078
    %vm1087 = vcmask 195584
    %v1088 = vsel %vm1087, %v1086, %v1082
    %1090 = vrot.lane.b32.xlu0 %v397, 96
    %v1091 = vpop.permute.xlu0 %1090
    %v1092 = vsel %vm403, %v397, 0
    %v1094 = vsel %vm403, %v1091, 0
    %1096 = vmatprep.subr.mxu0 0.0
    %1097 = vmatpush1.xpose.msra.mxu0 0.0
    %1098 = vmatprep.subr.mxu0 0.0
    %1099 = vmatpush1.xpose.msra.mxu0 0.0
    %1100 = vmatprep.subr.mxu0 0.0
    %1101 = vmatpush1.xpose.msra.mxu0 0.0
    %1102 = vmatprep.subr.mxu0 0.0
    %1103 = vmatpush1.xpose.msra.mxu0 0.0
    %1104 = vmatprep.subr.mxu0 0.0
    %1105 = vmatpush1.xpose.msra.mxu0 0.0
    %1106 = vmatprep.subr.mxu0 0.0
    %1107 = vmatpush1.xpose.msra.mxu0 0.0
    %1108 = vmatprep.subr.mxu0 0.0
    %1109 = vmatpush1.xpose.msra.mxu0 0.0
    %1110 = vmatprep.subr.mxu0 0.0
    %1111 = vmatpush1.xpose.msra.mxu0 0.0
    %1112 = vmatprep.subr.mxu0 0.0
    %1113 = vmatpush1.xpose.msra.mxu0 0.0
    %1114 = vmatprep.subr.mxu0 0.0
    %1115 = vmatpush1.xpose.msra.mxu0 0.0
    %1116 = vmatprep.subr.mxu0 0.0
    %1117 = vmatpush1.xpose.msra.mxu0 0.0
    %1118 = vmatprep.subr.mxu0 0.0
    %1119 = vmatpush1.xpose.msra.mxu0 0.0
    %1120 = vmatprep.subr.mxu0 0.0
    %1121 = vmatpush1.xpose.msra.mxu0 0.0
    %1122 = vmatprep.subr.mxu0 0.0
    %1123 = vmatpush1.xpose.msra.mxu0 0.0
    %1124 = vmatprep.subr.mxu0 0.0
    %1125 = vmatpush1.xpose.msra.mxu0 0.0
    %1126 = vmatprep.subr.mxu0 0.0
    %1127 = vmatpush1.xpose.msra.mxu0 %v1094
    %1128 = vmatprep.subr.mxu0 0.0
    %1129 = vmatpush2.xpose.msra.mxu0 0.0
    %1130 = vmatprep.subr.mxu0 0.0
    %1131 = vmatpush2.xpose.msra.mxu0 0.0
    %1132 = vmatprep.subr.mxu0 0.0
    %1133 = vmatpush2.xpose.msra.mxu0 0.0
    %1134 = vmatprep.subr.mxu0 0.0
    %1135 = vmatpush2.xpose.msra.mxu0 0.0
    %1136 = vmatprep.subr.mxu0 0.0
    %1137 = vmatpush2.xpose.msra.mxu0 0.0
    %1138 = vmatprep.subr.mxu0 0.0
    %1139 = vmatpush2.xpose.msra.mxu0 0.0
    %1140 = vmatprep.subr.mxu0 0.0
    %1141 = vmatpush2.xpose.msra.mxu0 0.0
    %1142 = vmatprep.subr.mxu0 0.0
    %1143 = vmatpush2.xpose.msra.mxu0 0.0
    %1144 = vmatprep.subr.mxu0 0.0
    %1145 = vmatpush2.xpose.msra.mxu0 0.0
    %1146 = vmatprep.subr.mxu0 0.0
    %1147 = vmatpush2.xpose.msra.mxu0 0.0
    %1148 = vmatprep.subr.mxu0 0.0
    %1149 = vmatpush2.xpose.msra.mxu0 0.0
    %1150 = vmatprep.subr.mxu0 0.0
    %1151 = vmatpush2.xpose.msra.mxu0 0.0
    %1152 = vmatprep.subr.mxu0 0.0
    %1153 = vmatpush2.xpose.msra.mxu0 0.0
    %1154 = vmatprep.subr.mxu0 0.0
    %1155 = vmatpush2.xpose.msra.mxu0 0.0
    %1156 = vmatprep.subr.mxu0 0.0
    %1157 = vmatpush2.xpose.msra.mxu0 0.0
    %1158 = vmatprep.subr.mxu0 0.0
    %1159 = vmatpush2.xpose.msra.mxu0 0.0
    %1160 = vmatprep.mubr.f32.mxu0 0.0
    %1161 = vmatmul.mubr.f32.gmra.mxu0 %v1092
    %v1162 = vpop.f32.mrf.mxu0
    %v1163 = vadd.f32 0.0, %v1162
    %v1164 = vpop.f32.mrf.mxu0
    %1165 = vdwg.mxu0
    %v1166 = vmul.f32 %v1163, 0.35355338
    %v1167 = vlaneseq
    %v1168 = vshrl.u32 %v1167, 7
    %v1169 = vsub.s32 1, %v1168
    %v1170 = vrot.slane %v307, %v1169
    %v1171 = vadd.f32 %v1166, %v1170
    %v1172 = vsel %vm403, %v1171, -inf
    %1173 = vmax.xlane.f32.xlu0 %v1172
    %v1174 = vpop.xlane.xlu0 %1173
    %v1175 = vsub.f32 %v1171, %v1174
    %v1176 = vmul.f32 %v1175, 1.442695
    %v1177 = vpow.pop %v1176
    %v1178 = vsel %vm403, %v1177, 0.0
    %1179 = vadd.xlane.f32.xlu0 %v1178
    %v1180 = vpop.xlane.xlu0 %1179
    %v1181 = vrcp.pop %v1180
    %v1182 = vmul.f32 %v1177, %v1181
    %1183 = vrot.lane.b32.xlu0 %v397, 64
    %v1184 = vpop.permute.xlu0 %1183
    %v1187 = vsel %vm403, %v1182, 0
    %1189 = vmatprep.subr.mxu0 0.0
    %1190 = vmatpush1.msra.mxu0 0.0
    %1191 = vmatprep.subr.mxu0 0.0
    %1192 = vmatpush1.msra.mxu0 0.0
    %1193 = vmatprep.subr.mxu0 0.0
    %1194 = vmatpush1.msra.mxu0 0.0
    %1195 = vmatprep.subr.mxu0 0.0
    %1196 = vmatpush1.msra.mxu0 0.0
    %1197 = vmatprep.subr.mxu0 0.0
    %1198 = vmatpush1.msra.mxu0 0.0
    %1199 = vmatprep.subr.mxu0 0.0
    %1200 = vmatpush1.msra.mxu0 0.0
    %1201 = vmatprep.subr.mxu0 0.0
    %1202 = vmatpush1.msra.mxu0 0.0
    %1203 = vmatprep.subr.mxu0 0.0
    %1204 = vmatpush1.msra.mxu0 0.0
    %1205 = vmatprep.subr.mxu0 0.0
    %1206 = vmatpush1.msra.mxu0 0.0
    %1207 = vmatprep.subr.mxu0 0.0
    %1208 = vmatpush1.msra.mxu0 0.0
    %1209 = vmatprep.subr.mxu0 0.0
    %1210 = vmatpush1.msra.mxu0 0.0
    %1211 = vmatprep.subr.mxu0 0.0
    %1212 = vmatpush1.msra.mxu0 0.0
    %1213 = vmatprep.subr.mxu0 0.0
    %1214 = vmatpush1.msra.mxu0 0.0
    %1215 = vmatprep.subr.mxu0 0.0
    %1216 = vmatpush1.msra.mxu0 0.0
    %1217 = vmatprep.subr.mxu0 0.0
    %1218 = vmatpush1.msra.mxu0 0.0
    %1219 = vmatprep.subr.mxu0 0.0
    %1220 = vmatpush1.msra.mxu0 %v1184
    %1221 = vmatprep.subr.mxu0 0.0
    %1222 = vmatpush2.msra.mxu0 0.0
    %1223 = vmatprep.subr.mxu0 0.0
    %1224 = vmatpush2.msra.mxu0 0.0
    %1225 = vmatprep.subr.mxu0 0.0
    %1226 = vmatpush2.msra.mxu0 0.0
    %1227 = vmatprep.subr.mxu0 0.0
    %1228 = vmatpush2.msra.mxu0 0.0
    %1229 = vmatprep.subr.mxu0 0.0
    %1230 = vmatpush2.msra.mxu0 0.0
    %1231 = vmatprep.subr.mxu0 0.0
    %1232 = vmatpush2.msra.mxu0 0.0
    %1233 = vmatprep.subr.mxu0 0.0
    %1234 = vmatpush2.msra.mxu0 0.0
    %1235 = vmatprep.subr.mxu0 0.0
    %1236 = vmatpush2.msra.mxu0 0.0
    %1237 = vmatprep.subr.mxu0 0.0
    %1238 = vmatpush2.msra.mxu0 0.0
    %1239 = vmatprep.subr.mxu0 0.0
    %1240 = vmatpush2.msra.mxu0 0.0
    %1241 = vmatprep.subr.mxu0 0.0
    %1242 = vmatpush2.msra.mxu0 0.0
    %1243 = vmatprep.subr.mxu0 0.0
    %1244 = vmatpush2.msra.mxu0 0.0
    %1245 = vmatprep.subr.mxu0 0.0
    %1246 = vmatpush2.msra.mxu0 0.0
    %1247 = vmatprep.subr.mxu0 0.0
    %1248 = vmatpush2.msra.mxu0 0.0
    %1249 = vmatprep.subr.mxu0 0.0
    %1250 = vmatpush2.msra.mxu0 0.0
    %1251 = vmatprep.subr.mxu0 0.0
    %1252 = vmatpush2.msra.mxu0 0.0
    %1253 = vmatprep.mubr.f32.mxu0 0.0
    %1254 = vmatmul.mubr.f32.gmra.mxu0 %v1187
    %v1255 = vpop.f32.mrf.mxu0
    %v1256 = vadd.f32 0.0, %v1255
    %v1257 = vpop.f32.mrf.mxu0
    %1258 = vdwg.mxu0
    %1259 = vrot.lane.b32.xlu0 %v397, 120
    %v1260 = vpop.permute.xlu0 %1259
    %1261 = vrot.lane.b32.xlu0 %v397, 88
    %v1262 = vpop.permute.xlu0 %1261
    %v1263 = vsel %vm403, %v1260, 0
    %v1265 = vsel %vm403, %v1262, 0
    %1267 = vmatprep.subr.mxu0 0.0
    %1268 = vmatpush1.xpose.msra.mxu0 0.0
    %1269 = vmatprep.subr.mxu0 0.0
    %1270 = vmatpush1.xpose.msra.mxu0 0.0
    %1271 = vmatprep.subr.mxu0 0.0
    %1272 = vmatpush1.xpose.msra.mxu0 0.0
    %1273 = vmatprep.subr.mxu0 0.0
    %1274 = vmatpush1.xpose.msra.mxu0 0.0
    %1275 = vmatprep.subr.mxu0 0.0
    %1276 = vmatpush1.xpose.msra.mxu0 0.0
    %1277 = vmatprep.subr.mxu0 0.0
    %1278 = vmatpush1.xpose.msra.mxu0 0.0
    %1279 = vmatprep.subr.mxu0 0.0
    %1280 = vmatpush1.xpose.msra.mxu0 0.0
    %1281 = vmatprep.subr.mxu0 0.0
    %1282 = vmatpush1.xpose.msra.mxu0 0.0
    %1283 = vmatprep.subr.mxu0 0.0
    %1284 = vmatpush1.xpose.msra.mxu0 0.0
    %1285 = vmatprep.subr.mxu0 0.0
    %1286 = vmatpush1.xpose.msra.mxu0 0.0
    %1287 = vmatprep.subr.mxu0 0.0
    %1288 = vmatpush1.xpose.msra.mxu0 0.0
    %1289 = vmatprep.subr.mxu0 0.0
    %1290 = vmatpush1.xpose.msra.mxu0 0.0
    %1291 = vmatprep.subr.mxu0 0.0
    %1292 = vmatpush1.xpose.msra.mxu0 0.0
    %1293 = vmatprep.subr.mxu0 0.0
    %1294 = vmatpush1.xpose.msra.mxu0 0.0
    %1295 = vmatprep.subr.mxu0 0.0
    %1296 = vmatpush1.xpose.msra.mxu0 0.0
    %1297 = vmatprep.subr.mxu0 0.0
    %1298 = vmatpush1.xpose.msra.mxu0 %v1265
    %1299 = vmatprep.subr.mxu0 0.0
    %1300 = vmatpush2.xpose.msra.mxu0 0.0
    %1301 = vmatprep.subr.mxu0 0.0
    %1302 = vmatpush2.xpose.msra.mxu0 0.0
    %1303 = vmatprep.subr.mxu0 0.0
    %1304 = vmatpush2.xpose.msra.mxu0 0.0
    %1305 = vmatprep.subr.mxu0 0.0
    %1306 = vmatpush2.xpose.msra.mxu0 0.0
    %1307 = vmatprep.subr.mxu0 0.0
    %1308 = vmatpush2.xpose.msra.mxu0 0.0
    %1309 = vmatprep.subr.mxu0 0.0
    %1310 = vmatpush2.xpose.msra.mxu0 0.0
    %1311 = vmatprep.subr.mxu0 0.0
    %1312 = vmatpush2.xpose.msra.mxu0 0.0
    %1313 = vmatprep.subr.mxu0 0.0
    %1314 = vmatpush2.xpose.msra.mxu0 0.0
    %1315 = vmatprep.subr.mxu0 0.0
    %1316 = vmatpush2.xpose.msra.mxu0 0.0
    %1317 = vmatprep.subr.mxu0 0.0
    %1318 = vmatpush2.xpose.msra.mxu0 0.0
    %1319 = vmatprep.subr.mxu0 0.0
    %1320 = vmatpush2.xpose.msra.mxu0 0.0
    %1321 = vmatprep.subr.mxu0 0.0
    %1322 = vmatpush2.xpose.msra.mxu0 0.0
    %1323 = vmatprep.subr.mxu0 0.0
    %1324 = vmatpush2.xpose.msra.mxu0 0.0
    %1325 = vmatprep.subr.mxu0 0.0
    %1326 = vmatpush2.xpose.msra.mxu0 0.0
    %1327 = vmatprep.subr.mxu0 0.0
    %1328 = vmatpush2.xpose.msra.mxu0 0.0
    %1329 = vmatprep.subr.mxu0 0.0
    %1330 = vmatpush2.xpose.msra.mxu0 0.0
    %1331 = vmatprep.mubr.f32.mxu0 0.0
    %1332 = vmatmul.mubr.f32.gmra.mxu0 %v1263
    %v1333 = vpop.f32.mrf.mxu0
    %v1334 = vadd.f32 0.0, %v1333
    %v1335 = vpop.f32.mrf.mxu0
    %1336 = vdwg.mxu0
    %v1337 = vmul.f32 %v1334, 0.35355338
    %v1338 = vadd.f32 %v1337, %v1170
    %v1339 = vsel %vm403, %v1338, -inf
    %1340 = vmax.xlane.f32.xlu0 %v1339
    %v1341 = vpop.xlane.xlu0 %1340
    %v1342 = vsub.f32 %v1338, %v1341
    %v1343 = vmul.f32 %v1342, 1.442695
    %v1344 = vpow.pop %v1343
    %v1345 = vsel %vm403, %v1344, 0.0
    %1346 = vadd.xlane.f32.xlu0 %v1345
    %v1347 = vpop.xlane.xlu0 %1346
    %v1348 = vrcp.pop %v1347
    %v1349 = vmul.f32 %v1344, %v1348
    %1350 = vrot.lane.b32.xlu0 %v397, 56
    %v1351 = vpop.permute.xlu0 %1350
    %v1354 = vsel %vm403, %v1349, 0
    %1356 = vmatprep.subr.mxu0 0.0
    %1357 = vmatpush1.msra.mxu0 0.0
    %1358 = vmatprep.subr.mxu0 0.0
    %1359 = vmatpush1.msra.mxu0 0.0
    %1360 = vmatprep.subr.mxu0 0.0
    %1361 = vmatpush1.msra.mxu0 0.0
    %1362 = vmatprep.subr.mxu0 0.0
    %1363 = vmatpush1.msra.mxu0 0.0
    %1364 = vmatprep.subr.mxu0 0.0
    %1365 = vmatpush1.msra.mxu0 0.0
    %1366 = vmatprep.subr.mxu0 0.0
    %1367 = vmatpush1.msra.mxu0 0.0
    %1368 = vmatprep.subr.mxu0 0.0
    %1369 = vmatpush1.msra.mxu0 0.0
    %1370 = vmatprep.subr.mxu0 0.0
    %1371 = vmatpush1.msra.mxu0 0.0
    %1372 = vmatprep.subr.mxu0 0.0
    %1373 = vmatpush1.msra.mxu0 0.0
    %1374 = vmatprep.subr.mxu0 0.0
    %1375 = vmatpush1.msra.mxu0 0.0
    %1376 = vmatprep.subr.mxu0 0.0
    %1377 = vmatpush1.msra.mxu0 0.0
    %1378 = vmatprep.subr.mxu0 0.0
    %1379 = vmatpush1.msra.mxu0 0.0
    %1380 = vmatprep.subr.mxu0 0.0
    %1381 = vmatpush1.msra.mxu0 0.0
    %1382 = vmatprep.subr.mxu0 0.0
    %1383 = vmatpush1.msra.mxu0 0.0
    %1384 = vmatprep.subr.mxu0 0.0
    %1385 = vmatpush1.msra.mxu0 0.0
    %1386 = vmatprep.subr.mxu0 0.0
    %1387 = vmatpush1.msra.mxu0 %v1351
    %1388 = vmatprep.subr.mxu0 0.0
    %1389 = vmatpush2.msra.mxu0 0.0
    %1390 = vmatprep.subr.mxu0 0.0
    %1391 = vmatpush2.msra.mxu0 0.0
    %1392 = vmatprep.subr.mxu0 0.0
    %1393 = vmatpush2.msra.mxu0 0.0
    %1394 = vmatprep.subr.mxu0 0.0
    %1395 = vmatpush2.msra.mxu0 0.0
    %1396 = vmatprep.subr.mxu0 0.0
    %1397 = vmatpush2.msra.mxu0 0.0
    %1398 = vmatprep.subr.mxu0 0.0
    %1399 = vmatpush2.msra.mxu0 0.0
    %1400 = vmatprep.subr.mxu0 0.0
    %1401 = vmatpush2.msra.mxu0 0.0
    %1402 = vmatprep.subr.mxu0 0.0
    %1403 = vmatpush2.msra.mxu0 0.0
    %1404 = vmatprep.subr.mxu0 0.0
    %1405 = vmatpush2.msra.mxu0 0.0
    %1406 = vmatprep.subr.mxu0 0.0
    %1407 = vmatpush2.msra.mxu0 0.0
    %1408 = vmatprep.subr.mxu0 0.0
    %1409 = vmatpush2.msra.mxu0 0.0
    %1410 = vmatprep.subr.mxu0 0.0
    %1411 = vmatpush2.msra.mxu0 0.0
    %1412 = vmatprep.subr.mxu0 0.0
    %1413 = vmatpush2.msra.mxu0 0.0
    %1414 = vmatprep.subr.mxu0 0.0
    %1415 = vmatpush2.msra.mxu0 0.0
    %1416 = vmatprep.subr.mxu0 0.0
    %1417 = vmatpush2.msra.mxu0 0.0
    %1418 = vmatprep.subr.mxu0 0.0
    %1419 = vmatpush2.msra.mxu0 0.0
    %1420 = vmatprep.mubr.f32.mxu0 0.0
    %1421 = vmatmul.mubr.f32.gmra.mxu0 %v1354
    %v1422 = vpop.f32.mrf.mxu0
    %v1423 = vadd.f32 0.0, %v1422
    %v1424 = vpop.f32.mrf.mxu0
    %1425 = vdwg.mxu0
    %1426 = vrot.lane.b32.xlu0 %v397, 112
    %v1427 = vpop.permute.xlu0 %1426
    %1428 = vrot.lane.b32.xlu0 %v397, 80
    %v1429 = vpop.permute.xlu0 %1428
    %v1430 = vsel %vm403, %v1427, 0
    %v1432 = vsel %vm403, %v1429, 0
    %1434 = vmatprep.subr.mxu0 0.0
    %1435 = vmatpush1.xpose.msra.mxu0 0.0
    %1436 = vmatprep.subr.mxu0 0.0
    %1437 = vmatpush1.xpose.msra.mxu0 0.0
    %1438 = vmatprep.subr.mxu0 0.0
    %1439 = vmatpush1.xpose.msra.mxu0 0.0
    %1440 = vmatprep.subr.mxu0 0.0
    %1441 = vmatpush1.xpose.msra.mxu0 0.0
    %1442 = vmatprep.subr.mxu0 0.0
    %1443 = vmatpush1.xpose.msra.mxu0 0.0
    %1444 = vmatprep.subr.mxu0 0.0
    %1445 = vmatpush1.xpose.msra.mxu0 0.0
    %1446 = vmatprep.subr.mxu0 0.0
    %1447 = vmatpush1.xpose.msra.mxu0 0.0
    %1448 = vmatprep.subr.mxu0 0.0
    %1449 = vmatpush1.xpose.msra.mxu0 0.0
    %1450 = vmatprep.subr.mxu0 0.0
    %1451 = vmatpush1.xpose.msra.mxu0 0.0
    %1452 = vmatprep.subr.mxu0 0.0
    %1453 = vmatpush1.xpose.msra.mxu0 0.0
    %1454 = vmatprep.subr.mxu0 0.0
    %1455 = vmatpush1.xpose.msra.mxu0 0.0
    %1456 = vmatprep.subr.mxu0 0.0
    %1457 = vmatpush1.xpose.msra.mxu0 0.0
    %1458 = vmatprep.subr.mxu0 0.0
    %1459 = vmatpush1.xpose.msra.mxu0 0.0
    %1460 = vmatprep.subr.mxu0 0.0
    %1461 = vmatpush1.xpose.msra.mxu0 0.0
    %1462 = vmatprep.subr.mxu0 0.0
    %1463 = vmatpush1.xpose.msra.mxu0 0.0
    %1464 = vmatprep.subr.mxu0 0.0
    %1465 = vmatpush1.xpose.msra.mxu0 %v1432
    %1466 = vmatprep.subr.mxu0 0.0
    %1467 = vmatpush2.xpose.msra.mxu0 0.0
    %1468 = vmatprep.subr.mxu0 0.0
    %1469 = vmatpush2.xpose.msra.mxu0 0.0
    %1470 = vmatprep.subr.mxu0 0.0
    %1471 = vmatpush2.xpose.msra.mxu0 0.0
    %1472 = vmatprep.subr.mxu0 0.0
    %1473 = vmatpush2.xpose.msra.mxu0 0.0
    %1474 = vmatprep.subr.mxu0 0.0
    %1475 = vmatpush2.xpose.msra.mxu0 0.0
    %1476 = vmatprep.subr.mxu0 0.0
    %1477 = vmatpush2.xpose.msra.mxu0 0.0
    %1478 = vmatprep.subr.mxu0 0.0
    %1479 = vmatpush2.xpose.msra.mxu0 0.0
    %1480 = vmatprep.subr.mxu0 0.0
    %1481 = vmatpush2.xpose.msra.mxu0 0.0
    %1482 = vmatprep.subr.mxu0 0.0
    %1483 = vmatpush2.xpose.msra.mxu0 0.0
    %1484 = vmatprep.subr.mxu0 0.0
    %1485 = vmatpush2.xpose.msra.mxu0 0.0
    %1486 = vmatprep.subr.mxu0 0.0
    %1487 = vmatpush2.xpose.msra.mxu0 0.0
    %1488 = vmatprep.subr.mxu0 0.0
    %1489 = vmatpush2.xpose.msra.mxu0 0.0
    %1490 = vmatprep.subr.mxu0 0.0
    %1491 = vmatpush2.xpose.msra.mxu0 0.0
    %1492 = vmatprep.subr.mxu0 0.0
    %1493 = vmatpush2.xpose.msra.mxu0 0.0
    %1494 = vmatprep.subr.mxu0 0.0
    %1495 = vmatpush2.xpose.msra.mxu0 0.0
    %1496 = vmatprep.subr.mxu0 0.0
    %1497 = vmatpush2.xpose.msra.mxu0 0.0
    %1498 = vmatprep.mubr.f32.mxu0 0.0
    %1499 = vmatmul.mubr.f32.gmra.mxu0 %v1430
    %v1500 = vpop.f32.mrf.mxu0
    %v1501 = vadd.f32 0.0, %v1500
    %v1502 = vpop.f32.mrf.mxu0
    %1503 = vdwg.mxu0
    %v1504 = vmul.f32 %v1501, 0.35355338
    %v1505 = vadd.f32 %v1504, %v1170
    %v1506 = vsel %vm403, %v1505, -inf
    %1507 = vmax.xlane.f32.xlu0 %v1506
    %v1508 = vpop.xlane.xlu0 %1507
    %v1509 = vsub.f32 %v1505, %v1508
    %v1510 = vmul.f32 %v1509, 1.442695
    %v1511 = vpow.pop %v1510
    %v1512 = vsel %vm403, %v1511, 0.0
    %1513 = vadd.xlane.f32.xlu0 %v1512
    %v1514 = vpop.xlane.xlu0 %1513
    %v1515 = vrcp.pop %v1514
    %v1516 = vmul.f32 %v1511, %v1515
    %1517 = vrot.lane.b32.xlu0 %v397, 48
    %v1518 = vpop.permute.xlu0 %1517
    %v1521 = vsel %vm403, %v1516, 0
    %1523 = vmatprep.subr.mxu0 0.0
    %1524 = vmatpush1.msra.mxu0 0.0
    %1525 = vmatprep.subr.mxu0 0.0
    %1526 = vmatpush1.msra.mxu0 0.0
    %1527 = vmatprep.subr.mxu0 0.0
    %1528 = vmatpush1.msra.mxu0 0.0
    %1529 = vmatprep.subr.mxu0 0.0
    %1530 = vmatpush1.msra.mxu0 0.0
    %1531 = vmatprep.subr.mxu0 0.0
    %1532 = vmatpush1.msra.mxu0 0.0
    %1533 = vmatprep.subr.mxu0 0.0
    %1534 = vmatpush1.msra.mxu0 0.0
    %1535 = vmatprep.subr.mxu0 0.0
    %1536 = vmatpush1.msra.mxu0 0.0
    %1537 = vmatprep.subr.mxu0 0.0
    %1538 = vmatpush1.msra.mxu0 0.0
    %1539 = vmatprep.subr.mxu0 0.0
    %1540 = vmatpush1.msra.mxu0 0.0
    %1541 = vmatprep.subr.mxu0 0.0
    %1542 = vmatpush1.msra.mxu0 0.0
    %1543 = vmatprep.subr.mxu0 0.0
    %1544 = vmatpush1.msra.mxu0 0.0
    %1545 = vmatprep.subr.mxu0 0.0
    %1546 = vmatpush1.msra.mxu0 0.0
    %1547 = vmatprep.subr.mxu0 0.0
    %1548 = vmatpush1.msra.mxu0 0.0
    %1549 = vmatprep.subr.mxu0 0.0
    %1550 = vmatpush1.msra.mxu0 0.0
    %1551 = vmatprep.subr.mxu0 0.0
    %1552 = vmatpush1.msra.mxu0 0.0
    %1553 = vmatprep.subr.mxu0 0.0
    %1554 = vmatpush1.msra.mxu0 %v1518
    %1555 = vmatprep.subr.mxu0 0.0
    %1556 = vmatpush2.msra.mxu0 0.0
    %1557 = vmatprep.subr.mxu0 0.0
    %1558 = vmatpush2.msra.mxu0 0.0
    %1559 = vmatprep.subr.mxu0 0.0
    %1560 = vmatpush2.msra.mxu0 0.0
    %1561 = vmatprep.subr.mxu0 0.0
    %1562 = vmatpush2.msra.mxu0 0.0
    %1563 = vmatprep.subr.mxu0 0.0
    %1564 = vmatpush2.msra.mxu0 0.0
    %1565 = vmatprep.subr.mxu0 0.0
    %1566 = vmatpush2.msra.mxu0 0.0
    %1567 = vmatprep.subr.mxu0 0.0
    %1568 = vmatpush2.msra.mxu0 0.0
    %1569 = vmatprep.subr.mxu0 0.0
    %1570 = vmatpush2.msra.mxu0 0.0
    %1571 = vmatprep.subr.mxu0 0.0
    %1572 = vmatpush2.msra.mxu0 0.0
    %1573 = vmatprep.subr.mxu0 0.0
    %1574 = vmatpush2.msra.mxu0 0.0
    %1575 = vmatprep.subr.mxu0 0.0
    %1576 = vmatpush2.msra.mxu0 0.0
    %1577 = vmatprep.subr.mxu0 0.0
    %1578 = vmatpush2.msra.mxu0 0.0
    %1579 = vmatprep.subr.mxu0 0.0
    %1580 = vmatpush2.msra.mxu0 0.0
    %1581 = vmatprep.subr.mxu0 0.0
    %1582 = vmatpush2.msra.mxu0 0.0
    %1583 = vmatprep.subr.mxu0 0.0
    %1584 = vmatpush2.msra.mxu0 0.0
    %1585 = vmatprep.subr.mxu0 0.0
    %1586 = vmatpush2.msra.mxu0 0.0
    %1587 = vmatprep.mubr.f32.mxu0 0.0
    %1588 = vmatmul.mubr.f32.gmra.mxu0 %v1521
    %v1589 = vpop.f32.mrf.mxu0
    %v1590 = vadd.f32 0.0, %v1589
    %v1591 = vpop.f32.mrf.mxu0
    %1592 = vdwg.mxu0
    %1593 = vrot.lane.b32.xlu0 %v397, 104
    %v1594 = vpop.permute.xlu0 %1593
    %1595 = vrot.lane.b32.xlu0 %v397, 72
    %v1596 = vpop.permute.xlu0 %1595
    %v1597 = vsel %vm403, %v1594, 0
    %v1599 = vsel %vm403, %v1596, 0
    %1601 = vmatprep.subr.mxu0 0.0
    %1602 = vmatpush1.xpose.msra.mxu0 0.0
    %1603 = vmatprep.subr.mxu0 0.0
    %1604 = vmatpush1.xpose.msra.mxu0 0.0
    %1605 = vmatprep.subr.mxu0 0.0
    %1606 = vmatpush1.xpose.msra.mxu0 0.0
    %1607 = vmatprep.subr.mxu0 0.0
    %1608 = vmatpush1.xpose.msra.mxu0 0.0
    %1609 = vmatprep.subr.mxu0 0.0
    %1610 = vmatpush1.xpose.msra.mxu0 0.0
    %1611 = vmatprep.subr.mxu0 0.0
    %1612 = vmatpush1.xpose.msra.mxu0 0.0
    %1613 = vmatprep.subr.mxu0 0.0
    %1614 = vmatpush1.xpose.msra.mxu0 0.0
    %1615 = vmatprep.subr.mxu0 0.0
    %1616 = vmatpush1.xpose.msra.mxu0 0.0
    %1617 = vmatprep.subr.mxu0 0.0
    %1618 = vmatpush1.xpose.msra.mxu0 0.0
    %1619 = vmatprep.subr.mxu0 0.0
    %1620 = vmatpush1.xpose.msra.mxu0 0.0
    %1621 = vmatprep.subr.mxu0 0.0
    %1622 = vmatpush1.xpose.msra.mxu0 0.0
    %1623 = vmatprep.subr.mxu0 0.0
    %1624 = vmatpush1.xpose.msra.mxu0 0.0
    %1625 = vmatprep.subr.mxu0 0.0
    %1626 = vmatpush1.xpose.msra.mxu0 0.0
    %1627 = vmatprep.subr.mxu0 0.0
    %1628 = vmatpush1.xpose.msra.mxu0 0.0
    %1629 = vmatprep.subr.mxu0 0.0
    %1630 = vmatpush1.xpose.msra.mxu0 0.0
    %1631 = vmatprep.subr.mxu0 0.0
    %1632 = vmatpush1.xpose.msra.mxu0 %v1599
    %1633 = vmatprep.subr.mxu0 0.0
    %1634 = vmatpush2.xpose.msra.mxu0 0.0
    %1635 = vmatprep.subr.mxu0 0.0
    %1636 = vmatpush2.xpose.msra.mxu0 0.0
    %1637 = vmatprep.subr.mxu0 0.0
    %1638 = vmatpush2.xpose.msra.mxu0 0.0
    %1639 = vmatprep.subr.mxu0 0.0
    %1640 = vmatpush2.xpose.msra.mxu0 0.0
    %1641 = vmatprep.subr.mxu0 0.0
    %1642 = vmatpush2.xpose.msra.mxu0 0.0
    %1643 = vmatprep.subr.mxu0 0.0
    %1644 = vmatpush2.xpose.msra.mxu0 0.0
    %1645 = vmatprep.subr.mxu0 0.0
    %1646 = vmatpush2.xpose.msra.mxu0 0.0
    %1647 = vmatprep.subr.mxu0 0.0
    %1648 = vmatpush2.xpose.msra.mxu0 0.0
    %1649 = vmatprep.subr.mxu0 0.0
    %1650 = vmatpush2.xpose.msra.mxu0 0.0
    %1651 = vmatprep.subr.mxu0 0.0
    %1652 = vmatpush2.xpose.msra.mxu0 0.0
    %1653 = vmatprep.subr.mxu0 0.0
    %1654 = vmatpush2.xpose.msra.mxu0 0.0
    %1655 = vmatprep.subr.mxu0 0.0
    %1656 = vmatpush2.xpose.msra.mxu0 0.0
    %1657 = vmatprep.subr.mxu0 0.0
    %1658 = vmatpush2.xpose.msra.mxu0 0.0
    %1659 = vmatprep.subr.mxu0 0.0
    %1660 = vmatpush2.xpose.msra.mxu0 0.0
    %1661 = vmatprep.subr.mxu0 0.0
    %1662 = vmatpush2.xpose.msra.mxu0 0.0
    %1663 = vmatprep.subr.mxu0 0.0
    %1664 = vmatpush2.xpose.msra.mxu0 0.0
    %1665 = vmatprep.mubr.f32.mxu0 0.0
    %1666 = vmatmul.mubr.f32.gmra.mxu0 %v1597
    %v1667 = vpop.f32.mrf.mxu0
    %v1668 = vadd.f32 0.0, %v1667
    %v1669 = vpop.f32.mrf.mxu0
    %1670 = vdwg.mxu0
    %v1671 = vmul.f32 %v1668, 0.35355338
    %v1672 = vadd.f32 %v1671, %v1170
    %v1673 = vsel %vm403, %v1672, -inf
    %1674 = vmax.xlane.f32.xlu0 %v1673
    %v1675 = vpop.xlane.xlu0 %1674
    %v1676 = vsub.f32 %v1672, %v1675
    %v1677 = vmul.f32 %v1676, 1.442695
    %v1678 = vpow.pop %v1677
    %v1679 = vsel %vm403, %v1678, 0.0
    %1680 = vadd.xlane.f32.xlu0 %v1679
    %v1681 = vpop.xlane.xlu0 %1680
    %v1682 = vrcp.pop %v1681
    %v1683 = vmul.f32 %v1678, %v1682
    %1684 = vrot.lane.b32.xlu0 %v397, 40
    %v1685 = vpop.permute.xlu0 %1684
    %v1688 = vsel %vm403, %v1683, 0
    %1690 = vmatprep.subr.mxu0 0.0
    %1691 = vmatpush1.msra.mxu0 0.0
    %1692 = vmatprep.subr.mxu0 0.0
    %1693 = vmatpush1.msra.mxu0 0.0
    %1694 = vmatprep.subr.mxu0 0.0
    %1695 = vmatpush1.msra.mxu0 0.0
    %1696 = vmatprep.subr.mxu0 0.0
    %1697 = vmatpush1.msra.mxu0 0.0
    %1698 = vmatprep.subr.mxu0 0.0
    %1699 = vmatpush1.msra.mxu0 0.0
    %1700 = vmatprep.subr.mxu0 0.0
    %1701 = vmatpush1.msra.mxu0 0.0
    %1702 = vmatprep.subr.mxu0 0.0
    %1703 = vmatpush1.msra.mxu0 0.0
    %1704 = vmatprep.subr.mxu0 0.0
    %1705 = vmatpush1.msra.mxu0 0.0
    %1706 = vmatprep.subr.mxu0 0.0
    %1707 = vmatpush1.msra.mxu0 0.0
    %1708 = vmatprep.subr.mxu0 0.0
    %1709 = vmatpush1.msra.mxu0 0.0
    %1710 = vmatprep.subr.mxu0 0.0
    %1711 = vmatpush1.msra.mxu0 0.0
    %1712 = vmatprep.subr.mxu0 0.0
    %1713 = vmatpush1.msra.mxu0 0.0
    %1714 = vmatprep.subr.mxu0 0.0
    %1715 = vmatpush1.msra.mxu0 0.0
    %1716 = vmatprep.subr.mxu0 0.0
    %1717 = vmatpush1.msra.mxu0 0.0
    %1718 = vmatprep.subr.mxu0 0.0
    %1719 = vmatpush1.msra.mxu0 0.0
    %1720 = vmatprep.subr.mxu0 0.0
    %1721 = vmatpush1.msra.mxu0 %v1685
    %1722 = vmatprep.subr.mxu0 0.0
    %1723 = vmatpush2.msra.mxu0 0.0
    %1724 = vmatprep.subr.mxu0 0.0
    %1725 = vmatpush2.msra.mxu0 0.0
    %1726 = vmatprep.subr.mxu0 0.0
    %1727 = vmatpush2.msra.mxu0 0.0
    %1728 = vmatprep.subr.mxu0 0.0
    %1729 = vmatpush2.msra.mxu0 0.0
    %1730 = vmatprep.subr.mxu0 0.0
    %1731 = vmatpush2.msra.mxu0 0.0
    %1732 = vmatprep.subr.mxu0 0.0
    %1733 = vmatpush2.msra.mxu0 0.0
    %1734 = vmatprep.subr.mxu0 0.0
    %1735 = vmatpush2.msra.mxu0 0.0
    %1736 = vmatprep.subr.mxu0 0.0
    %1737 = vmatpush2.msra.mxu0 0.0
    %1738 = vmatprep.subr.mxu0 0.0
    %1739 = vmatpush2.msra.mxu0 0.0
    %1740 = vmatprep.subr.mxu0 0.0
    %1741 = vmatpush2.msra.mxu0 0.0
    %1742 = vmatprep.subr.mxu0 0.0
    %1743 = vmatpush2.msra.mxu0 0.0
    %1744 = vmatprep.subr.mxu0 0.0
    %1745 = vmatpush2.msra.mxu0 0.0
    %1746 = vmatprep.subr.mxu0 0.0
    %1747 = vmatpush2.msra.mxu0 0.0
    %1748 = vmatprep.subr.mxu0 0.0
    %1749 = vmatpush2.msra.mxu0 0.0
    %1750 = vmatprep.subr.mxu0 0.0
    %1751 = vmatpush2.msra.mxu0 0.0
    %1752 = vmatprep.subr.mxu0 0.0
    %1753 = vmatpush2.msra.mxu0 0.0
    %1754 = vmatprep.mubr.f32.mxu0 0.0
    %1755 = vmatmul.mubr.f32.gmra.mxu0 %v1688
    %v1756 = vpop.f32.mrf.mxu0
    %v1757 = vadd.f32 0.0, %v1756
    %v1758 = vpop.f32.mrf.mxu0
    %1759 = vdwg.mxu0
    %1761 = vrot.lane.b32.xlu0 %v1423, 8
    %v1762 = vpop.permute.xlu0 %1761
    %1765 = vrot.lane.b32.xlu0 %v1590, 16
    %v1766 = vpop.permute.xlu0 %1765
    %1769 = vrot.lane.b32.xlu0 %v1757, 24
    %v1770 = vpop.permute.xlu0 %1769
    %v1772 = vsel %vm403, %v1256, %v1762
    %v1773 = vsel %vm1085, %v1772, %v1766
    %v1774 = vsel %vm1087, %v1773, %v1770
    %v1775 = vld [vmem:[%s6] sm:$0xff]
    %v1776 = vld [vmem:[%s6 + $0x8] sm:$0xff]
    %v1777 = vld [vmem:[%s6 + $0x10] sm:$0xff]
    %v1778 = vld [vmem:[%s6 + $0x18] sm:$0xff]
    %v1779 = vld [vmem:[#allocation11] sm:$0x1]
    %v1781 = vlaneseq
    %v1782 = vshrl.u32 %v1781, 7
    %v1783 = vsub.s32 0, %v1782
    %v1784 = vrot.slane %v1779, %v1783
    %v1787 = vsel %vm263, %v1088, 0
    %v1790 = vsel %vm263, %v1774, 0
    %1792 = vmatprep.subr.mxu0 0.0
    %1793 = vmatpush1.msra.mxu0 0.0
    %1794 = vmatprep.subr.mxu0 0.0
    %1795 = vmatpush1.msra.mxu0 0.0
    %1796 = vmatprep.subr.mxu0 0.0
    %1797 = vmatpush1.msra.mxu0 0.0
    %1798 = vmatprep.subr.mxu0 0.0
    %1799 = vmatpush1.msra.mxu0 0.0
    %1800 = vmatprep.subr.mxu0 0.0
    %1801 = vmatpush1.msra.mxu0 0.0
    %1802 = vmatprep.subr.mxu0 0.0
    %1803 = vmatpush1.msra.mxu0 0.0
    %1804 = vmatprep.subr.mxu0 0.0
    %1805 = vmatpush1.msra.mxu0 0.0
    %1806 = vmatprep.subr.mxu0 0.0
    %1807 = vmatpush1.msra.mxu0 0.0
    %1808 = vmatprep.subr.mxu0 0.0
    %1809 = vmatpush1.msra.mxu0 0.0
    %1810 = vmatprep.subr.mxu0 0.0
    %1811 = vmatpush1.msra.mxu0 0.0
    %1812 = vmatprep.subr.mxu0 0.0
    %1813 = vmatpush1.msra.mxu0 0.0
    %1814 = vmatprep.subr.mxu0 0.0
    %1815 = vmatpush1.msra.mxu0 0.0
    %1816 = vmatprep.subr.mxu0 0.0
    %1817 = vmatpush1.msra.mxu0 %v1778
    %1818 = vmatprep.subr.mxu0 0.0
    %1819 = vmatpush1.msra.mxu0 %v1777
    %1820 = vmatprep.subr.mxu0 0.0
    %1821 = vmatpush1.msra.mxu0 %v1776
    %1822 = vmatprep.subr.mxu0 0.0
    %1823 = vmatpush1.msra.mxu0 %v1775
    %1824 = vmatprep.subr.mxu0 0.0
    %1825 = vmatpush2.msra.mxu0 0.0
    %1826 = vmatprep.subr.mxu0 0.0
    %1827 = vmatpush2.msra.mxu0 0.0
    %1828 = vmatprep.subr.mxu0 0.0
    %1829 = vmatpush2.msra.mxu0 0.0
    %1830 = vmatprep.subr.mxu0 0.0
    %1831 = vmatpush2.msra.mxu0 0.0
    %1832 = vmatprep.subr.mxu0 0.0
    %1833 = vmatpush2.msra.mxu0 0.0
    %1834 = vmatprep.subr.mxu0 0.0
    %1835 = vmatpush2.msra.mxu0 0.0
    %1836 = vmatprep.subr.mxu0 0.0
    %1837 = vmatpush2.msra.mxu0 0.0
    %1838 = vmatprep.subr.mxu0 0.0
    %1839 = vmatpush2.msra.mxu0 0.0
    %1840 = vmatprep.subr.mxu0 0.0
    %1841 = vmatpush2.msra.mxu0 0.0
    %1842 = vmatprep.subr.mxu0 0.0
    %1843 = vmatpush2.msra.mxu0 0.0
    %1844 = vmatprep.subr.mxu0 0.0
    %1845 = vmatpush2.msra.mxu0 0.0
    %1846 = vmatprep.subr.mxu0 0.0
    %1847 = vmatpush2.msra.mxu0 0.0
    %1848 = vmatprep.subr.mxu0 0.0
    %1849 = vmatpush2.msra.mxu0 0.0
    %1850 = vmatprep.subr.mxu0 0.0
    %1851 = vmatpush2.msra.mxu0 0.0
    %1852 = vmatprep.subr.mxu0 0.0
    %1853 = vmatpush2.msra.mxu0 0.0
    %1854 = vmatprep.subr.mxu0 0.0
    %1855 = vmatpush2.msra.mxu0 0.0
    %1856 = vmatprep.mubr.f32.mxu0 0.0
    %1857 = vmatmul.mubr.f32.gmra.mxu0 %v1787
    %v1858 = vpop.f32.mrf.mxu0
    %v1859 = vadd.f32 %v1784, %v1858
    %v1860 = vpop.f32.mrf.mxu0
    %1861 = vmatprep.mubr.f32.mxu0 0.0
    %1862 = vmatmul.mubr.f32.gmra.mxu0 %v1790
    %v1863 = vpop.f32.mrf.mxu0
    %v1864 = vadd.f32 %v1784, %v1863
    %v1865 = vpop.f32.mrf.mxu0
    %1866 = vdwg.mxu0
    %v1867 = vadd.f32 %v1859, %v305
    %v1868 = vadd.f32 %v1864, %v306
    %v1869 = vld [vmem:[#allocation13] sm:$0x1]
    %v1870 = vld [vmem:[#allocation14] sm:$0x1]
    %v1871 = vsel %vm263, %v1867, 0.0
    %1872 = vadd.xlane.f32.xlu0 %v1871
    %v1873 = vpop.xlane.xlu0 %1872
    %v1874 = vsel %vm263, %v1868, 0.0
    %1875 = vadd.xlane.f32.xlu0 %v1874
    %v1876 = vpop.xlane.xlu0 %1875
    %v1877 = vmul.f32 %v1873, %v270
    %v1878 = vmul.f32 %v1876, %v270
    %v1879 = vsub.f32 %v1867, %v1877
    %v1880 = vsub.f32 %v1868, %v1878
    %v1881 = vmul.f32 %v1879, %v1879
    %v1882 = vmul.f32 %v1880, %v1880
    %v1883 = vsel %vm263, %v1881, 0.0
    %1884 = vadd.xlane.f32.xlu0 %v1883
    %v1885 = vpop.xlane.xlu0 %1884
    %v1886 = vsel %vm263, %v1882, 0.0
    %1887 = vadd.xlane.f32.xlu0 %v1886
    %v1888 = vpop.xlane.xlu0 %1887
    %v1889 = vmul.f32 %v1885, %v270
    %v1890 = vmul.f32 %v1888, %v270
    %v1891 = vadd.f32 %v1889, 1e-12
    %v1892 = vadd.f32 %v1890, 1e-12
    %v1893 = vrsqrt.pop %v1891
    %v1894 = vrsqrt.pop %v1892
    %v1895 = vmul.f32 %v1879, %v1893
    %v1896 = vmul.f32 %v1880, %v1894
    %v1898 = vlaneseq
    %v1899 = vshrl.u32 %v1898, 7
    %v1900 = vsub.s32 0, %v1899
    %v1901 = vrot.slane %v1869, %v1900
    %v1903 = vmul.f32 %v1895, %v1901
    %v1904 = vmul.f32 %v1896, %v1901
    %v1906 = vlaneseq
    %v1907 = vshrl.u32 %v1906, 7
    %v1908 = vsub.s32 0, %v1907
    %v1909 = vrot.slane %v1870, %v1908
    %v1911 = vadd.f32 %v1903, %v1909
    %v1912 = vadd.f32 %v1904, %v1909
    %v1913 = vld [vmem:[%s10] sm:$0xff]
    %v1914 = vld [vmem:[%s10 + $0x8] sm:$0xff]
    %v1915 = vld [vmem:[%s10 + $0x10] sm:$0xff]
    %v1916 = vld [vmem:[%s10 + $0x18] sm:$0xff]
    %v1917 = vld [vmem:[#allocation16] sm:$0x1]
    %v1919 = vlaneseq
    %v1920 = vshrl.u32 %v1919, 7
    %v1921 = vsub.s32 0, %v1920
    %v1922 = vrot.slane %v1917, %v1921
    %v1925 = vsel %vm263, %v1911, 0
    %v1928 = vsel %vm263, %v1912, 0
    %1930 = vmatprep.subr.mxu0 0.0
    %1931 = vmatpush1.msra.mxu0 0.0
    %1932 = vmatprep.subr.mxu0 0.0
    %1933 = vmatpush1.msra.mxu0 0.0
    %1934 = vmatprep.subr.mxu0 0.0
    %1935 = vmatpush1.msra.mxu0 0.0
    %1936 = vmatprep.subr.mxu0 0.0
    %1937 = vmatpush1.msra.mxu0 0.0
    %1938 = vmatprep.subr.mxu0 0.0
    %1939 = vmatpush1.msra.mxu0 0.0
    %1940 = vmatprep.subr.mxu0 0.0
    %1941 = vmatpush1.msra.mxu0 0.0
    %1942 = vmatprep.subr.mxu0 0.0
    %1943 = vmatpush1.msra.mxu0 0.0
    %1944 = vmatprep.subr.mxu0 0.0
    %1945 = vmatpush1.msra.mxu0 0.0
    %1946 = vmatprep.subr.mxu0 0.0
    %1947 = vmatpush1.msra.mxu0 0.0
    %1948 = vmatprep.subr.mxu0 0.0
    %1949 = vmatpush1.msra.mxu0 0.0
    %1950 = vmatprep.subr.mxu0 0.0
    %1951 = vmatpush1.msra.mxu0 0.0
    %1952 = vmatprep.subr.mxu0 0.0
    %1953 = vmatpush1.msra.mxu0 0.0
    %1954 = vmatprep.subr.mxu0 0.0
    %1955 = vmatpush1.msra.mxu0 %v1916
    %1956 = vmatprep.subr.mxu0 0.0
    %1957 = vmatpush1.msra.mxu0 %v1915
    %1958 = vmatprep.subr.mxu0 0.0
    %1959 = vmatpush1.msra.mxu0 %v1914
    %1960 = vmatprep.subr.mxu0 0.0
    %1961 = vmatpush1.msra.mxu0 %v1913
    %1962 = vmatprep.subr.mxu0 0.0
    %1963 = vmatpush2.msra.mxu0 0.0
    %1964 = vmatprep.subr.mxu0 0.0
    %1965 = vmatpush2.msra.mxu0 0.0
    %1966 = vmatprep.subr.mxu0 0.0
    %1967 = vmatpush2.msra.mxu0 0.0
    %1968 = vmatprep.subr.mxu0 0.0
    %1969 = vmatpush2.msra.mxu0 0.0
    %1970 = vmatprep.subr.mxu0 0.0
    %1971 = vmatpush2.msra.mxu0 0.0
    %1972 = vmatprep.subr.mxu0 0.0
    %1973 = vmatpush2.msra.mxu0 0.0
    %1974 = vmatprep.subr.mxu0 0.0
    %1975 = vmatpush2.msra.mxu0 0.0
    %1976 = vmatprep.subr.mxu0 0.0
    %1977 = vmatpush2.msra.mxu0 0.0
    %1978 = vmatprep.subr.mxu0 0.0
    %1979 = vmatpush2.msra.mxu0 0.0
    %1980 = vmatprep.subr.mxu0 0.0
    %1981 = vmatpush2.msra.mxu0 0.0
    %1982 = vmatprep.subr.mxu0 0.0
    %1983 = vmatpush2.msra.mxu0 0.0
    %1984 = vmatprep.subr.mxu0 0.0
    %1985 = vmatpush2.msra.mxu0 0.0
    %1986 = vmatprep.subr.mxu0 0.0
    %1987 = vmatpush2.msra.mxu0 0.0
    %1988 = vmatprep.subr.mxu0 0.0
    %1989 = vmatpush2.msra.mxu0 0.0
    %1990 = vmatprep.subr.mxu0 0.0
    %1991 = vmatpush2.msra.mxu0 0.0
    %1992 = vmatprep.subr.mxu0 0.0
    %1993 = vmatpush2.msra.mxu0 0.0
    %1994 = vmatprep.mubr.f32.mxu0 0.0
    %1995 = vmatmul.mubr.f32.gmra.mxu0 %v1925
    %v1996 = vpop.f32.mrf.mxu0
    %v1997 = vadd.f32 %v1922, %v1996
    %v1998 = vpop.f32.mrf.mxu0
    %1999 = vmatprep.mubr.f32.mxu0 0.0
    %2000 = vmatmul.mubr.f32.gmra.mxu0 %v1928
    %v2001 = vpop.f32.mrf.mxu0
    %v2002 = vadd.f32 %v1922, %v2001
    %v2003 = vpop.f32.mrf.mxu0
    %2004 = vdwg.mxu0
    %v2005 = vmul.f32 %v1997, 0.5
    %v2006 = vmul.f32 %v2002, 0.5
    %v2007 = vmul.f32 %v1997, 0.044715
    %v2008 = vmul.f32 %v2002, 0.044715
    %v2009 = vmul.f32 %v2007, %v1997
    %v2010 = vmul.f32 %v2008, %v2002
    %v2011 = vmul.f32 %v2009, %v1997
    %v2012 = vmul.f32 %v2010, %v2002
    %v2013 = vadd.f32 %v1997, %v2011
    %v2014 = vadd.f32 %v2002, %v2012
    %v2015 = vmul.f32 %v2013, 0.7978846
    %v2016 = vmul.f32 %v2014, 0.7978846
    %v2017 = vtanh.pop %v2015
    %v2018 = vtanh.pop %v2016
    %v2019 = vadd.f32 %v2017, 1.0
    %v2020 = vadd.f32 %v2018, 1.0
    %v2021 = vmul.f32 %v2005, %v2019
    %v2022 = vmul.f32 %v2006, %v2020
    %v2023 = vld [vmem:[%s12] sm:$0xff]
    %v2024 = vld [vmem:[%s12 + $0x8] sm:$0xff]
    %v2025 = vld [vmem:[%s12 + $0x10] sm:$0xff]
    %v2026 = vld [vmem:[%s12 + $0x18] sm:$0xff]
    %v2027 = vld [vmem:[%s12 + $0x20] sm:$0xff]
    %v2028 = vld [vmem:[%s12 + $0x28] sm:$0xff]
    %v2029 = vld [vmem:[%s12 + $0x30] sm:$0xff]
    %v2030 = vld [vmem:[%s12 + $0x38] sm:$0xff]
    %v2031 = vld [vmem:[#allocation17] sm:$0x1]
    %v2033 = vlaneseq
    %v2034 = vshrl.u32 %v2033, 7
    %v2035 = vsub.s32 0, %v2034
    %v2036 = vrot.slane %v2031, %v2035
    %vm2038 = vcmask 523264
    %v2040 = vsel %vm2038, %v2021, 0
    %v2043 = vsel %vm2038, %v2022, 0
    %2045 = vmatprep.subr.mxu0 0.0
    %2046 = vmatpush1.msra.mxu0 0.0
    %2047 = vmatprep.subr.mxu0 0.0
    %2048 = vmatpush1.msra.mxu0 0.0
    %2049 = vmatprep.subr.mxu0 0.0
    %2050 = vmatpush1.msra.mxu0 0.0
    %2051 = vmatprep.subr.mxu0 0.0
    %2052 = vmatpush1.msra.mxu0 0.0
    %2053 = vmatprep.subr.mxu0 0.0
    %2054 = vmatpush1.msra.mxu0 0.0
    %2055 = vmatprep.subr.mxu0 0.0
    %2056 = vmatpush1.msra.mxu0 0.0
    %2057 = vmatprep.subr.mxu0 0.0
    %2058 = vmatpush1.msra.mxu0 0.0
    %2059 = vmatprep.subr.mxu0 0.0
    %2060 = vmatpush1.msra.mxu0 0.0
    %2061 = vmatprep.subr.mxu0 0.0
    %2062 = vmatpush1.msra.mxu0 %v2030
    %2063 = vmatprep.subr.mxu0 0.0
    %2064 = vmatpush1.msra.mxu0 %v2029
    %2065 = vmatprep.subr.mxu0 0.0
    %2066 = vmatpush1.msra.mxu0 %v2028
    %2067 = vmatprep.subr.mxu0 0.0
    %2068 = vmatpush1.msra.mxu0 %v2027
    %2069 = vmatprep.subr.mxu0 0.0
    %2070 = vmatpush1.msra.mxu0 %v2026
    %2071 = vmatprep.subr.mxu0 0.0
    %2072 = vmatpush1.msra.mxu0 %v2025
    %2073 = vmatprep.subr.mxu0 0.0
    %2074 = vmatpush1.msra.mxu0 %v2024
    %2075 = vmatprep.subr.mxu0 0.0
    %2076 = vmatpush1.msra.mxu0 %v2023
    %2077 = vmatprep.subr.mxu0 0.0
    %2078 = vmatpush2.msra.mxu0 0.0
    %2079 = vmatprep.subr.mxu0 0.0
    %2080 = vmatpush2.msra.mxu0 0.0
    %2081 = vmatprep.subr.mxu0 0.0
    %2082 = vmatpush2.msra.mxu0 0.0
    %2083 = vmatprep.subr.mxu0 0.0
    %2084 = vmatpush2.msra.mxu0 0.0
    %2085 = vmatprep.subr.mxu0 0.0
    %2086 = vmatpush2.msra.mxu0 0.0
    %2087 = vmatprep.subr.mxu0 0.0
    %2088 = vmatpush2.msra.mxu0 0.0
    %2089 = vmatprep.subr.mxu0 0.0
    %2090 = vmatpush2.msra.mxu0 0.0
    %2091 = vmatprep.subr.mxu0 0.0
    %2092 = vmatpush2.msra.mxu0 0.0
    %2093 = vmatprep.subr.mxu0 0.0
    %2094 = vmatpush2.msra.mxu0 0.0
    %2095 = vmatprep.subr.mxu0 0.0
    %2096 = vmatpush2.msra.mxu0 0.0
    %2097 = vmatprep.subr.mxu0 0.0
    %2098 = vmatpush2.msra.mxu0 0.0
    %2099 = vmatprep.subr.mxu0 0.0
    %2100 = vmatpush2.msra.mxu0 0.0
    %2101 = vmatprep.subr.mxu0 0.0
    %2102 = vmatpush2.msra.mxu0 0.0
    %2103 = vmatprep.subr.mxu0 0.0
    %2104 = vmatpush2.msra.mxu0 0.0
    %2105 = vmatprep.subr.mxu0 0.0
    %2106 = vmatpush2.msra.mxu0 0.0
    %2107 = vmatprep.subr.mxu0 0.0
    %2108 = vmatpush2.msra.mxu0 0.0
    %2109 = vmatprep.mubr.f32.mxu0 0.0
    %2110 = vmatmul.mubr.f32.gmra.mxu0 %v2040
    %v2111 = vpop.f32.mrf.mxu0
    %v2112 = vadd.f32 %v2036, %v2111
    %v2113 = vpop.f32.mrf.mxu0
    %2114 = vmatprep.mubr.f32.mxu0 0.0
    %2115 = vmatmul.mubr.f32.gmra.mxu0 %v2043
    %v2116 = vpop.f32.mrf.mxu0
    %v2117 = vadd.f32 %v2036, %v2116
    %v2118 = vpop.f32.mrf.mxu0
    %2119 = vdwg.mxu0
    %v2120 = vadd.f32 %v2112, %v1911
    %v2121 = vadd.f32 %v2117, %v1912
    %v2122 = vld [vmem:[#allocation19] sm:$0x1]
    %v2123 = vld [vmem:[#allocation20] sm:$0x1]
    %v2124 = vsel %vm263, %v2120, 0.0
    %2125 = vadd.xlane.f32.xlu0 %v2124
    %v2126 = vpop.xlane.xlu0 %2125
    %v2127 = vsel %vm263, %v2121, 0.0
    %2128 = vadd.xlane.f32.xlu0 %v2127
    %v2129 = vpop.xlane.xlu0 %2128
    %v2130 = vmul.f32 %v2126, %v270
    %v2131 = vmul.f32 %v2129, %v270
    %v2132 = vsub.f32 %v2120, %v2130
    %v2133 = vsub.f32 %v2121, %v2131
    %v2134 = vmul.f32 %v2132, %v2132
    %v2135 = vmul.f32 %v2133, %v2133
    %v2136 = vsel %vm263, %v2134, 0.0
    %2137 = vadd.xlane.f32.xlu0 %v2136
    %v2138 = vpop.xlane.xlu0 %2137
    %v2139 = vsel %vm263, %v2135, 0.0
    %2140 = vadd.xlane.f32.xlu0 %v2139
    %v2141 = vpop.xlane.xlu0 %2140
    %v2142 = vmul.f32 %v2138, %v270
    %v2143 = vmul.f32 %v2141, %v270
    %v2144 = vadd.f32 %v2142, 1e-12
    %v2145 = vadd.f32 %v2143, 1e-12
    %v2146 = vrsqrt.pop %v2144
    %v2147 = vrsqrt.pop %v2145
    %v2148 = vmul.f32 %v2132, %v2146
    %v2149 = vmul.f32 %v2133, %v2147
    %v2151 = vlaneseq
    %v2152 = vshrl.u32 %v2151, 7
    %v2153 = vsub.s32 0, %v2152
    %v2154 = vrot.slane %v2122, %v2153
    %v2156 = vmul.f32 %v2148, %v2154
    %v2157 = vmul.f32 %v2149, %v2154
    %v2159 = vlaneseq
    %v2160 = vshrl.u32 %v2159, 7
    %v2161 = vsub.s32 0, %v2160
    %v2162 = vrot.slane %v2123, %v2161
    %v2164 = vadd.f32 %v2156, %v2162
    %v2165 = vadd.f32 %v2157, %v2162
    %s2166 = scalar_lea.vmem %s4, 32
    %v2167 = vld [vmem:[%s2166] sm:$0xff]
    %v2168 = vld [vmem:[%s2166 + $0x8] sm:$0xff]
    %v2169 = vld [vmem:[%s2166 + $0x10] sm:$0xff]
    %v2170 = vld [vmem:[%s2166 + $0x18] sm:$0xff]
    %s2171 = scalar_lea.vmem [#allocation10], 1
    %v2172 = vld [vmem:[%s2171] sm:$0x1]
    %v2174 = vlaneseq
    %v2175 = vshrl.u32 %v2174, 7
    %v2176 = vsub.s32 0, %v2175
    %v2177 = vrot.slane %v2172, %v2176
    %v2180 = vsel %vm263, %v2164, 0
    %v2183 = vsel %vm263, %v2165, 0
    %2185 = vmatprep.subr.mxu0 0.0
    %2186 = vmatpush1.msra.mxu0 0.0
    %2187 = vmatprep.subr.mxu0 0.0
    %2188 = vmatpush1.msra.mxu0 0.0
    %2189 = vmatprep.subr.mxu0 0.0
    %2190 = vmatpush1.msra.mxu0 0.0
    %2191 = vmatprep.subr.mxu0 0.0
    %2192 = vmatpush1.msra.mxu0 0.0
    %2193 = vmatprep.subr.mxu0 0.0
    %2194 = vmatpush1.msra.mxu0 0.0
    %2195 = vmatprep.subr.mxu0 0.0
    %2196 = vmatpush1.msra.mxu0 0.0
    %2197 = vmatprep.subr.mxu0 0.0
    %2198 = vmatpush1.msra.mxu0 0.0
    %2199 = vmatprep.subr.mxu0 0.0
    %2200 = vmatpush1.msra.mxu0 0.0
    %2201 = vmatprep.subr.mxu0 0.0
    %2202 = vmatpush1.msra.mxu0 0.0
    %2203 = vmatprep.subr.mxu0 0.0
    %2204 = vmatpush1.msra.mxu0 0.0
    %2205 = vmatprep.subr.mxu0 0.0
    %2206 = vmatpush1.msra.mxu0 0.0
    %2207 = vmatprep.subr.mxu0 0.0
    %2208 = vmatpush1.msra.mxu0 0.0
    %2209 = vmatprep.subr.mxu0 0.0
    %2210 = vmatpush1.msra.mxu0 %v2170
    %2211 = vmatprep.subr.mxu0 0.0
    %2212 = vmatpush1.msra.mxu0 %v2169
    %2213 = vmatprep.subr.mxu0 0.0
    %2214 = vmatpush1.msra.mxu0 %v2168
    %2215 = vmatprep.subr.mxu0 0.0
    %2216 = vmatpush1.msra.mxu0 %v2167
    %2217 = vmatprep.subr.mxu0 0.0
    %2218 = vmatpush2.msra.mxu0 0.0
    %2219 = vmatprep.subr.mxu0 0.0
    %2220 = vmatpush2.msra.mxu0 0.0
    %2221 = vmatprep.subr.mxu0 0.0
    %2222 = vmatpush2.msra.mxu0 0.0
    %2223 = vmatprep.subr.mxu0 0.0
    %2224 = vmatpush2.msra.mxu0 0.0
    %2225 = vmatprep.subr.mxu0 0.0
    %2226 = vmatpush2.msra.mxu0 0.0
    %2227 = vmatprep.subr.mxu0 0.0
    %2228 = vmatpush2.msra.mxu0 0.0
    %2229 = vmatprep.subr.mxu0 0.0
    %2230 = vmatpush2.msra.mxu0 0.0
    %2231 = vmatprep.subr.mxu0 0.0
    %2232 = vmatpush2.msra.mxu0 0.0
    %2233 = vmatprep.subr.mxu0 0.0
    %2234 = vmatpush2.msra.mxu0 0.0
    %2235 = vmatprep.subr.mxu0 0.0
    %2236 = vmatpush2.msra.mxu0 0.0
    %2237 = vmatprep.subr.mxu0 0.0
    %2238 = vmatpush2.msra.mxu0 0.0
    %2239 = vmatprep.subr.mxu0 0.0
    %2240 = vmatpush2.msra.mxu0 0.0
    %2241 = vmatprep.subr.mxu0 0.0
    %2242 = vmatpush2.msra.mxu0 0.0
    %2243 = vmatprep.subr.mxu0 0.0
    %2244 = vmatpush2.msra.mxu0 0.0
    %2245 = vmatprep.subr.mxu0 0.0
    %2246 = vmatpush2.msra.mxu0 0.0
    %2247 = vmatprep.subr.mxu0 0.0
    %2248 = vmatpush2.msra.mxu0 0.0
    %2249 = vmatprep.mubr.f32.mxu0 0.0
    %2250 = vmatmul.mubr.f32.gmra.mxu0 %v2180
    %v2251 = vpop.f32.mrf.mxu0
    %v2252 = vadd.f32 %v2177, %v2251
    %v2253 = vpop.f32.mrf.mxu0
    %2254 = vmatprep.mubr.f32.mxu0 0.0
    %2255 = vmatmul.mubr.f32.gmra.mxu0 %v2183
    %v2256 = vpop.f32.mrf.mxu0
    %v2257 = vadd.f32 %v2177, %v2256
    %v2258 = vpop.f32.mrf.mxu0
    %2259 = vdwg.mxu0
    %2261 = vrot.lane.b32.xlu0 %v2252, 96
    %v2262 = vpop.permute.xlu0 %2261
    %v2263 = vsel %vm403, %v2252, 0
    %v2265 = vsel %vm403, %v2262, 0
    %2267 = vmatprep.subr.mxu0 0.0
    %2268 = vmatpush1.xpose.msra.mxu0 0.0
    %2269 = vmatprep.subr.mxu0 0.0
    %2270 = vmatpush1.xpose.msra.mxu0 0.0
    %2271 = vmatprep.subr.mxu0 0.0
    %2272 = vmatpush1.xpose.msra.mxu0 0.0
    %2273 = vmatprep.subr.mxu0 0.0
    %2274 = vmatpush1.xpose.msra.mxu0 0.0
    %2275 = vmatprep.subr.mxu0 0.0
    %2276 = vmatpush1.xpose.msra.mxu0 0.0
    %2277 = vmatprep.subr.mxu0 0.0
    %2278 = vmatpush1.xpose.msra.mxu0 0.0
    %2279 = vmatprep.subr.mxu0 0.0
    %2280 = vmatpush1.xpose.msra.mxu0 0.0
    %2281 = vmatprep.subr.mxu0 0.0
    %2282 = vmatpush1.xpose.msra.mxu0 0.0
    %2283 = vmatprep.subr.mxu0 0.0
    %2284 = vmatpush1.xpose.msra.mxu0 0.0
    %2285 = vmatprep.subr.mxu0 0.0
    %2286 = vmatpush1.xpose.msra.mxu0 0.0
    %2287 = vmatprep.subr.mxu0 0.0
    %2288 = vmatpush1.xpose.msra.mxu0 0.0
    %2289 = vmatprep.subr.mxu0 0.0
    %2290 = vmatpush1.xpose.msra.mxu0 0.0
    %2291 = vmatprep.subr.mxu0 0.0
    %2292 = vmatpush1.xpose.msra.mxu0 0.0
    %2293 = vmatprep.subr.mxu0 0.0
    %2294 = vmatpush1.xpose.msra.mxu0 0.0
    %2295 = vmatprep.subr.mxu0 0.0
    %2296 = vmatpush1.xpose.msra.mxu0 0.0
    %2297 = vmatprep.subr.mxu0 0.0
    %2298 = vmatpush1.xpose.msra.mxu0 %v2265
    %2299 = vmatprep.subr.mxu0 0.0
    %2300 = vmatpush2.xpose.msra.mxu0 0.0
    %2301 = vmatprep.subr.mxu0 0.0
    %2302 = vmatpush2.xpose.msra.mxu0 0.0
    %2303 = vmatprep.subr.mxu0 0.0
    %2304 = vmatpush2.xpose.msra.mxu0 0.0
    %2305 = vmatprep.subr.mxu0 0.0
    %2306 = vmatpush2.xpose.msra.mxu0 0.0
    %2307 = vmatprep.subr.mxu0 0.0
    %2308 = vmatpush2.xpose.msra.mxu0 0.0
    %2309 = vmatprep.subr.mxu0 0.0
    %2310 = vmatpush2.xpose.msra.mxu0 0.0
    %2311 = vmatprep.subr.mxu0 0.0
    %2312 = vmatpush2.xpose.msra.mxu0 0.0
    %2313 = vmatprep.subr.mxu0 0.0
    %2314 = vmatpush2.xpose.msra.mxu0 0.0
    %2315 = vmatprep.subr.mxu0 0.0
    %2316 = vmatpush2.xpose.msra.mxu0 0.0
    %2317 = vmatprep.subr.mxu0 0.0
    %2318 = vmatpush2.xpose.msra.mxu0 0.0
    %2319 = vmatprep.subr.mxu0 0.0
    %2320 = vmatpush2.xpose.msra.mxu0 0.0
    %2321 = vmatprep.subr.mxu0 0.0
    %2322 = vmatpush2.xpose.msra.mxu0 0.0
    %2323 = vmatprep.subr.mxu0 0.0
    %2324 = vmatpush2.xpose.msra.mxu0 0.0
    %2325 = vmatprep.subr.mxu0 0.0
    %2326 = vmatpush2.xpose.msra.mxu0 0.0
    %2327 = vmatprep.subr.mxu0 0.0
    %2328 = vmatpush2.xpose.msra.mxu0 0.0
    %2329 = vmatprep.subr.mxu0 0.0
    %2330 = vmatpush2.xpose.msra.mxu0 0.0
    %2331 = vmatprep.mubr.f32.mxu0 0.0
    %2332 = vmatmul.mubr.f32.gmra.mxu0 %v2263
    %v2333 = vpop.f32.mrf.mxu0
    %v2334 = vadd.f32 0.0, %v2333
    %v2335 = vpop.f32.mrf.mxu0
    %2336 = vdwg.mxu0
    %v2337 = vmul.f32 %v2334, 0.35355338
    %v2338 = vadd.f32 %v2337, %v482
    %v2339 = vsel %vm403, %v2338, -inf
    %2340 = vmax.xlane.f32.xlu0 %v2339
    %v2341 = vpop.xlane.xlu0 %2340
    %v2342 = vsub.f32 %v2338, %v2341
    %v2343 = vmul.f32 %v2342, 1.442695
    %v2344 = vpow.pop %v2343
    %v2345 = vsel %vm403, %v2344, 0.0
    %2346 = vadd.xlane.f32.xlu0 %v2345
    %v2347 = vpop.xlane.xlu0 %2346
    %v2348 = vrcp.pop %v2347
    %v2349 = vmul.f32 %v2344, %v2348
    %2350 = vrot.lane.b32.xlu0 %v2252, 64
    %v2351 = vpop.permute.xlu0 %2350
    %v2354 = vsel %vm403, %v2349, 0
    %2356 = vmatprep.subr.mxu0 0.0
    %2357 = vmatpush1.msra.mxu0 0.0
    %2358 = vmatprep.subr.mxu0 0.0
    %2359 = vmatpush1.msra.mxu0 0.0
    %2360 = vmatprep.subr.mxu0 0.0
    %2361 = vmatpush1.msra.mxu0 0.0
    %2362 = vmatprep.subr.mxu0 0.0
    %2363 = vmatpush1.msra.mxu0 0.0
    %2364 = vmatprep.subr.mxu0 0.0
    %2365 = vmatpush1.msra.mxu0 0.0
    %2366 = vmatprep.subr.mxu0 0.0
    %2367 = vmatpush1.msra.mxu0 0.0
    %2368 = vmatprep.subr.mxu0 0.0
    %2369 = vmatpush1.msra.mxu0 0.0
    %2370 = vmatprep.subr.mxu0 0.0
    %2371 = vmatpush1.msra.mxu0 0.0
    %2372 = vmatprep.subr.mxu0 0.0
    %2373 = vmatpush1.msra.mxu0 0.0
    %2374 = vmatprep.subr.mxu0 0.0
    %2375 = vmatpush1.msra.mxu0 0.0
    %2376 = vmatprep.subr.mxu0 0.0
    %2377 = vmatpush1.msra.mxu0 0.0
    %2378 = vmatprep.subr.mxu0 0.0
    %2379 = vmatpush1.msra.mxu0 0.0
    %2380 = vmatprep.subr.mxu0 0.0
    %2381 = vmatpush1.msra.mxu0 0.0
    %2382 = vmatprep.subr.mxu0 0.0
    %2383 = vmatpush1.msra.mxu0 0.0
    %2384 = vmatprep.subr.mxu0 0.0
    %2385 = vmatpush1.msra.mxu0 0.0
    %2386 = vmatprep.subr.mxu0 0.0
    %2387 = vmatpush1.msra.mxu0 %v2351
    %2388 = vmatprep.subr.mxu0 0.0
    %2389 = vmatpush2.msra.mxu0 0.0
    %2390 = vmatprep.subr.mxu0 0.0
    %2391 = vmatpush2.msra.mxu0 0.0
    %2392 = vmatprep.subr.mxu0 0.0
    %2393 = vmatpush2.msra.mxu0 0.0
    %2394 = vmatprep.subr.mxu0 0.0
    %2395 = vmatpush2.msra.mxu0 0.0
    %2396 = vmatprep.subr.mxu0 0.0
    %2397 = vmatpush2.msra.mxu0 0.0
    %2398 = vmatprep.subr.mxu0 0.0
    %2399 = vmatpush2.msra.mxu0 0.0
    %2400 = vmatprep.subr.mxu0 0.0
    %2401 = vmatpush2.msra.mxu0 0.0
    %2402 = vmatprep.subr.mxu0 0.0
    %2403 = vmatpush2.msra.mxu0 0.0
    %2404 = vmatprep.subr.mxu0 0.0
    %2405 = vmatpush2.msra.mxu0 0.0
    %2406 = vmatprep.subr.mxu0 0.0
    %2407 = vmatpush2.msra.mxu0 0.0
    %2408 = vmatprep.subr.mxu0 0.0
    %2409 = vmatpush2.msra.mxu0 0.0
    %2410 = vmatprep.subr.mxu0 0.0
    %2411 = vmatpush2.msra.mxu0 0.0
    %2412 = vmatprep.subr.mxu0 0.0
    %2413 = vmatpush2.msra.mxu0 0.0
    %2414 = vmatprep.subr.mxu0 0.0
    %2415 = vmatpush2.msra.mxu0 0.0
    %2416 = vmatprep.subr.mxu0 0.0
    %2417 = vmatpush2.msra.mxu0 0.0
    %2418 = vmatprep.subr.mxu0 0.0
    %2419 = vmatpush2.msra.mxu0 0.0
    %2420 = vmatprep.mubr.f32.mxu0 0.0
    %2421 = vmatmul.mubr.f32.gmra.mxu0 %v2354
    %v2422 = vpop.f32.mrf.mxu0
    %v2423 = vadd.f32 0.0, %v2422
    %v2424 = vpop.f32.mrf.mxu0
    %2425 = vdwg.mxu0
    %2426 = vrot.lane.b32.xlu0 %v2252, 120
    %v2427 = vpop.permute.xlu0 %2426
    %2428 = vrot.lane.b32.xlu0 %v2252, 88
    %v2429 = vpop.permute.xlu0 %2428
    %v2430 = vsel %vm403, %v2427, 0
    %v2432 = vsel %vm403, %v2429, 0
    %2434 = vmatprep.subr.mxu0 0.0
    %2435 = vmatpush1.xpose.msra.mxu0 0.0
    %2436 = vmatprep.subr.mxu0 0.0
    %2437 = vmatpush1.xpose.msra.mxu0 0.0
    %2438 = vmatprep.subr.mxu0 0.0
    %2439 = vmatpush1.xpose.msra.mxu0 0.0
    %2440 = vmatprep.subr.mxu0 0.0
    %2441 = vmatpush1.xpose.msra.mxu0 0.0
    %2442 = vmatprep.subr.mxu0 0.0
    %2443 = vmatpush1.xpose.msra.mxu0 0.0
    %2444 = vmatprep.subr.mxu0 0.0
    %2445 = vmatpush1.xpose.msra.mxu0 0.0
    %2446 = vmatprep.subr.mxu0 0.0
    %2447 = vmatpush1.xpose.msra.mxu0 0.0
    %2448 = vmatprep.subr.mxu0 0.0
    %2449 = vmatpush1.xpose.msra.mxu0 0.0
    %2450 = vmatprep.subr.mxu0 0.0
    %2451 = vmatpush1.xpose.msra.mxu0 0.0
    %2452 = vmatprep.subr.mxu0 0.0
    %2453 = vmatpush1.xpose.msra.mxu0 0.0
    %2454 = vmatprep.subr.mxu0 0.0
    %2455 = vmatpush1.xpose.msra.mxu0 0.0
    %2456 = vmatprep.subr.mxu0 0.0
    %2457 = vmatpush1.xpose.msra.mxu0 0.0
    %2458 = vmatprep.subr.mxu0 0.0
    %2459 = vmatpush1.xpose.msra.mxu0 0.0
    %2460 = vmatprep.subr.mxu0 0.0
    %2461 = vmatpush1.xpose.msra.mxu0 0.0
    %2462 = vmatprep.subr.mxu0 0.0
    %2463 = vmatpush1.xpose.msra.mxu0 0.0
    %2464 = vmatprep.subr.mxu0 0.0
    %2465 = vmatpush1.xpose.msra.mxu0 %v2432
    %2466 = vmatprep.subr.mxu0 0.0
    %2467 = vmatpush2.xpose.msra.mxu0 0.0
    %2468 = vmatprep.subr.mxu0 0.0
    %2469 = vmatpush2.xpose.msra.mxu0 0.0
    %2470 = vmatprep.subr.mxu0 0.0
    %2471 = vmatpush2.xpose.msra.mxu0 0.0
    %2472 = vmatprep.subr.mxu0 0.0
    %2473 = vmatpush2.xpose.msra.mxu0 0.0
    %2474 = vmatprep.subr.mxu0 0.0
    %2475 = vmatpush2.xpose.msra.mxu0 0.0
    %2476 = vmatprep.subr.mxu0 0.0
    %2477 = vmatpush2.xpose.msra.mxu0 0.0
    %2478 = vmatprep.subr.mxu0 0.0
    %2479 = vmatpush2.xpose.msra.mxu0 0.0
    %2480 = vmatprep.subr.mxu0 0.0
    %2481 = vmatpush2.xpose.msra.mxu0 0.0
    %2482 = vmatprep.subr.mxu0 0.0
    %2483 = vmatpush2.xpose.msra.mxu0 0.0
    %2484 = vmatprep.subr.mxu0 0.0
    %2485 = vmatpush2.xpose.msra.mxu0 0.0
    %2486 = vmatprep.subr.mxu0 0.0
    %2487 = vmatpush2.xpose.msra.mxu0 0.0
    %2488 = vmatprep.subr.mxu0 0.0
    %2489 = vmatpush2.xpose.msra.mxu0 0.0
    %2490 = vmatprep.subr.mxu0 0.0
    %2491 = vmatpush2.xpose.msra.mxu0 0.0
    %2492 = vmatprep.subr.mxu0 0.0
    %2493 = vmatpush2.xpose.msra.mxu0 0.0
    %2494 = vmatprep.subr.mxu0 0.0
    %2495 = vmatpush2.xpose.msra.mxu0 0.0
    %2496 = vmatprep.subr.mxu0 0.0
    %2497 = vmatpush2.xpose.msra.mxu0 0.0
    %2498 = vmatprep.mubr.f32.mxu0 0.0
    %2499 = vmatmul.mubr.f32.gmra.mxu0 %v2430
    %v2500 = vpop.f32.mrf.mxu0
    %v2501 = vadd.f32 0.0, %v2500
    %v2502 = vpop.f32.mrf.mxu0
    %2503 = vdwg.mxu0
    %v2504 = vmul.f32 %v2501, 0.35355338
    %v2505 = vadd.f32 %v2504, %v482
    %v2506 = vsel %vm403, %v2505, -inf
    %2507 = vmax.xlane.f32.xlu0 %v2506
    %v2508 = vpop.xlane.xlu0 %2507
    %v2509 = vsub.f32 %v2505, %v2508
    %v2510 = vmul.f32 %v2509, 1.442695
    %v2511 = vpow.pop %v2510
    %v2512 = vsel %vm403, %v2511, 0.0
    %2513 = vadd.xlane.f32.xlu0 %v2512
    %v2514 = vpop.xlane.xlu0 %2513
    %v2515 = vrcp.pop %v2514
    %v2516 = vmul.f32 %v2511, %v2515
    %2517 = vrot.lane.b32.xlu0 %v2252, 56
    %v2518 = vpop.permute.xlu0 %2517
    %v2521 = vsel %vm403, %v2516, 0
    %2523 = vmatprep.subr.mxu0 0.0
    %2524 = vmatpush1.msra.mxu0 0.0
    %2525 = vmatprep.subr.mxu0 0.0
    %2526 = vmatpush1.msra.mxu0 0.0
    %2527 = vmatprep.subr.mxu0 0.0
    %2528 = vmatpush1.msra.mxu0 0.0
    %2529 = vmatprep.subr.mxu0 0.0
    %2530 = vmatpush1.msra.mxu0 0.0
    %2531 = vmatprep.subr.mxu0 0.0
    %2532 = vmatpush1.msra.mxu0 0.0
    %2533 = vmatprep.subr.mxu0 0.0
    %2534 = vmatpush1.msra.mxu0 0.0
    %2535 = vmatprep.subr.mxu0 0.0
    %2536 = vmatpush1.msra.mxu0 0.0
    %2537 = vmatprep.subr.mxu0 0.0
    %2538 = vmatpush1.msra.mxu0 0.0
    %2539 = vmatprep.subr.mxu0 0.0
    %2540 = vmatpush1.msra.mxu0 0.0
    %2541 = vmatprep.subr.mxu0 0.0
    %2542 = vmatpush1.msra.mxu0 0.0
    %2543 = vmatprep.subr.mxu0 0.0
    %2544 = vmatpush1.msra.mxu0 0.0
    %2545 = vmatprep.subr.mxu0 0.0
    %2546 = vmatpush1.msra.mxu0 0.0
    %2547 = vmatprep.subr.mxu0 0.0
    %2548 = vmatpush1.msra.mxu0 0.0
    %2549 = vmatprep.subr.mxu0 0.0
    %2550 = vmatpush1.msra.mxu0 0.0
    %2551 = vmatprep.subr.mxu0 0.0
    %2552 = vmatpush1.msra.mxu0 0.0
    %2553 = vmatprep.subr.mxu0 0.0
    %2554 = vmatpush1.msra.mxu0 %v2518
    %2555 = vmatprep.subr.mxu0 0.0
    %2556 = vmatpush2.msra.mxu0 0.0
    %2557 = vmatprep.subr.mxu0 0.0
    %2558 = vmatpush2.msra.mxu0 0.0
    %2559 = vmatprep.subr.mxu0 0.0
    %2560 = vmatpush2.msra.mxu0 0.0
    %2561 = vmatprep.subr.mxu0 0.0
    %2562 = vmatpush2.msra.mxu0 0.0
    %2563 = vmatprep.subr.mxu0 0.0
    %2564 = vmatpush2.msra.mxu0 0.0
    %2565 = vmatprep.subr.mxu0 0.0
    %2566 = vmatpush2.msra.mxu0 0.0
    %2567 = vmatprep.subr.mxu0 0.0
    %2568 = vmatpush2.msra.mxu0 0.0
    %2569 = vmatprep.subr.mxu0 0.0
    %2570 = vmatpush2.msra.mxu0 0.0
    %2571 = vmatprep.subr.mxu0 0.0
    %2572 = vmatpush2.msra.mxu0 0.0
    %2573 = vmatprep.subr.mxu0 0.0
    %2574 = vmatpush2.msra.mxu0 0.0
    %2575 = vmatprep.subr.mxu0 0.0
    %2576 = vmatpush2.msra.mxu0 0.0
    %2577 = vmatprep.subr.mxu0 0.0
    %2578 = vmatpush2.msra.mxu0 0.0
    %2579 = vmatprep.subr.mxu0 0.0
    %2580 = vmatpush2.msra.mxu0 0.0
    %2581 = vmatprep.subr.mxu0 0.0
    %2582 = vmatpush2.msra.mxu0 0.0
    %2583 = vmatprep.subr.mxu0 0.0
    %2584 = vmatpush2.msra.mxu0 0.0
    %2585 = vmatprep.subr.mxu0 0.0
    %2586 = vmatpush2.msra.mxu0 0.0
    %2587 = vmatprep.mubr.f32.mxu0 0.0
    %2588 = vmatmul.mubr.f32.gmra.mxu0 %v2521
    %v2589 = vpop.f32.mrf.mxu0
    %v2590 = vadd.f32 0.0, %v2589
    %v2591 = vpop.f32.mrf.mxu0
    %2592 = vdwg.mxu0
    %2593 = vrot.lane.b32.xlu0 %v2252, 112
    %v2594 = vpop.permute.xlu0 %2593
    %2595 = vrot.lane.b32.xlu0 %v2252, 80
    %v2596 = vpop.permute.xlu0 %2595
    %v2597 = vsel %vm403, %v2594, 0
    %v2599 = vsel %vm403, %v2596, 0
    %2601 = vmatprep.subr.mxu0 0.0
    %2602 = vmatpush1.xpose.msra.mxu0 0.0
    %2603 = vmatprep.subr.mxu0 0.0
    %2604 = vmatpush1.xpose.msra.mxu0 0.0
    %2605 = vmatprep.subr.mxu0 0.0
    %2606 = vmatpush1.xpose.msra.mxu0 0.0
    %2607 = vmatprep.subr.mxu0 0.0
    %2608 = vmatpush1.xpose.msra.mxu0 0.0
    %2609 = vmatprep.subr.mxu0 0.0
    %2610 = vmatpush1.xpose.msra.mxu0 0.0
    %2611 = vmatprep.subr.mxu0 0.0
    %2612 = vmatpush1.xpose.msra.mxu0 0.0
    %2613 = vmatprep.subr.mxu0 0.0
    %2614 = vmatpush1.xpose.msra.mxu0 0.0
    %2615 = vmatprep.subr.mxu0 0.0
    %2616 = vmatpush1.xpose.msra.mxu0 0.0
    %2617 = vmatprep.subr.mxu0 0.0
    %2618 = vmatpush1.xpose.msra.mxu0 0.0
    %2619 = vmatprep.subr.mxu0 0.0
    %2620 = vmatpush1.xpose.msra.mxu0 0.0
    %2621 = vmatprep.subr.mxu0 0.0
    %2622 = vmatpush1.xpose.msra.mxu0 0.0
    %2623 = vmatprep.subr.mxu0 0.0
    %2624 = vmatpush1.xpose.msra.mxu0 0.0
    %2625 = vmatprep.subr.mxu0 0.0
    %2626 = vmatpush1.xpose.msra.mxu0 0.0
    %2627 = vmatprep.subr.mxu0 0.0
    %2628 = vmatpush1.xpose.msra.mxu0 0.0
    %2629 = vmatprep.subr.mxu0 0.0
    %2630 = vmatpush1.xpose.msra.mxu0 0.0
    %2631 = vmatprep.subr.mxu0 0.0
    %2632 = vmatpush1.xpose.msra.mxu0 %v2599
    %2633 = vmatprep.subr.mxu0 0.0
    %2634 = vmatpush2.xpose.msra.mxu0 0.0
    %2635 = vmatprep.subr.mxu0 0.0
    %2636 = vmatpush2.xpose.msra.mxu0 0.0
    %2637 = vmatprep.subr.mxu0 0.0
    %2638 = vmatpush2.xpose.msra.mxu0 0.0
    %2639 = vmatprep.subr.mxu0 0.0
    %2640 = vmatpush2.xpose.msra.mxu0 0.0
    %2641 = vmatprep.subr.mxu0 0.0
    %2642 = vmatpush2.xpose.msra.mxu0 0.0
    %2643 = vmatprep.subr.mxu0 0.0
    %2644 = vmatpush2.xpose.msra.mxu0 0.0
    %2645 = vmatprep.subr.mxu0 0.0
    %2646 = vmatpush2.xpose.msra.mxu0 0.0
    %2647 = vmatprep.subr.mxu0 0.0
    %2648 = vmatpush2.xpose.msra.mxu0 0.0
    %2649 = vmatprep.subr.mxu0 0.0
    %2650 = vmatpush2.xpose.msra.mxu0 0.0
    %2651 = vmatprep.subr.mxu0 0.0
    %2652 = vmatpush2.xpose.msra.mxu0 0.0
    %2653 = vmatprep.subr.mxu0 0.0
    %2654 = vmatpush2.xpose.msra.mxu0 0.0
    %2655 = vmatprep.subr.mxu0 0.0
    %2656 = vmatpush2.xpose.msra.mxu0 0.0
    %2657 = vmatprep.subr.mxu0 0.0
    %2658 = vmatpush2.xpose.msra.mxu0 0.0
    %2659 = vmatprep.subr.mxu0 0.0
    %2660 = vmatpush2.xpose.msra.mxu0 0.0
    %2661 = vmatprep.subr.mxu0 0.0
    %2662 = vmatpush2.xpose.msra.mxu0 0.0
    %2663 = vmatprep.subr.mxu0 0.0
    %2664 = vmatpush2.xpose.msra.mxu0 0.0
    %2665 = vmatprep.mubr.f32.mxu0 0.0
    %2666 = vmatmul.mubr.f32.gmra.mxu0 %v2597
    %v2667 = vpop.f32.mrf.mxu0
    %v2668 = vadd.f32 0.0, %v2667
    %v2669 = vpop.f32.mrf.mxu0
    %2670 = vdwg.mxu0
    %v2671 = vmul.f32 %v2668, 0.35355338
    %v2672 = vadd.f32 %v2671, %v482
    %v2673 = vsel %vm403, %v2672, -inf
    %2674 = vmax.xlane.f32.xlu0 %v2673
    %v2675 = vpop.xlane.xlu0 %2674
    %v2676 = vsub.f32 %v2672, %v2675
    %v2677 = vmul.f32 %v2676, 1.442695
    %v2678 = vpow.pop %v2677
    %v2679 = vsel %vm403, %v2678, 0.0
    %2680 = vadd.xlane.f32.xlu0 %v2679
    %v2681 = vpop.xlane.xlu0 %2680
    %v2682 = vrcp.pop %v2681
    %v2683 = vmul.f32 %v2678, %v2682
    %2684 = vrot.lane.b32.xlu0 %v2252, 48
    %v2685 = vpop.permute.xlu0 %2684
    %v2688 = vsel %vm403, %v2683, 0
    %2690 = vmatprep.subr.mxu0 0.0
    %2691 = vmatpush1.msra.mxu0 0.0
    %2692 = vmatprep.subr.mxu0 0.0
    %2693 = vmatpush1.msra.mxu0 0.0
    %2694 = vmatprep.subr.mxu0 0.0
    %2695 = vmatpush1.msra.mxu0 0.0
    %2696 = vmatprep.subr.mxu0 0.0
    %2697 = vmatpush1.msra.mxu0 0.0
    %2698 = vmatprep.subr.mxu0 0.0
    %2699 = vmatpush1.msra.mxu0 0.0
    %2700 = vmatprep.subr.mxu0 0.0
    %2701 = vmatpush1.msra.mxu0 0.0
    %2702 = vmatprep.subr.mxu0 0.0
    %2703 = vmatpush1.msra.mxu0 0.0
    %2704 = vmatprep.subr.mxu0 0.0
    %2705 = vmatpush1.msra.mxu0 0.0
    %2706 = vmatprep.subr.mxu0 0.0
    %2707 = vmatpush1.msra.mxu0 0.0
    %2708 = vmatprep.subr.mxu0 0.0
    %2709 = vmatpush1.msra.mxu0 0.0
    %2710 = vmatprep.subr.mxu0 0.0
    %2711 = vmatpush1.msra.mxu0 0.0
    %2712 = vmatprep.subr.mxu0 0.0
    %2713 = vmatpush1.msra.mxu0 0.0
    %2714 = vmatprep.subr.mxu0 0.0
    %2715 = vmatpush1.msra.mxu0 0.0
    %2716 = vmatprep.subr.mxu0 0.0
    %2717 = vmatpush1.msra.mxu0 0.0
    %2718 = vmatprep.subr.mxu0 0.0
    %2719 = vmatpush1.msra.mxu0 0.0
    %2720 = vmatprep.subr.mxu0 0.0
    %2721 = vmatpush1.msra.mxu0 %v2685
    %2722 = vmatprep.subr.mxu0 0.0
    %2723 = vmatpush2.msra.mxu0 0.0
    %2724 = vmatprep.subr.mxu0 0.0
    %2725 = vmatpush2.msra.mxu0 0.0
    %2726 = vmatprep.subr.mxu0 0.0
    %2727 = vmatpush2.msra.mxu0 0.0
    %2728 = vmatprep.subr.mxu0 0.0
    %2729 = vmatpush2.msra.mxu0 0.0
    %2730 = vmatprep.subr.mxu0 0.0
    %2731 = vmatpush2.msra.mxu0 0.0
    %2732 = vmatprep.subr.mxu0 0.0
    %2733 = vmatpush2.msra.mxu0 0.0
    %2734 = vmatprep.subr.mxu0 0.0
    %2735 = vmatpush2.msra.mxu0 0.0
    %2736 = vmatprep.subr.mxu0 0.0
    %2737 = vmatpush2.msra.mxu0 0.0
    %2738 = vmatprep.subr.mxu0 0.0
    %2739 = vmatpush2.msra.mxu0 0.0
    %2740 = vmatprep.subr.mxu0 0.0
    %2741 = vmatpush2.msra.mxu0 0.0
    %2742 = vmatprep.subr.mxu0 0.0
    %2743 = vmatpush2.msra.mxu0 0.0
    %2744 = vmatprep.subr.mxu0 0.0
    %2745 = vmatpush2.msra.mxu0 0.0
    %2746 = vmatprep.subr.mxu0 0.0
    %2747 = vmatpush2.msra.mxu0 0.0
    %2748 = vmatprep.subr.mxu0 0.0
    %2749 = vmatpush2.msra.mxu0 0.0
    %2750 = vmatprep.subr.mxu0 0.0
    %2751 = vmatpush2.msra.mxu0 0.0
    %2752 = vmatprep.subr.mxu0 0.0
    %2753 = vmatpush2.msra.mxu0 0.0
    %2754 = vmatprep.mubr.f32.mxu0 0.0
    %2755 = vmatmul.mubr.f32.gmra.mxu0 %v2688
    %v2756 = vpop.f32.mrf.mxu0
    %v2757 = vadd.f32 0.0, %v2756
    %v2758 = vpop.f32.mrf.mxu0
    %2759 = vdwg.mxu0
    %2760 = vrot.lane.b32.xlu0 %v2252, 104
    %v2761 = vpop.permute.xlu0 %2760
    %2762 = vrot.lane.b32.xlu0 %v2252, 72
    %v2763 = vpop.permute.xlu0 %2762
    %v2764 = vsel %vm403, %v2761, 0
    %v2766 = vsel %vm403, %v2763, 0
    %2768 = vmatprep.subr.mxu0 0.0
    %2769 = vmatpush1.xpose.msra.mxu0 0.0
    %2770 = vmatprep.subr.mxu0 0.0
    %2771 = vmatpush1.xpose.msra.mxu0 0.0
    %2772 = vmatprep.subr.mxu0 0.0
    %2773 = vmatpush1.xpose.msra.mxu0 0.0
    %2774 = vmatprep.subr.mxu0 0.0
    %2775 = vmatpush1.xpose.msra.mxu0 0.0
    %2776 = vmatprep.subr.mxu0 0.0
    %2777 = vmatpush1.xpose.msra.mxu0 0.0
    %2778 = vmatprep.subr.mxu0 0.0
    %2779 = vmatpush1.xpose.msra.mxu0 0.0
    %2780 = vmatprep.subr.mxu0 0.0
    %2781 = vmatpush1.xpose.msra.mxu0 0.0
    %2782 = vmatprep.subr.mxu0 0.0
    %2783 = vmatpush1.xpose.msra.mxu0 0.0
    %2784 = vmatprep.subr.mxu0 0.0
    %2785 = vmatpush1.xpose.msra.mxu0 0.0
    %2786 = vmatprep.subr.mxu0 0.0
    %2787 = vmatpush1.xpose.msra.mxu0 0.0
    %2788 = vmatprep.subr.mxu0 0.0
    %2789 = vmatpush1.xpose.msra.mxu0 0.0
    %2790 = vmatprep.subr.mxu0 0.0
    %2791 = vmatpush1.xpose.msra.mxu0 0.0
    %2792 = vmatprep.subr.mxu0 0.0
    %2793 = vmatpush1.xpose.msra.mxu0 0.0
    %2794 = vmatprep.subr.mxu0 0.0
    %2795 = vmatpush1.xpose.msra.mxu0 0.0
    %2796 = vmatprep.subr.mxu0 0.0
    %2797 = vmatpush1.xpose.msra.mxu0 0.0
    %2798 = vmatprep.subr.mxu0 0.0
    %2799 = vmatpush1.xpose.msra.mxu0 %v2766
    %2800 = vmatprep.subr.mxu0 0.0
    %2801 = vmatpush2.xpose.msra.mxu0 0.0
    %2802 = vmatprep.subr.mxu0 0.0
    %2803 = vmatpush2.xpose.msra.mxu0 0.0
    %2804 = vmatprep.subr.mxu0 0.0
    %2805 = vmatpush2.xpose.msra.mxu0 0.0
    %2806 = vmatprep.subr.mxu0 0.0
    %2807 = vmatpush2.xpose.msra.mxu0 0.0
    %2808 = vmatprep.subr.mxu0 0.0
    %2809 = vmatpush2.xpose.msra.mxu0 0.0
    %2810 = vmatprep.subr.mxu0 0.0
    %2811 = vmatpush2.xpose.msra.mxu0 0.0
    %2812 = vmatprep.subr.mxu0 0.0
    %2813 = vmatpush2.xpose.msra.mxu0 0.0
    %2814 = vmatprep.subr.mxu0 0.0
    %2815 = vmatpush2.xpose.msra.mxu0 0.0
    %2816 = vmatprep.subr.mxu0 0.0
    %2817 = vmatpush2.xpose.msra.mxu0 0.0
    %2818 = vmatprep.subr.mxu0 0.0
    %2819 = vmatpush2.xpose.msra.mxu0 0.0
    %2820 = vmatprep.subr.mxu0 0.0
    %2821 = vmatpush2.xpose.msra.mxu0 0.0
    %2822 = vmatprep.subr.mxu0 0.0
    %2823 = vmatpush2.xpose.msra.mxu0 0.0
    %2824 = vmatprep.subr.mxu0 0.0
    %2825 = vmatpush2.xpose.msra.mxu0 0.0
    %2826 = vmatprep.subr.mxu0 0.0
    %2827 = vmatpush2.xpose.msra.mxu0 0.0
    %2828 = vmatprep.subr.mxu0 0.0
    %2829 = vmatpush2.xpose.msra.mxu0 0.0
    %2830 = vmatprep.subr.mxu0 0.0
    %2831 = vmatpush2.xpose.msra.mxu0 0.0
    %2832 = vmatprep.mubr.f32.mxu0 0.0
    %2833 = vmatmul.mubr.f32.gmra.mxu0 %v2764
    %v2834 = vpop.f32.mrf.mxu0
    %v2835 = vadd.f32 0.0, %v2834
    %v2836 = vpop.f32.mrf.mxu0
    %2837 = vdwg.mxu0
    %v2838 = vmul.f32 %v2835, 0.35355338
    %v2839 = vadd.f32 %v2838, %v482
    %v2840 = vsel %vm403, %v2839, -inf
    %2841 = vmax.xlane.f32.xlu0 %v2840
    %v2842 = vpop.xlane.xlu0 %2841
    %v2843 = vsub.f32 %v2839, %v2842
    %v2844 = vmul.f32 %v2843, 1.442695
    %v2845 = vpow.pop %v2844
    %v2846 = vsel %vm403, %v2845, 0.0
    %2847 = vadd.xlane.f32.xlu0 %v2846
    %v2848 = vpop.xlane.xlu0 %2847
    %v2849 = vrcp.pop %v2848
    %v2850 = vmul.f32 %v2845, %v2849
    %2851 = vrot.lane.b32.xlu0 %v2252, 40
    %v2852 = vpop.permute.xlu0 %2851
    %v2855 = vsel %vm403, %v2850, 0
    %2857 = vmatprep.subr.mxu0 0.0
    %2858 = vmatpush1.msra.mxu0 0.0
    %2859 = vmatprep.subr.mxu0 0.0
    %2860 = vmatpush1.msra.mxu0 0.0
    %2861 = vmatprep.subr.mxu0 0.0
    %2862 = vmatpush1.msra.mxu0 0.0
    %2863 = vmatprep.subr.mxu0 0.0
    %2864 = vmatpush1.msra.mxu0 0.0
    %2865 = vmatprep.subr.mxu0 0.0
    %2866 = vmatpush1.msra.mxu0 0.0
    %2867 = vmatprep.subr.mxu0 0.0
    %2868 = vmatpush1.msra.mxu0 0.0
    %2869 = vmatprep.subr.mxu0 0.0
    %2870 = vmatpush1.msra.mxu0 0.0
    %2871 = vmatprep.subr.mxu0 0.0
    %2872 = vmatpush1.msra.mxu0 0.0
    %2873 = vmatprep.subr.mxu0 0.0
    %2874 = vmatpush1.msra.mxu0 0.0
    %2875 = vmatprep.subr.mxu0 0.0
    %2876 = vmatpush1.msra.mxu0 0.0
    %2877 = vmatprep.subr.mxu0 0.0
    %2878 = vmatpush1.msra.mxu0 0.0
    %2879 = vmatprep.subr.mxu0 0.0
    %2880 = vmatpush1.msra.mxu0 0.0
    %2881 = vmatprep.subr.mxu0 0.0
    %2882 = vmatpush1.msra.mxu0 0.0
    %2883 = vmatprep.subr.mxu0 0.0
    %2884 = vmatpush1.msra.mxu0 0.0
    %2885 = vmatprep.subr.mxu0 0.0
    %2886 = vmatpush1.msra.mxu0 0.0
    %2887 = vmatprep.subr.mxu0 0.0
    %2888 = vmatpush1.msra.mxu0 %v2852
    %2889 = vmatprep.subr.mxu0 0.0
    %2890 = vmatpush2.msra.mxu0 0.0
    %2891 = vmatprep.subr.mxu0 0.0
    %2892 = vmatpush2.msra.mxu0 0.0
    %2893 = vmatprep.subr.mxu0 0.0
    %2894 = vmatpush2.msra.mxu0 0.0
    %2895 = vmatprep.subr.mxu0 0.0
    %2896 = vmatpush2.msra.mxu0 0.0
    %2897 = vmatprep.subr.mxu0 0.0
    %2898 = vmatpush2.msra.mxu0 0.0
    %2899 = vmatprep.subr.mxu0 0.0
    %2900 = vmatpush2.msra.mxu0 0.0
    %2901 = vmatprep.subr.mxu0 0.0
    %2902 = vmatpush2.msra.mxu0 0.0
    %2903 = vmatprep.subr.mxu0 0.0
    %2904 = vmatpush2.msra.mxu0 0.0
    %2905 = vmatprep.subr.mxu0 0.0
    %2906 = vmatpush2.msra.mxu0 0.0
    %2907 = vmatprep.subr.mxu0 0.0
    %2908 = vmatpush2.msra.mxu0 0.0
    %2909 = vmatprep.subr.mxu0 0.0
    %2910 = vmatpush2.msra.mxu0 0.0
    %2911 = vmatprep.subr.mxu0 0.0
    %2912 = vmatpush2.msra.mxu0 0.0
    %2913 = vmatprep.subr.mxu0 0.0
    %2914 = vmatpush2.msra.mxu0 0.0
    %2915 = vmatprep.subr.mxu0 0.0
    %2916 = vmatpush2.msra.mxu0 0.0
    %2917 = vmatprep.subr.mxu0 0.0
    %2918 = vmatpush2.msra.mxu0 0.0
    %2919 = vmatprep.subr.mxu0 0.0
    %2920 = vmatpush2.msra.mxu0 0.0
    %2921 = vmatprep.mubr.f32.mxu0 0.0
    %2922 = vmatmul.mubr.f32.gmra.mxu0 %v2855
    %v2923 = vpop.f32.mrf.mxu0
    %v2924 = vadd.f32 0.0, %v2923
    %v2925 = vpop.f32.mrf.mxu0
    %2926 = vdwg.mxu0
    %2928 = vrot.lane.b32.xlu0 %v2590, 8
    %v2929 = vpop.permute.xlu0 %2928
    %2932 = vrot.lane.b32.xlu0 %v2757, 16
    %v2933 = vpop.permute.xlu0 %2932
    %2936 = vrot.lane.b32.xlu0 %v2924, 24
    %v2937 = vpop.permute.xlu0 %2936
    %v2939 = vsel %vm403, %v2423, %v2929
    %v2940 = vsel %vm1085, %v2939, %v2933
    %v2941 = vsel %vm1087, %v2940, %v2937
    %2943 = vrot.lane.b32.xlu0 %v2257, 96
    %v2944 = vpop.permute.xlu0 %2943
    %v2945 = vsel %vm403, %v2257, 0
    %v2947 = vsel %vm403, %v2944, 0
    %2949 = vmatprep.subr.mxu0 0.0
    %2950 = vmatpush1.xpose.msra.mxu0 0.0
    %2951 = vmatprep.subr.mxu0 0.0
    %2952 = vmatpush1.xpose.msra.mxu0 0.0
    %2953 = vmatprep.subr.mxu0 0.0
    %2954 = vmatpush1.xpose.msra.mxu0 0.0
    %2955 = vmatprep.subr.mxu0 0.0
    %2956 = vmatpush1.xpose.msra.mxu0 0.0
    %2957 = vmatprep.subr.mxu0 0.0
    %2958 = vmatpush1.xpose.msra.mxu0 0.0
    %2959 = vmatprep.subr.mxu0 0.0
    %2960 = vmatpush1.xpose.msra.mxu0 0.0
    %2961 = vmatprep.subr.mxu0 0.0
    %2962 = vmatpush1.xpose.msra.mxu0 0.0
    %2963 = vmatprep.subr.mxu0 0.0
    %2964 = vmatpush1.xpose.msra.mxu0 0.0
    %2965 = vmatprep.subr.mxu0 0.0
    %2966 = vmatpush1.xpose.msra.mxu0 0.0
    %2967 = vmatprep.subr.mxu0 0.0
    %2968 = vmatpush1.xpose.msra.mxu0 0.0
    %2969 = vmatprep.subr.mxu0 0.0
    %2970 = vmatpush1.xpose.msra.mxu0 0.0
    %2971 = vmatprep.subr.mxu0 0.0
    %2972 = vmatpush1.xpose.msra.mxu0 0.0
    %2973 = vmatprep.subr.mxu0 0.0
    %2974 = vmatpush1.xpose.msra.mxu0 0.0
    %2975 = vmatprep.subr.mxu0 0.0
    %2976 = vmatpush1.xpose.msra.mxu0 0.0
    %2977 = vmatprep.subr.mxu0 0.0
    %2978 = vmatpush1.xpose.msra.mxu0 0.0
    %2979 = vmatprep.subr.mxu0 0.0
    %2980 = vmatpush1.xpose.msra.mxu0 %v2947
    %2981 = vmatprep.subr.mxu0 0.0
    %2982 = vmatpush2.xpose.msra.mxu0 0.0
    %2983 = vmatprep.subr.mxu0 0.0
    %2984 = vmatpush2.xpose.msra.mxu0 0.0
    %2985 = vmatprep.subr.mxu0 0.0
    %2986 = vmatpush2.xpose.msra.mxu0 0.0
    %2987 = vmatprep.subr.mxu0 0.0
    %2988 = vmatpush2.xpose.msra.mxu0 0.0
    %2989 = vmatprep.subr.mxu0 0.0
    %2990 = vmatpush2.xpose.msra.mxu0 0.0
    %2991 = vmatprep.subr.mxu0 0.0
    %2992 = vmatpush2.xpose.msra.mxu0 0.0
    %2993 = vmatprep.subr.mxu0 0.0
    %2994 = vmatpush2.xpose.msra.mxu0 0.0
    %2995 = vmatprep.subr.mxu0 0.0
    %2996 = vmatpush2.xpose.msra.mxu0 0.0
    %2997 = vmatprep.subr.mxu0 0.0
    %2998 = vmatpush2.xpose.msra.mxu0 0.0
    %2999 = vmatprep.subr.mxu0 0.0
    %3000 = vmatpush2.xpose.msra.mxu0 0.0
    %3001 = vmatprep.subr.mxu0 0.0
    %3002 = vmatpush2.xpose.msra.mxu0 0.0
    %3003 = vmatprep.subr.mxu0 0.0
    %3004 = vmatpush2.xpose.msra.mxu0 0.0
    %3005 = vmatprep.subr.mxu0 0.0
    %3006 = vmatpush2.xpose.msra.mxu0 0.0
    %3007 = vmatprep.subr.mxu0 0.0
    %3008 = vmatpush2.xpose.msra.mxu0 0.0
    %3009 = vmatprep.subr.mxu0 0.0
    %3010 = vmatpush2.xpose.msra.mxu0 0.0
    %3011 = vmatprep.subr.mxu0 0.0
    %3012 = vmatpush2.xpose.msra.mxu0 0.0
    %3013 = vmatprep.mubr.f32.mxu0 0.0
    %3014 = vmatmul.mubr.f32.gmra.mxu0 %v2945
    %v3015 = vpop.f32.mrf.mxu0
    %v3016 = vadd.f32 0.0, %v3015
    %v3017 = vpop.f32.mrf.mxu0
    %3018 = vdwg.mxu0
    %v3019 = vmul.f32 %v3016, 0.35355338
    %v3020 = vadd.f32 %v3019, %v1170
    %v3021 = vsel %vm403, %v3020, -inf
    %3022 = vmax.xlane.f32.xlu0 %v3021
    %v3023 = vpop.xlane.xlu0 %3022
    %v3024 = vsub.f32 %v3020, %v3023
    %v3025 = vmul.f32 %v3024, 1.442695
    %v3026 = vpow.pop %v3025
    %v3027 = vsel %vm403, %v3026, 0.0
    %3028 = vadd.xlane.f32.xlu0 %v3027
    %v3029 = vpop.xlane.xlu0 %3028
    %v3030 = vrcp.pop %v3029
    %v3031 = vmul.f32 %v3026, %v3030
    %3032 = vrot.lane.b32.xlu0 %v2257, 64
    %v3033 = vpop.permute.xlu0 %3032
    %v3036 = vsel %vm403, %v3031, 0
    %3038 = vmatprep.subr.mxu0 0.0
    %3039 = vmatpush1.msra.mxu0 0.0
    %3040 = vmatprep.subr.mxu0 0.0
    %3041 = vmatpush1.msra.mxu0 0.0
    %3042 = vmatprep.subr.mxu0 0.0
    %3043 = vmatpush1.msra.mxu0 0.0
    %3044 = vmatprep.subr.mxu0 0.0
    %3045 = vmatpush1.msra.mxu0 0.0
    %3046 = vmatprep.subr.mxu0 0.0
    %3047 = vmatpush1.msra.mxu0 0.0
    %3048 = vmatprep.subr.mxu0 0.0
    %3049 = vmatpush1.msra.mxu0 0.0
    %3050 = vmatprep.subr.mxu0 0.0
    %3051 = vmatpush1.msra.mxu0 0.0
    %3052 = vmatprep.subr.mxu0 0.0
    %3053 = vmatpush1.msra.mxu0 0.0
    %3054 = vmatprep.subr.mxu0 0.0
    %3055 = vmatpush1.msra.mxu0 0.0
    %3056 = vmatprep.subr.mxu0 0.0
    %3057 = vmatpush1.msra.mxu0 0.0
    %3058 = vmatprep.subr.mxu0 0.0
    %3059 = vmatpush1.msra.mxu0 0.0
    %3060 = vmatprep.subr.mxu0 0.0
    %3061 = vmatpush1.msra.mxu0 0.0
    %3062 = vmatprep.subr.mxu0 0.0
    %3063 = vmatpush1.msra.mxu0 0.0
    %3064 = vmatprep.subr.mxu0 0.0
    %3065 = vmatpush1.msra.mxu0 0.0
    %3066 = vmatprep.subr.mxu0 0.0
    %3067 = vmatpush1.msra.mxu0 0.0
    %3068 = vmatprep.subr.mxu0 0.0
    %3069 = vmatpush1.msra.mxu0 %v3033
    %3070 = vmatprep.subr.mxu0 0.0
    %3071 = vmatpush2.msra.mxu0 0.0
    %3072 = vmatprep.subr.mxu0 0.0
    %3073 = vmatpush2.msra.mxu0 0.0
    %3074 = vmatprep.subr.mxu0 0.0
    %3075 = vmatpush2.msra.mxu0 0.0
    %3076 = vmatprep.subr.mxu0 0.0
    %3077 = vmatpush2.msra.mxu0 0.0
    %3078 = vmatprep.subr.mxu0 0.0
    %3079 = vmatpush2.msra.mxu0 0.0
    %3080 = vmatprep.subr.mxu0 0.0
    %3081 = vmatpush2.msra.mxu0 0.0
    %3082 = vmatprep.subr.mxu0 0.0
    %3083 = vmatpush2.msra.mxu0 0.0
    %3084 = vmatprep.subr.mxu0 0.0
    %3085 = vmatpush2.msra.mxu0 0.0
    %3086 = vmatprep.subr.mxu0 0.0
    %3087 = vmatpush2.msra.mxu0 0.0
    %3088 = vmatprep.subr.mxu0 0.0
    %3089 = vmatpush2.msra.mxu0 0.0
    %3090 = vmatprep.subr.mxu0 0.0
    %3091 = vmatpush2.msra.mxu0 0.0
    %3092 = vmatprep.subr.mxu0 0.0
    %3093 = vmatpush2.msra.mxu0 0.0
    %3094 = vmatprep.subr.mxu0 0.0
    %3095 = vmatpush2.msra.mxu0 0.0
    %3096 = vmatprep.subr.mxu0 0.0
    %3097 = vmatpush2.msra.mxu0 0.0
    %3098 = vmatprep.subr.mxu0 0.0
    %3099 = vmatpush2.msra.mxu0 0.0
    %3100 = vmatprep.subr.mxu0 0.0
    %3101 = vmatpush2.msra.mxu0 0.0
    %3102 = vmatprep.mubr.f32.mxu0 0.0
    %3103 = vmatmul.mubr.f32.gmra.mxu0 %v3036
    %v3104 = vpop.f32.mrf.mxu0
    %v3105 = vadd.f32 0.0, %v3104
    %v3106 = vpop.f32.mrf.mxu0
    %3107 = vdwg.mxu0
    %3108 = vrot.lane.b32.xlu0 %v2257, 120
    %v3109 = vpop.permute.xlu0 %3108
    %3110 = vrot.lane.b32.xlu0 %v2257, 88
    %v3111 = vpop.permute.xlu0 %3110
    %v3112 = vsel %vm403, %v3109, 0
    %v3114 = vsel %vm403, %v3111, 0
    %3116 = vmatprep.subr.mxu0 0.0
    %3117 = vmatpush1.xpose.msra.mxu0 0.0
    %3118 = vmatprep.subr.mxu0 0.0
    %3119 = vmatpush1.xpose.msra.mxu0 0.0
    %3120 = vmatprep.subr.mxu0 0.0
    %3121 = vmatpush1.xpose.msra.mxu0 0.0
    %3122 = vmatprep.subr.mxu0 0.0
    %3123 = vmatpush1.xpose.msra.mxu0 0.0
    %3124 = vmatprep.subr.mxu0 0.0
    %3125 = vmatpush1.xpose.msra.mxu0 0.0
    %3126 = vmatprep.subr.mxu0 0.0
    %3127 = vmatpush1.xpose.msra.mxu0 0.0
    %3128 = vmatprep.subr.mxu0 0.0
    %3129 = vmatpush1.xpose.msra.mxu0 0.0
    %3130 = vmatprep.subr.mxu0 0.0
    %3131 = vmatpush1.xpose.msra.mxu0 0.0
    %3132 = vmatprep.subr.mxu0 0.0
    %3133 = vmatpush1.xpose.msra.mxu0 0.0
    %3134 = vmatprep.subr.mxu0 0.0
    %3135 = vmatpush1.xpose.msra.mxu0 0.0
    %3136 = vmatprep.subr.mxu0 0.0
    %3137 = vmatpush1.xpose.msra.mxu0 0.0
    %3138 = vmatprep.subr.mxu0 0.0
    %3139 = vmatpush1.xpose.msra.mxu0 0.0
    %3140 = vmatprep.subr.mxu0 0.0
    %3141 = vmatpush1.xpose.msra.mxu0 0.0
    %3142 = vmatprep.subr.mxu0 0.0
    %3143 = vmatpush1.xpose.msra.mxu0 0.0
    %3144 = vmatprep.subr.mxu0 0.0
    %3145 = vmatpush1.xpose.msra.mxu0 0.0
    %3146 = vmatprep.subr.mxu0 0.0
    %3147 = vmatpush1.xpose.msra.mxu0 %v3114
    %3148 = vmatprep.subr.mxu0 0.0
    %3149 = vmatpush2.xpose.msra.mxu0 0.0
    %3150 = vmatprep.subr.mxu0 0.0
    %3151 = vmatpush2.xpose.msra.mxu0 0.0
    %3152 = vmatprep.subr.mxu0 0.0
    %3153 = vmatpush2.xpose.msra.mxu0 0.0
    %3154 = vmatprep.subr.mxu0 0.0
    %3155 = vmatpush2.xpose.msra.mxu0 0.0
    %3156 = vmatprep.subr.mxu0 0.0
    %3157 = vmatpush2.xpose.msra.mxu0 0.0
    %3158 = vmatprep.subr.mxu0 0.0
    %3159 = vmatpush2.xpose.msra.mxu0 0.0
    %3160 = vmatprep.subr.mxu0 0.0
    %3161 = vmatpush2.xpose.msra.mxu0 0.0
    %3162 = vmatprep.subr.mxu0 0.0
    %3163 = vmatpush2.xpose.msra.mxu0 0.0
    %3164 = vmatprep.subr.mxu0 0.0
    %3165 = vmatpush2.xpose.msra.mxu0 0.0
    %3166 = vmatprep.subr.mxu0 0.0
    %3167 = vmatpush2.xpose.msra.mxu0 0.0
    %3168 = vmatprep.subr.mxu0 0.0
    %3169 = vmatpush2.xpose.msra.mxu0 0.0
    %3170 = vmatprep.subr.mxu0 0.0
    %3171 = vmatpush2.xpose.msra.mxu0 0.0
    %3172 = vmatprep.subr.mxu0 0.0
    %3173 = vmatpush2.xpose.msra.mxu0 0.0
    %3174 = vmatprep.subr.mxu0 0.0
    %3175 = vmatpush2.xpose.msra.mxu0 0.0
    %3176 = vmatprep.subr.mxu0 0.0
    %3177 = vmatpush2.xpose.msra.mxu0 0.0
    %3178 = vmatprep.subr.mxu0 0.0
    %3179 = vmatpush2.xpose.msra.mxu0 0.0
    %3180 = vmatprep.mubr.f32.mxu0 0.0
    %3181 = vmatmul.mubr.f32.gmra.mxu0 %v3112
    %v3182 = vpop.f32.mrf.mxu0
    %v3183 = vadd.f32 0.0, %v3182
    %v3184 = vpop.f32.mrf.mxu0
    %3185 = vdwg.mxu0
    %v3186 = vmul.f32 %v3183, 0.35355338
    %v3187 = vadd.f32 %v3186, %v1170
    %v3188 = vsel %vm403, %v3187, -inf
    %3189 = vmax.xlane.f32.xlu0 %v3188
    %v3190 = vpop.xlane.xlu0 %3189
    %v3191 = vsub.f32 %v3187, %v3190
    %v3192 = vmul.f32 %v3191, 1.442695
    %v3193 = vpow.pop %v3192
    %v3194 = vsel %vm403, %v3193, 0.0
    %3195 = vadd.xlane.f32.xlu0 %v3194
    %v3196 = vpop.xlane.xlu0 %3195
    %v3197 = vrcp.pop %v3196
    %v3198 = vmul.f32 %v3193, %v3197
    %3199 = vrot.lane.b32.xlu0 %v2257, 56
    %v3200 = vpop.permute.xlu0 %3199
    %v3203 = vsel %vm403, %v3198, 0
    %3205 = vmatprep.subr.mxu0 0.0
    %3206 = vmatpush1.msra.mxu0 0.0
    %3207 = vmatprep.subr.mxu0 0.0
    %3208 = vmatpush1.msra.mxu0 0.0
    %3209 = vmatprep.subr.mxu0 0.0
    %3210 = vmatpush1.msra.mxu0 0.0
    %3211 = vmatprep.subr.mxu0 0.0
    %3212 = vmatpush1.msra.mxu0 0.0
    %3213 = vmatprep.subr.mxu0 0.0
    %3214 = vmatpush1.msra.mxu0 0.0
    %3215 = vmatprep.subr.mxu0 0.0
    %3216 = vmatpush1.msra.mxu0 0.0
    %3217 = vmatprep.subr.mxu0 0.0
    %3218 = vmatpush1.msra.mxu0 0.0
    %3219 = vmatprep.subr.mxu0 0.0
    %3220 = vmatpush1.msra.mxu0 0.0
    %3221 = vmatprep.subr.mxu0 0.0
    %3222 = vmatpush1.msra.mxu0 0.0
    %3223 = vmatprep.subr.mxu0 0.0
    %3224 = vmatpush1.msra.mxu0 0.0
    %3225 = vmatprep.subr.mxu0 0.0
    %3226 = vmatpush1.msra.mxu0 0.0
    %3227 = vmatprep.subr.mxu0 0.0
    %3228 = vmatpush1.msra.mxu0 0.0
    %3229 = vmatprep.subr.mxu0 0.0
    %3230 = vmatpush1.msra.mxu0 0.0
    %3231 = vmatprep.subr.mxu0 0.0
    %3232 = vmatpush1.msra.mxu0 0.0
    %3233 = vmatprep.subr.mxu0 0.0
    %3234 = vmatpush1.msra.mxu0 0.0
    %3235 = vmatprep.subr.mxu0 0.0
    %3236 = vmatpush1.msra.mxu0 %v3200
    %3237 = vmatprep.subr.mxu0 0.0
    %3238 = vmatpush2.msra.mxu0 0.0
    %3239 = vmatprep.subr.mxu0 0.0
    %3240 = vmatpush2.msra.mxu0 0.0
    %3241 = vmatprep.subr.mxu0 0.0
    %3242 = vmatpush2.msra.mxu0 0.0
    %3243 = vmatprep.subr.mxu0 0.0
    %3244 = vmatpush2.msra.mxu0 0.0
    %3245 = vmatprep.subr.mxu0 0.0
    %3246 = vmatpush2.msra.mxu0 0.0
    %3247 = vmatprep.subr.mxu0 0.0
    %3248 = vmatpush2.msra.mxu0 0.0
    %3249 = vmatprep.subr.mxu0 0.0
    %3250 = vmatpush2.msra.mxu0 0.0
    %3251 = vmatprep.subr.mxu0 0.0
    %3252 = vmatpush2.msra.mxu0 0.0
    %3253 = vmatprep.subr.mxu0 0.0
    %3254 = vmatpush2.msra.mxu0 0.0
    %3255 = vmatprep.subr.mxu0 0.0
    %3256 = vmatpush2.msra.mxu0 0.0
    %3257 = vmatprep.subr.mxu0 0.0
    %3258 = vmatpush2.msra.mxu0 0.0
    %3259 = vmatprep.subr.mxu0 0.0
    %3260 = vmatpush2.msra.mxu0 0.0
    %3261 = vmatprep.subr.mxu0 0.0
    %3262 = vmatpush2.msra.mxu0 0.0
    %3263 = vmatprep.subr.mxu0 0.0
    %3264 = vmatpush2.msra.mxu0 0.0
    %3265 = vmatprep.subr.mxu0 0.0
    %3266 = vmatpush2.msra.mxu0 0.0
    %3267 = vmatprep.subr.mxu0 0.0
    %3268 = vmatpush2.msra.mxu0 0.0
    %3269 = vmatprep.mubr.f32.mxu0 0.0
    %3270 = vmatmul.mubr.f32.gmra.mxu0 %v3203
    %v3271 = vpop.f32.mrf.mxu0
    %v3272 = vadd.f32 0.0, %v3271
    %v3273 = vpop.f32.mrf.mxu0
    %3274 = vdwg.mxu0
    %3275 = vrot.lane.b32.xlu0 %v2257, 112
    %v3276 = vpop.permute.xlu0 %3275
    %3277 = vrot.lane.b32.xlu0 %v2257, 80
    %v3278 = vpop.permute.xlu0 %3277
    %v3279 = vsel %vm403, %v3276, 0
    %v3281 = vsel %vm403, %v3278, 0
    %3283 = vmatprep.subr.mxu0 0.0
    %3284 = vmatpush1.xpose.msra.mxu0 0.0
    %3285 = vmatprep.subr.mxu0 0.0
    %3286 = vmatpush1.xpose.msra.mxu0 0.0
    %3287 = vmatprep.subr.mxu0 0.0
    %3288 = vmatpush1.xpose.msra.mxu0 0.0
    %3289 = vmatprep.subr.mxu0 0.0
    %3290 = vmatpush1.xpose.msra.mxu0 0.0
    %3291 = vmatprep.subr.mxu0 0.0
    %3292 = vmatpush1.xpose.msra.mxu0 0.0
    %3293 = vmatprep.subr.mxu0 0.0
    %3294 = vmatpush1.xpose.msra.mxu0 0.0
    %3295 = vmatprep.subr.mxu0 0.0
    %3296 = vmatpush1.xpose.msra.mxu0 0.0
    %3297 = vmatprep.subr.mxu0 0.0
    %3298 = vmatpush1.xpose.msra.mxu0 0.0
    %3299 = vmatprep.subr.mxu0 0.0
    %3300 = vmatpush1.xpose.msra.mxu0 0.0
    %3301 = vmatprep.subr.mxu0 0.0
    %3302 = vmatpush1.xpose.msra.mxu0 0.0
    %3303 = vmatprep.subr.mxu0 0.0
    %3304 = vmatpush1.xpose.msra.mxu0 0.0
    %3305 = vmatprep.subr.mxu0 0.0
    %3306 = vmatpush1.xpose.msra.mxu0 0.0
    %3307 = vmatprep.subr.mxu0 0.0
    %3308 = vmatpush1.xpose.msra.mxu0 0.0
    %3309 = vmatprep.subr.mxu0 0.0
    %3310 = vmatpush1.xpose.msra.mxu0 0.0
    %3311 = vmatprep.subr.mxu0 0.0
    %3312 = vmatpush1.xpose.msra.mxu0 0.0
    %3313 = vmatprep.subr.mxu0 0.0
    %3314 = vmatpush1.xpose.msra.mxu0 %v3281
    %3315 = vmatprep.subr.mxu0 0.0
    %3316 = vmatpush2.xpose.msra.mxu0 0.0
    %3317 = vmatprep.subr.mxu0 0.0
    %3318 = vmatpush2.xpose.msra.mxu0 0.0
    %3319 = vmatprep.subr.mxu0 0.0
    %3320 = vmatpush2.xpose.msra.mxu0 0.0
    %3321 = vmatprep.subr.mxu0 0.0
    %3322 = vmatpush2.xpose.msra.mxu0 0.0
    %3323 = vmatprep.subr.mxu0 0.0
    %3324 = vmatpush2.xpose.msra.mxu0 0.0
    %3325 = vmatprep.subr.mxu0 0.0
    %3326 = vmatpush2.xpose.msra.mxu0 0.0
    %3327 = vmatprep.subr.mxu0 0.0
    %3328 = vmatpush2.xpose.msra.mxu0 0.0
    %3329 = vmatprep.subr.mxu0 0.0
    %3330 = vmatpush2.xpose.msra.mxu0 0.0
    %3331 = vmatprep.subr.mxu0 0.0
    %3332 = vmatpush2.xpose.msra.mxu0 0.0
    %3333 = vmatprep.subr.mxu0 0.0
    %3334 = vmatpush2.xpose.msra.mxu0 0.0
    %3335 = vmatprep.subr.mxu0 0.0
    %3336 = vmatpush2.xpose.msra.mxu0 0.0
    %3337 = vmatprep.subr.mxu0 0.0
    %3338 = vmatpush2.xpose.msra.mxu0 0.0
    %3339 = vmatprep.subr.mxu0 0.0
    %3340 = vmatpush2.xpose.msra.mxu0 0.0
    %3341 = vmatprep.subr.mxu0 0.0
    %3342 = vmatpush2.xpose.msra.mxu0 0.0
    %3343 = vmatprep.subr.mxu0 0.0
    %3344 = vmatpush2.xpose.msra.mxu0 0.0
    %3345 = vmatprep.subr.mxu0 0.0
    %3346 = vmatpush2.xpose.msra.mxu0 0.0
    %3347 = vmatprep.mubr.f32.mxu0 0.0
    %3348 = vmatmul.mubr.f32.gmra.mxu0 %v3279
    %v3349 = vpop.f32.mrf.mxu0
    %v3350 = vadd.f32 0.0, %v3349
    %v3351 = vpop.f32.mrf.mxu0
    %3352 = vdwg.mxu0
    %v3353 = vmul.f32 %v3350, 0.35355338
    %v3354 = vadd.f32 %v3353, %v1170
    %v3355 = vsel %vm403, %v3354, -inf
    %3356 = vmax.xlane.f32.xlu0 %v3355
    %v3357 = vpop.xlane.xlu0 %3356
    %v3358 = vsub.f32 %v3354, %v3357
    %v3359 = vmul.f32 %v3358, 1.442695
    %v3360 = vpow.pop %v3359
    %v3361 = vsel %vm403, %v3360, 0.0
    %3362 = vadd.xlane.f32.xlu0 %v3361
    %v3363 = vpop.xlane.xlu0 %3362
    %v3364 = vrcp.pop %v3363
    %v3365 = vmul.f32 %v3360, %v3364
    %3366 = vrot.lane.b32.xlu0 %v2257, 48
    %v3367 = vpop.permute.xlu0 %3366
    %v3370 = vsel %vm403, %v3365, 0
    %3372 = vmatprep.subr.mxu0 0.0
    %3373 = vmatpush1.msra.mxu0 0.0
    %3374 = vmatprep.subr.mxu0 0.0
    %3375 = vmatpush1.msra.mxu0 0.0
    %3376 = vmatprep.subr.mxu0 0.0
    %3377 = vmatpush1.msra.mxu0 0.0
    %3378 = vmatprep.subr.mxu0 0.0
    %3379 = vmatpush1.msra.mxu0 0.0
    %3380 = vmatprep.subr.mxu0 0.0
    %3381 = vmatpush1.msra.mxu0 0.0
    %3382 = vmatprep.subr.mxu0 0.0
    %3383 = vmatpush1.msra.mxu0 0.0
    %3384 = vmatprep.subr.mxu0 0.0
    %3385 = vmatpush1.msra.mxu0 0.0
    %3386 = vmatprep.subr.mxu0 0.0
    %3387 = vmatpush1.msra.mxu0 0.0
    %3388 = vmatprep.subr.mxu0 0.0
    %3389 = vmatpush1.msra.mxu0 0.0
    %3390 = vmatprep.subr.mxu0 0.0
    %3391 = vmatpush1.msra.mxu0 0.0
    %3392 = vmatprep.subr.mxu0 0.0
    %3393 = vmatpush1.msra.mxu0 0.0
    %3394 = vmatprep.subr.mxu0 0.0
    %3395 = vmatpush1.msra.mxu0 0.0
    %3396 = vmatprep.subr.mxu0 0.0
    %3397 = vmatpush1.msra.mxu0 0.0
    %3398 = vmatprep.subr.mxu0 0.0
    %3399 = vmatpush1.msra.mxu0 0.0
    %3400 = vmatprep.subr.mxu0 0.0
    %3401 = vmatpush1.msra.mxu0 0.0
    %3402 = vmatprep.subr.mxu0 0.0
    %3403 = vmatpush1.msra.mxu0 %v3367
    %3404 = vmatprep.subr.mxu0 0.0
    %3405 = vmatpush2.msra.mxu0 0.0
    %3406 = vmatprep.subr.mxu0 0.0
    %3407 = vmatpush2.msra.mxu0 0.0
    %3408 = vmatprep.subr.mxu0 0.0
    %3409 = vmatpush2.msra.mxu0 0.0
    %3410 = vmatprep.subr.mxu0 0.0
    %3411 = vmatpush2.msra.mxu0 0.0
    %3412 = vmatprep.subr.mxu0 0.0
    %3413 = vmatpush2.msra.mxu0 0.0
    %3414 = vmatprep.subr.mxu0 0.0
    %3415 = vmatpush2.msra.mxu0 0.0
    %3416 = vmatprep.subr.mxu0 0.0
    %3417 = vmatpush2.msra.mxu0 0.0
    %3418 = vmatprep.subr.mxu0 0.0
    %3419 = vmatpush2.msra.mxu0 0.0
    %3420 = vmatprep.subr.mxu0 0.0
    %3421 = vmatpush2.msra.mxu0 0.0
    %3422 = vmatprep.subr.mxu0 0.0
    %3423 = vmatpush2.msra.mxu0 0.0
    %3424 = vmatprep.subr.mxu0 0.0
    %3425 = vmatpush2.msra.mxu0 0.0
    %3426 = vmatprep.subr.mxu0 0.0
    %3427 = vmatpush2.msra.mxu0 0.0
    %3428 = vmatprep.subr.mxu0 0.0
    %3429 = vmatpush2.msra.mxu0 0.0
    %3430 = vmatprep.subr.mxu0 0.0
    %3431 = vmatpush2.msra.mxu0 0.0
    %3432 = vmatprep.subr.mxu0 0.0
    %3433 = vmatpush2.msra.mxu0 0.0
    %3434 = vmatprep.subr.mxu0 0.0
    %3435 = vmatpush2.msra.mxu0 0.0
    %3436 = vmatprep.mubr.f32.mxu0 0.0
    %3437 = vmatmul.mubr.f32.gmra.mxu0 %v3370
    %v3438 = vpop.f32.mrf.mxu0
    %v3439 = vadd.f32 0.0, %v3438
    %v3440 = vpop.f32.mrf.mxu0
    %3441 = vdwg.mxu0
    %3442 = vrot.lane.b32.xlu0 %v2257, 104
    %v3443 = vpop.permute.xlu0 %3442
    %3444 = vrot.lane.b32.xlu0 %v2257, 72
    %v3445 = vpop.permute.xlu0 %3444
    %v3446 = vsel %vm403, %v3443, 0
    %v3448 = vsel %vm403, %v3445, 0
    %3450 = vmatprep.subr.mxu0 0.0
    %3451 = vmatpush1.xpose.msra.mxu0 0.0
    %3452 = vmatprep.subr.mxu0 0.0
    %3453 = vmatpush1.xpose.msra.mxu0 0.0
    %3454 = vmatprep.subr.mxu0 0.0
    %3455 = vmatpush1.xpose.msra.mxu0 0.0
    %3456 = vmatprep.subr.mxu0 0.0
    %3457 = vmatpush1.xpose.msra.mxu0 0.0
    %3458 = vmatprep.subr.mxu0 0.0
    %3459 = vmatpush1.xpose.msra.mxu0 0.0
    %3460 = vmatprep.subr.mxu0 0.0
    %3461 = vmatpush1.xpose.msra.mxu0 0.0
    %3462 = vmatprep.subr.mxu0 0.0
    %3463 = vmatpush1.xpose.msra.mxu0 0.0
    %3464 = vmatprep.subr.mxu0 0.0
    %3465 = vmatpush1.xpose.msra.mxu0 0.0
    %3466 = vmatprep.subr.mxu0 0.0
    %3467 = vmatpush1.xpose.msra.mxu0 0.0
    %3468 = vmatprep.subr.mxu0 0.0
    %3469 = vmatpush1.xpose.msra.mxu0 0.0
    %3470 = vmatprep.subr.mxu0 0.0
    %3471 = vmatpush1.xpose.msra.mxu0 0.0
    %3472 = vmatprep.subr.mxu0 0.0
    %3473 = vmatpush1.xpose.msra.mxu0 0.0
    %3474 = vmatprep.subr.mxu0 0.0
    %3475 = vmatpush1.xpose.msra.mxu0 0.0
    %3476 = vmatprep.subr.mxu0 0.0
    %3477 = vmatpush1.xpose.msra.mxu0 0.0
    %3478 = vmatprep.subr.mxu0 0.0
    %3479 = vmatpush1.xpose.msra.mxu0 0.0
    %3480 = vmatprep.subr.mxu0 0.0
    %3481 = vmatpush1.xpose.msra.mxu0 %v3448
    %3482 = vmatprep.subr.mxu0 0.0
    %3483 = vmatpush2.xpose.msra.mxu0 0.0
    %3484 = vmatprep.subr.mxu0 0.0
    %3485 = vmatpush2.xpose.msra.mxu0 0.0
    %3486 = vmatprep.subr.mxu0 0.0
    %3487 = vmatpush2.xpose.msra.mxu0 0.0
    %3488 = vmatprep.subr.mxu0 0.0
    %3489 = vmatpush2.xpose.msra.mxu0 0.0
    %3490 = vmatprep.subr.mxu0 0.0
    %3491 = vmatpush2.xpose.msra.mxu0 0.0
    %3492 = vmatprep.subr.mxu0 0.0
    %3493 = vmatpush2.xpose.msra.mxu0 0.0
    %3494 = vmatprep.subr.mxu0 0.0
    %3495 = vmatpush2.xpose.msra.mxu0 0.0
    %3496 = vmatprep.subr.mxu0 0.0
    %3497 = vmatpush2.xpose.msra.mxu0 0.0
    %3498 = vmatprep.subr.mxu0 0.0
    %3499 = vmatpush2.xpose.msra.mxu0 0.0
    %3500 = vmatprep.subr.mxu0 0.0
    %3501 = vmatpush2.xpose.msra.mxu0 0.0
    %3502 = vmatprep.subr.mxu0 0.0
    %3503 = vmatpush2.xpose.msra.mxu0 0.0
    %3504 = vmatprep.subr.mxu0 0.0
    %3505 = vmatpush2.xpose.msra.mxu0 0.0
    %3506 = vmatprep.subr.mxu0 0.0
    %3507 = vmatpush2.xpose.msra.mxu0 0.0
    %3508 = vmatprep.subr.mxu0 0.0
    %3509 = vmatpush2.xpose.msra.mxu0 0.0
    %3510 = vmatprep.subr.mxu0 0.0
    %3511 = vmatpush2.xpose.msra.mxu0 0.0
    %3512 = vmatprep.subr.mxu0 0.0
    %3513 = vmatpush2.xpose.msra.mxu0 0.0
    %3514 = vmatprep.mubr.f32.mxu0 0.0
    %3515 = vmatmul.mubr.f32.gmra.mxu0 %v3446
    %v3516 = vpop.f32.mrf.mxu0
    %v3517 = vadd.f32 0.0, %v3516
    %v3518 = vpop.f32.mrf.mxu0
    %3519 = vdwg.mxu0
    %v3520 = vmul.f32 %v3517, 0.35355338
    %v3521 = vadd.f32 %v3520, %v1170
    %v3522 = vsel %vm403, %v3521, -inf
    %3523 = vmax.xlane.f32.xlu0 %v3522
    %v3524 = vpop.xlane.xlu0 %3523
    %v3525 = vsub.f32 %v3521, %v3524
    %v3526 = vmul.f32 %v3525, 1.442695
    %v3527 = vpow.pop %v3526
    %v3528 = vsel %vm403, %v3527, 0.0
    %3529 = vadd.xlane.f32.xlu0 %v3528
    %v3530 = vpop.xlane.xlu0 %3529
    %v3531 = vrcp.pop %v3530
    %v3532 = vmul.f32 %v3527, %v3531
    %3533 = vrot.lane.b32.xlu0 %v2257, 40
    %v3534 = vpop.permute.xlu0 %3533
    %v3537 = vsel %vm403, %v3532, 0
    %3539 = vmatprep.subr.mxu0 0.0
    %3540 = vmatpush1.msra.mxu0 0.0
    %3541 = vmatprep.subr.mxu0 0.0
    %3542 = vmatpush1.msra.mxu0 0.0
    %3543 = vmatprep.subr.mxu0 0.0
    %3544 = vmatpush1.msra.mxu0 0.0
    %3545 = vmatprep.subr.mxu0 0.0
    %3546 = vmatpush1.msra.mxu0 0.0
    %3547 = vmatprep.subr.mxu0 0.0
    %3548 = vmatpush1.msra.mxu0 0.0
    %3549 = vmatprep.subr.mxu0 0.0
    %3550 = vmatpush1.msra.mxu0 0.0
    %3551 = vmatprep.subr.mxu0 0.0
    %3552 = vmatpush1.msra.mxu0 0.0
    %3553 = vmatprep.subr.mxu0 0.0
    %3554 = vmatpush1.msra.mxu0 0.0
    %3555 = vmatprep.subr.mxu0 0.0
    %3556 = vmatpush1.msra.mxu0 0.0
    %3557 = vmatprep.subr.mxu0 0.0
    %3558 = vmatpush1.msra.mxu0 0.0
    %3559 = vmatprep.subr.mxu0 0.0
    %3560 = vmatpush1.msra.mxu0 0.0
    %3561 = vmatprep.subr.mxu0 0.0
    %3562 = vmatpush1.msra.mxu0 0.0
    %3563 = vmatprep.subr.mxu0 0.0
    %3564 = vmatpush1.msra.mxu0 0.0
    %3565 = vmatprep.subr.mxu0 0.0
    %3566 = vmatpush1.msra.mxu0 0.0
    %3567 = vmatprep.subr.mxu0 0.0
    %3568 = vmatpush1.msra.mxu0 0.0
    %3569 = vmatprep.subr.mxu0 0.0
    %3570 = vmatpush1.msra.mxu0 %v3534
    %3571 = vmatprep.subr.mxu0 0.0
    %3572 = vmatpush2.msra.mxu0 0.0
    %3573 = vmatprep.subr.mxu0 0.0
    %3574 = vmatpush2.msra.mxu0 0.0
    %3575 = vmatprep.subr.mxu0 0.0
    %3576 = vmatpush2.msra.mxu0 0.0
    %3577 = vmatprep.subr.mxu0 0.0
    %3578 = vmatpush2.msra.mxu0 0.0
    %3579 = vmatprep.subr.mxu0 0.0
    %3580 = vmatpush2.msra.mxu0 0.0
    %3581 = vmatprep.subr.mxu0 0.0
    %3582 = vmatpush2.msra.mxu0 0.0
    %3583 = vmatprep.subr.mxu0 0.0
    %3584 = vmatpush2.msra.mxu0 0.0
    %3585 = vmatprep.subr.mxu0 0.0
    %3586 = vmatpush2.msra.mxu0 0.0
    %3587 = vmatprep.subr.mxu0 0.0
    %3588 = vmatpush2.msra.mxu0 0.0
    %3589 = vmatprep.subr.mxu0 0.0
    %3590 = vmatpush2.msra.mxu0 0.0
    %3591 = vmatprep.subr.mxu0 0.0
    %3592 = vmatpush2.msra.mxu0 0.0
    %3593 = vmatprep.subr.mxu0 0.0
    %3594 = vmatpush2.msra.mxu0 0.0
    %3595 = vmatprep.subr.mxu0 0.0
    %3596 = vmatpush2.msra.mxu0 0.0
    %3597 = vmatprep.subr.mxu0 0.0
    %3598 = vmatpush2.msra.mxu0 0.0
    %3599 = vmatprep.subr.mxu0 0.0
    %3600 = vmatpush2.msra.mxu0 0.0
    %3601 = vmatprep.subr.mxu0 0.0
    %3602 = vmatpush2.msra.mxu0 0.0
    %3603 = vmatprep.mubr.f32.mxu0 0.0
    %3604 = vmatmul.mubr.f32.gmra.mxu0 %v3537
    %v3605 = vpop.f32.mrf.mxu0
    %v3606 = vadd.f32 0.0, %v3605
    %v3607 = vpop.f32.mrf.mxu0
    %3608 = vdwg.mxu0
    %3610 = vrot.lane.b32.xlu0 %v3272, 8
    %v3611 = vpop.permute.xlu0 %3610
    %3614 = vrot.lane.b32.xlu0 %v3439, 16
    %v3615 = vpop.permute.xlu0 %3614
    %3618 = vrot.lane.b32.xlu0 %v3606, 24
    %v3619 = vpop.permute.xlu0 %3618
    %v3621 = vsel %vm403, %v3105, %v3611
    %v3622 = vsel %vm1085, %v3621, %v3615
    %v3623 = vsel %vm1087, %v3622, %v3619
    %s3624 = scalar_lea.vmem %s6, 32
    %v3625 = vld [vmem:[%s3624] sm:$0xff]
    %v3626 = vld [vmem:[%s3624 + $0x8] sm:$0xff]
    %v3627 = vld [vmem:[%s3624 + $0x10] sm:$0xff]
    %v3628 = vld [vmem:[%s3624 + $0x18] sm:$0xff]
    %s3629 = scalar_lea.vmem [#allocation11], 1
    %v3630 = vld [vmem:[%s3629] sm:$0x1]
    %v3632 = vlaneseq
    %v3633 = vshrl.u32 %v3632, 7
    %v3634 = vsub.s32 0, %v3633
    %v3635 = vrot.slane %v3630, %v3634
    %v3638 = vsel %vm263, %v2941, 0
    %v3641 = vsel %vm263, %v3623, 0
    %3643 = vmatprep.subr.mxu0 0.0
    %3644 = vmatpush1.msra.mxu0 0.0
    %3645 = vmatprep.subr.mxu0 0.0
    %3646 = vmatpush1.msra.mxu0 0.0
    %3647 = vmatprep.subr.mxu0 0.0
    %3648 = vmatpush1.msra.mxu0 0.0
    %3649 = vmatprep.subr.mxu0 0.0
    %3650 = vmatpush1.msra.mxu0 0.0
    %3651 = vmatprep.subr.mxu0 0.0
    %3652 = vmatpush1.msra.mxu0 0.0
    %3653 = vmatprep.subr.mxu0 0.0
    %3654 = vmatpush1.msra.mxu0 0.0
    %3655 = vmatprep.subr.mxu0 0.0
    %3656 = vmatpush1.msra.mxu0 0.0
    %3657 = vmatprep.subr.mxu0 0.0
    %3658 = vmatpush1.msra.mxu0 0.0
    %3659 = vmatprep.subr.mxu0 0.0
    %3660 = vmatpush1.msra.mxu0 0.0
    %3661 = vmatprep.subr.mxu0 0.0
    %3662 = vmatpush1.msra.mxu0 0.0
    %3663 = vmatprep.subr.mxu0 0.0
    %3664 = vmatpush1.msra.mxu0 0.0
    %3665 = vmatprep.subr.mxu0 0.0
    %3666 = vmatpush1.msra.mxu0 0.0
    %3667 = vmatprep.subr.mxu0 0.0
    %3668 = vmatpush1.msra.mxu0 %v3628
    %3669 = vmatprep.subr.mxu0 0.0
    %3670 = vmatpush1.msra.mxu0 %v3627
    %3671 = vmatprep.subr.mxu0 0.0
    %3672 = vmatpush1.msra.mxu0 %v3626
    %3673 = vmatprep.subr.mxu0 0.0
    %3674 = vmatpush1.msra.mxu0 %v3625
    %3675 = vmatprep.subr.mxu0 0.0
    %3676 = vmatpush2.msra.mxu0 0.0
    %3677 = vmatprep.subr.mxu0 0.0
    %3678 = vmatpush2.msra.mxu0 0.0
    %3679 = vmatprep.subr.mxu0 0.0
    %3680 = vmatpush2.msra.mxu0 0.0
    %3681 = vmatprep.subr.mxu0 0.0
    %3682 = vmatpush2.msra.mxu0 0.0
    %3683 = vmatprep.subr.mxu0 0.0
    %3684 = vmatpush2.msra.mxu0 0.0
    %3685 = vmatprep.subr.mxu0 0.0
    %3686 = vmatpush2.msra.mxu0 0.0
    %3687 = vmatprep.subr.mxu0 0.0
    %3688 = vmatpush2.msra.mxu0 0.0
    %3689 = vmatprep.subr.mxu0 0.0
    %3690 = vmatpush2.msra.mxu0 0.0
    %3691 = vmatprep.subr.mxu0 0.0
    %3692 = vmatpush2.msra.mxu0 0.0
    %3693 = vmatprep.subr.mxu0 0.0
    %3694 = vmatpush2.msra.mxu0 0.0
    %3695 = vmatprep.subr.mxu0 0.0
    %3696 = vmatpush2.msra.mxu0 0.0
    %3697 = vmatprep.subr.mxu0 0.0
    %3698 = vmatpush2.msra.mxu0 0.0
    %3699 = vmatprep.subr.mxu0 0.0
    %3700 = vmatpush2.msra.mxu0 0.0
    %3701 = vmatprep.subr.mxu0 0.0
    %3702 = vmatpush2.msra.mxu0 0.0
    %3703 = vmatprep.subr.mxu0 0.0
    %3704 = vmatpush2.msra.mxu0 0.0
    %3705 = vmatprep.subr.mxu0 0.0
    %3706 = vmatpush2.msra.mxu0 0.0
    %3707 = vmatprep.mubr.f32.mxu0 0.0
    %3708 = vmatmul.mubr.f32.gmra.mxu0 %v3638
    %v3709 = vpop.f32.mrf.mxu0
    %v3710 = vadd.f32 %v3635, %v3709
    %v3711 = vpop.f32.mrf.mxu0
    %3712 = vmatprep.mubr.f32.mxu0 0.0
    %3713 = vmatmul.mubr.f32.gmra.mxu0 %v3641
    %v3714 = vpop.f32.mrf.mxu0
    %v3715 = vadd.f32 %v3635, %v3714
    %v3716 = vpop.f32.mrf.mxu0
    %3717 = vdwg.mxu0
    %v3718 = vadd.f32 %v3710, %v2164
    %v3719 = vadd.f32 %v3715, %v2165
    %s3720 = scalar_lea.vmem [#allocation13], 1
    %v3721 = vld [vmem:[%s3720] sm:$0x1]
    %s3722 = scalar_lea.vmem [#allocation14], 1
    %v3723 = vld [vmem:[%s3722] sm:$0x1]
    %v3724 = vsel %vm263, %v3718, 0.0
    %3725 = vadd.xlane.f32.xlu0 %v3724
    %v3726 = vpop.xlane.xlu0 %3725
    %v3727 = vsel %vm263, %v3719, 0.0
    %3728 = vadd.xlane.f32.xlu0 %v3727
    %v3729 = vpop.xlane.xlu0 %3728
    %v3730 = vmul.f32 %v3726, %v270
    %v3731 = vmul.f32 %v3729, %v270
    %v3732 = vsub.f32 %v3718, %v3730
    %v3733 = vsub.f32 %v3719, %v3731
    %v3734 = vmul.f32 %v3732, %v3732
    %v3735 = vmul.f32 %v3733, %v3733
    %v3736 = vsel %vm263, %v3734, 0.0
    %3737 = vadd.xlane.f32.xlu0 %v3736
    %v3738 = vpop.xlane.xlu0 %3737
    %v3739 = vsel %vm263, %v3735, 0.0
    %3740 = vadd.xlane.f32.xlu0 %v3739
    %v3741 = vpop.xlane.xlu0 %3740
    %v3742 = vmul.f32 %v3738, %v270
    %v3743 = vmul.f32 %v3741, %v270
    %v3744 = vadd.f32 %v3742, 1e-12
    %v3745 = vadd.f32 %v3743, 1e-12
    %v3746 = vrsqrt.pop %v3744
    %v3747 = vrsqrt.pop %v3745
    %v3748 = vmul.f32 %v3732, %v3746
    %v3749 = vmul.f32 %v3733, %v3747
    %v3751 = vlaneseq
    %v3752 = vshrl.u32 %v3751, 7
    %v3753 = vsub.s32 0, %v3752
    %v3754 = vrot.slane %v3721, %v3753
    %v3756 = vmul.f32 %v3748, %v3754
    %v3757 = vmul.f32 %v3749, %v3754
    %v3759 = vlaneseq
    %v3760 = vshrl.u32 %v3759, 7
    %v3761 = vsub.s32 0, %v3760
    %v3762 = vrot.slane %v3723, %v3761
    %v3764 = vadd.f32 %v3756, %v3762
    %v3765 = vadd.f32 %v3757, %v3762
    %s3766 = scalar_lea.vmem %s10, 32
    %v3767 = vld [vmem:[%s3766] sm:$0xff]
    %v3768 = vld [vmem:[%s3766 + $0x8] sm:$0xff]
    %v3769 = vld [vmem:[%s3766 + $0x10] sm:$0xff]
    %v3770 = vld [vmem:[%s3766 + $0x18] sm:$0xff]
    %s3771 = scalar_lea.vmem [#allocation16], 1
    %v3772 = vld [vmem:[%s3771] sm:$0x1]
    %v3774 = vlaneseq
    %v3775 = vshrl.u32 %v3774, 7
    %v3776 = vsub.s32 0, %v3775
    %v3777 = vrot.slane %v3772, %v3776
    %v3780 = vsel %vm263, %v3764, 0
    %v3783 = vsel %vm263, %v3765, 0
    %3785 = vmatprep.subr.mxu0 0.0
    %3786 = vmatpush1.msra.mxu0 0.0
    %3787 = vmatprep.subr.mxu0 0.0
    %3788 = vmatpush1.msra.mxu0 0.0
    %3789 = vmatprep.subr.mxu0 0.0
    %3790 = vmatpush1.msra.mxu0 0.0
    %3791 = vmatprep.subr.mxu0 0.0
    %3792 = vmatpush1.msra.mxu0 0.0
    %3793 = vmatprep.subr.mxu0 0.0
    %3794 = vmatpush1.msra.mxu0 0.0
    %3795 = vmatprep.subr.mxu0 0.0
    %3796 = vmatpush1.msra.mxu0 0.0
    %3797 = vmatprep.subr.mxu0 0.0
    %3798 = vmatpush1.msra.mxu0 0.0
    %3799 = vmatprep.subr.mxu0 0.0
    %3800 = vmatpush1.msra.mxu0 0.0
    %3801 = vmatprep.subr.mxu0 0.0
    %3802 = vmatpush1.msra.mxu0 0.0
    %3803 = vmatprep.subr.mxu0 0.0
    %3804 = vmatpush1.msra.mxu0 0.0
    %3805 = vmatprep.subr.mxu0 0.0
    %3806 = vmatpush1.msra.mxu0 0.0
    %3807 = vmatprep.subr.mxu0 0.0
    %3808 = vmatpush1.msra.mxu0 0.0
    %3809 = vmatprep.subr.mxu0 0.0
    %3810 = vmatpush1.msra.mxu0 %v3770
    %3811 = vmatprep.subr.mxu0 0.0
    %3812 = vmatpush1.msra.mxu0 %v3769
    %3813 = vmatprep.subr.mxu0 0.0
    %3814 = vmatpush1.msra.mxu0 %v3768
    %3815 = vmatprep.subr.mxu0 0.0
    %3816 = vmatpush1.msra.mxu0 %v3767
    %3817 = vmatprep.subr.mxu0 0.0
    %3818 = vmatpush2.msra.mxu0 0.0
    %3819 = vmatprep.subr.mxu0 0.0
    %3820 = vmatpush2.msra.mxu0 0.0
    %3821 = vmatprep.subr.mxu0 0.0
    %3822 = vmatpush2.msra.mxu0 0.0
    %3823 = vmatprep.subr.mxu0 0.0
    %3824 = vmatpush2.msra.mxu0 0.0
    %3825 = vmatprep.subr.mxu0 0.0
    %3826 = vmatpush2.msra.mxu0 0.0
    %3827 = vmatprep.subr.mxu0 0.0
    %3828 = vmatpush2.msra.mxu0 0.0
    %3829 = vmatprep.subr.mxu0 0.0
    %3830 = vmatpush2.msra.mxu0 0.0
    %3831 = vmatprep.subr.mxu0 0.0
    %3832 = vmatpush2.msra.mxu0 0.0
    %3833 = vmatprep.subr.mxu0 0.0
    %3834 = vmatpush2.msra.mxu0 0.0
    %3835 = vmatprep.subr.mxu0 0.0
    %3836 = vmatpush2.msra.mxu0 0.0
    %3837 = vmatprep.subr.mxu0 0.0
    %3838 = vmatpush2.msra.mxu0 0.0
    %3839 = vmatprep.subr.mxu0 0.0
    %3840 = vmatpush2.msra.mxu0 0.0
    %3841 = vmatprep.subr.mxu0 0.0
    %3842 = vmatpush2.msra.mxu0 0.0
    %3843 = vmatprep.subr.mxu0 0.0
    %3844 = vmatpush2.msra.mxu0 0.0
    %3845 = vmatprep.subr.mxu0 0.0
    %3846 = vmatpush2.msra.mxu0 0.0
    %3847 = vmatprep.subr.mxu0 0.0
    %3848 = vmatpush2.msra.mxu0 0.0
    %3849 = vmatprep.mubr.f32.mxu0 0.0
    %3850 = vmatmul.mubr.f32.gmra.mxu0 %v3780
    %v3851 = vpop.f32.mrf.mxu0
    %v3852 = vadd.f32 %v3777, %v3851
    %v3853 = vpop.f32.mrf.mxu0
    %3854 = vmatprep.mubr.f32.mxu0 0.0
    %3855 = vmatmul.mubr.f32.gmra.mxu0 %v3783
    %v3856 = vpop.f32.mrf.mxu0
    %v3857 = vadd.f32 %v3777, %v3856
    %v3858 = vpop.f32.mrf.mxu0
    %3859 = vdwg.mxu0
    %v3860 = vmul.f32 %v3852, 0.5
    %v3861 = vmul.f32 %v3857, 0.5
    %v3862 = vmul.f32 %v3852, 0.044715
    %v3863 = vmul.f32 %v3857, 0.044715
    %v3864 = vmul.f32 %v3862, %v3852
    %v3865 = vmul.f32 %v3863, %v3857
    %v3866 = vmul.f32 %v3864, %v3852
    %v3867 = vmul.f32 %v3865, %v3857
    %v3868 = vadd.f32 %v3852, %v3866
    %v3869 = vadd.f32 %v3857, %v3867
    %v3870 = vmul.f32 %v3868, 0.7978846
    %v3871 = vmul.f32 %v3869, 0.7978846
    %v3872 = vtanh.pop %v3870
    %v3873 = vtanh.pop %v3871
    %v3874 = vadd.f32 %v3872, 1.0
    %v3875 = vadd.f32 %v3873, 1.0
    %v3876 = vmul.f32 %v3860, %v3874
    %v3877 = vmul.f32 %v3861, %v3875
    %s3878 = scalar_lea.vmem %s12, 64
    %v3879 = vld [vmem:[%s3878] sm:$0xff]
    %v3880 = vld [vmem:[%s3878 + $0x8] sm:$0xff]
    %v3881 = vld [vmem:[%s3878 + $0x10] sm:$0xff]
    %v3882 = vld [vmem:[%s3878 + $0x18] sm:$0xff]
    %v3883 = vld [vmem:[%s3878 + $0x20] sm:$0xff]
    %v3884 = vld [vmem:[%s3878 + $0x28] sm:$0xff]
    %v3885 = vld [vmem:[%s3878 + $0x30] sm:$0xff]
    %v3886 = vld [vmem:[%s3878 + $0x38] sm:$0xff]
    %s3887 = scalar_lea.vmem [#allocation17], 1
    %v3888 = vld [vmem:[%s3887] sm:$0x1]
    %v3890 = vlaneseq
    %v3891 = vshrl.u32 %v3890, 7
    %v3892 = vsub.s32 0, %v3891
    %v3893 = vrot.slane %v3888, %v3892
    %v3896 = vsel %vm2038, %v3876, 0
    %v3899 = vsel %vm2038, %v3877, 0
    %3901 = vmatprep.subr.mxu0 0.0
    %3902 = vmatpush1.msra.mxu0 0.0
    %3903 = vmatprep.subr.mxu0 0.0
    %3904 = vmatpush1.msra.mxu0 0.0
    %3905 = vmatprep.subr.mxu0 0.0
    %3906 = vmatpush1.msra.mxu0 0.0
    %3907 = vmatprep.subr.mxu0 0.0
    %3908 = vmatpush1.msra.mxu0 0.0
    %3909 = vmatprep.subr.mxu0 0.0
    %3910 = vmatpush1.msra.mxu0 0.0
    %3911 = vmatprep.subr.mxu0 0.0
    %3912 = vmatpush1.msra.mxu0 0.0
    %3913 = vmatprep.subr.mxu0 0.0
    %3914 = vmatpush1.msra.mxu0 0.0
    %3915 = vmatprep.subr.mxu0 0.0
    %3916 = vmatpush1.msra.mxu0 0.0
    %3917 = vmatprep.subr.mxu0 0.0
    %3918 = vmatpush1.msra.mxu0 %v3886
    %3919 = vmatprep.subr.mxu0 0.0
    %3920 = vmatpush1.msra.mxu0 %v3885
    %3921 = vmatprep.subr.mxu0 0.0
    %3922 = vmatpush1.msra.mxu0 %v3884
    %3923 = vmatprep.subr.mxu0 0.0
    %3924 = vmatpush1.msra.mxu0 %v3883
    %3925 = vmatprep.subr.mxu0 0.0
    %3926 = vmatpush1.msra.mxu0 %v3882
    %3927 = vmatprep.subr.mxu0 0.0
    %3928 = vmatpush1.msra.mxu0 %v3881
    %3929 = vmatprep.subr.mxu0 0.0
    %3930 = vmatpush1.msra.mxu0 %v3880
    %3931 = vmatprep.subr.mxu0 0.0
    %3932 = vmatpush1.msra.mxu0 %v3879
    %3933 = vmatprep.subr.mxu0 0.0
    %3934 = vmatpush2.msra.mxu0 0.0
    %3935 = vmatprep.subr.mxu0 0.0
    %3936 = vmatpush2.msra.mxu0 0.0
    %3937 = vmatprep.subr.mxu0 0.0
    %3938 = vmatpush2.msra.mxu0 0.0
    %3939 = vmatprep.subr.mxu0 0.0
    %3940 = vmatpush2.msra.mxu0 0.0
    %3941 = vmatprep.subr.mxu0 0.0
    %3942 = vmatpush2.msra.mxu0 0.0
    %3943 = vmatprep.subr.mxu0 0.0
    %3944 = vmatpush2.msra.mxu0 0.0
    %3945 = vmatprep.subr.mxu0 0.0
    %3946 = vmatpush2.msra.mxu0 0.0
    %3947 = vmatprep.subr.mxu0 0.0
    %3948 = vmatpush2.msra.mxu0 0.0
    %3949 = vmatprep.subr.mxu0 0.0
    %3950 = vmatpush2.msra.mxu0 0.0
    %3951 = vmatprep.subr.mxu0 0.0
    %3952 = vmatpush2.msra.mxu0 0.0
    %3953 = vmatprep.subr.mxu0 0.0
    %3954 = vmatpush2.msra.mxu0 0.0
    %3955 = vmatprep.subr.mxu0 0.0
    %3956 = vmatpush2.msra.mxu0 0.0
    %3957 = vmatprep.subr.mxu0 0.0
    %3958 = vmatpush2.msra.mxu0 0.0
    %3959 = vmatprep.subr.mxu0 0.0
    %3960 = vmatpush2.msra.mxu0 0.0
    %3961 = vmatprep.subr.mxu0 0.0
    %3962 = vmatpush2.msra.mxu0 0.0
    %3963 = vmatprep.subr.mxu0 0.0
    %3964 = vmatpush2.msra.mxu0 0.0
    %3965 = vmatprep.mubr.f32.mxu0 0.0
    %3966 = vmatmul.mubr.f32.gmra.mxu0 %v3896
    %v3967 = vpop.f32.mrf.mxu0
    %v3968 = vadd.f32 %v3893, %v3967
    %v3969 = vpop.f32.mrf.mxu0
    %3970 = vmatprep.mubr.f32.mxu0 0.0
    %3971 = vmatmul.mubr.f32.gmra.mxu0 %v3899
    %v3972 = vpop.f32.mrf.mxu0
    %v3973 = vadd.f32 %v3893, %v3972
    %v3974 = vpop.f32.mrf.mxu0
    %3975 = vdwg.mxu0
    %v3976 = vadd.f32 %v3968, %v3764
    %v3977 = vadd.f32 %v3973, %v3765
    %s3978 = scalar_lea.vmem [#allocation19], 1
    %v3979 = vld [vmem:[%s3978] sm:$0x1]
    %s3980 = scalar_lea.vmem [#allocation20], 1
    %v3981 = vld [vmem:[%s3980] sm:$0x1]
    %v3982 = vsel %vm263, %v3976, 0.0
    %3983 = vadd.xlane.f32.xlu0 %v3982
    %v3984 = vpop.xlane.xlu0 %3983
    %v3985 = vsel %vm263, %v3977, 0.0
    %3986 = vadd.xlane.f32.xlu0 %v3985
    %v3987 = vpop.xlane.xlu0 %3986
    %v3988 = vmul.f32 %v3984, %v270
    %v3989 = vmul.f32 %v3987, %v270
    %v3990 = vsub.f32 %v3976, %v3988
    %v3991 = vsub.f32 %v3977, %v3989
    %v3992 = vmul.f32 %v3990, %v3990
    %v3993 = vmul.f32 %v3991, %v3991
    %v3994 = vsel %vm263, %v3992, 0.0
    %3995 = vadd.xlane.f32.xlu0 %v3994
    %v3996 = vpop.xlane.xlu0 %3995
    %v3997 = vsel %vm263, %v3993, 0.0
    %3998 = vadd.xlane.f32.xlu0 %v3997
    %v3999 = vpop.xlane.xlu0 %3998
    %v4000 = vmul.f32 %v3996, %v270
    %v4001 = vmul.f32 %v3999, %v270
    %v4002 = vadd.f32 %v4000, 1e-12
    %v4003 = vadd.f32 %v4001, 1e-12
    %v4004 = vrsqrt.pop %v4002
    %v4005 = vrsqrt.pop %v4003
    %v4006 = vmul.f32 %v3990, %v4004
    %v4007 = vmul.f32 %v3991, %v4005
    %v4009 = vlaneseq
    %v4010 = vshrl.u32 %v4009, 7
    %v4011 = vsub.s32 0, %v4010
    %v4012 = vrot.slane %v3979, %v4011
    %v4014 = vmul.f32 %v4006, %v4012
    %v4015 = vmul.f32 %v4007, %v4012
    %v4017 = vlaneseq
    %v4018 = vshrl.u32 %v4017, 7
    %v4019 = vsub.s32 0, %v4018
    %v4020 = vrot.slane %v3981, %v4019
    %v4022 = vadd.f32 %v4014, %v4020
    %v4023 = vadd.f32 %v4015, %v4020
    %v4025 = vrot.slane %v4023, 7
    %vm4027 = vcmask 1040384
    %v4028 = vsel %vm4027, %v4022, %v4025
    %v4029 = vld [vmem:[#allocation22] sm:$0xff]
    %v4030 = vld [vmem:[#allocation22 + $0x8] sm:$0xff]
    %v4031 = vld [vmem:[#allocation22 + $0x10] sm:$0xff]
    %v4032 = vld [vmem:[#allocation22 + $0x18] sm:$0xff]
    %v4033 = vld [vmem:[#allocation23] sm:$0x1]
    %v4035 = vlaneseq
    %v4036 = vshrl.u32 %v4035, 7
    %v4037 = vsub.s32 0, %v4036
    %v4038 = vrot.slane %v4033, %v4037
    %v4041 = vsel %vm263, %v4028, 0
    %4043 = vmatprep.subr.mxu0 0.0
    %4044 = vmatpush1.msra.mxu0 0.0
    %4045 = vmatprep.subr.mxu0 0.0
    %4046 = vmatpush1.msra.mxu0 0.0
    %4047 = vmatprep.subr.mxu0 0.0
    %4048 = vmatpush1.msra.mxu0 0.0
    %4049 = vmatprep.subr.mxu0 0.0
    %4050 = vmatpush1.msra.mxu0 0.0
    %4051 = vmatprep.subr.mxu0 0.0
    %4052 = vmatpush1.msra.mxu0 0.0
    %4053 = vmatprep.subr.mxu0 0.0
    %4054 = vmatpush1.msra.mxu0 0.0
    %4055 = vmatprep.subr.mxu0 0.0
    %4056 = vmatpush1.msra.mxu0 0.0
    %4057 = vmatprep.subr.mxu0 0.0
    %4058 = vmatpush1.msra.mxu0 0.0
    %4059 = vmatprep.subr.mxu0 0.0
    %4060 = vmatpush1.msra.mxu0 0.0
    %4061 = vmatprep.subr.mxu0 0.0
    %4062 = vmatpush1.msra.mxu0 0.0
    %4063 = vmatprep.subr.mxu0 0.0
    %4064 = vmatpush1.msra.mxu0 0.0
    %4065 = vmatprep.subr.mxu0 0.0
    %4066 = vmatpush1.msra.mxu0 0.0
    %4067 = vmatprep.subr.mxu0 0.0
    %4068 = vmatpush1.msra.mxu0 %v4032
    %4069 = vmatprep.subr.mxu0 0.0
    %4070 = vmatpush1.msra.mxu0 %v4031
    %4071 = vmatprep.subr.mxu0 0.0
    %4072 = vmatpush1.msra.mxu0 %v4030
    %4073 = vmatprep.subr.mxu0 0.0
    %4074 = vmatpush1.msra.mxu0 %v4029
    %4075 = vmatprep.subr.mxu0 0.0
    %4076 = vmatpush2.msra.mxu0 0.0
    %4077 = vmatprep.subr.mxu0 0.0
    %4078 = vmatpush2.msra.mxu0 0.0
    %4079 = vmatprep.subr.mxu0 0.0
    %4080 = vmatpush2.msra.mxu0 0.0
    %4081 = vmatprep.subr.mxu0 0.0
    %4082 = vmatpush2.msra.mxu0 0.0
    %4083 = vmatprep.subr.mxu0 0.0
    %4084 = vmatpush2.msra.mxu0 0.0
    %4085 = vmatprep.subr.mxu0 0.0
    %4086 = vmatpush2.msra.mxu0 0.0
    %4087 = vmatprep.subr.mxu0 0.0
    %4088 = vmatpush2.msra.mxu0 0.0
    %4089 = vmatprep.subr.mxu0 0.0
    %4090 = vmatpush2.msra.mxu0 0.0
    %4091 = vmatprep.subr.mxu0 0.0
    %4092 = vmatpush2.msra.mxu0 0.0
    %4093 = vmatprep.subr.mxu0 0.0
    %4094 = vmatpush2.msra.mxu0 0.0
    %4095 = vmatprep.subr.mxu0 0.0
    %4096 = vmatpush2.msra.mxu0 0.0
    %4097 = vmatprep.subr.mxu0 0.0
    %4098 = vmatpush2.msra.mxu0 0.0
    %4099 = vmatprep.subr.mxu0 0.0
    %4100 = vmatpush2.msra.mxu0 0.0
    %4101 = vmatprep.subr.mxu0 0.0
    %4102 = vmatpush2.msra.mxu0 0.0
    %4103 = vmatprep.subr.mxu0 0.0
    %4104 = vmatpush2.msra.mxu0 0.0
    %4105 = vmatprep.subr.mxu0 0.0
    %4106 = vmatpush2.msra.mxu0 0.0
    %4107 = vmatprep.mubr.f32.mxu0 0.0
    %4108 = vmatmul.mubr.f32.gmra.mxu0 %v4041
    %v4109 = vpop.f32.mrf.mxu0
    %v4110 = vadd.f32 %v4038, %v4109
    %v4111 = vpop.f32.mrf.mxu0
    %4112 = vdwg.mxu0
    %v4113 = vtanh.pop %v4110
    %v4114 = vld [vmem:[%s18] sm:$0xff]
    %v4115 = vld [vmem:[%s18 + $0x8] sm:$0xff]
    %v4116 = vld [vmem:[%s18 + $0x10] sm:$0xff]
    %v4117 = vld [vmem:[%s18 + $0x18] sm:$0xff]
    %v4118 = vld [vmem:[#allocation25] sm:$0x1]
    %v4120 = vlaneseq
    %v4121 = vshrl.u32 %v4120, 7
    %v4122 = vsub.s32 0, %v4121
    %v4123 = vrot.slane %v4118, %v4122
    %v4126 = vsel %vm263, %v4113, 0
    %4128 = vmatprep.subr.mxu0 0.0
    %4129 = vmatpush1.msra.mxu0 0.0
    %4130 = vmatprep.subr.mxu0 0.0
    %4131 = vmatpush1.msra.mxu0 0.0
    %4132 = vmatprep.subr.mxu0 0.0
    %4133 = vmatpush1.msra.mxu0 0.0
    %4134 = vmatprep.subr.mxu0 0.0
    %4135 = vmatpush1.msra.mxu0 0.0
    %4136 = vmatprep.subr.mxu0 0.0
    %4137 = vmatpush1.msra.mxu0 0.0
    %4138 = vmatprep.subr.mxu0 0.0
    %4139 = vmatpush1.msra.mxu0 0.0
    %4140 = vmatprep.subr.mxu0 0.0
    %4141 = vmatpush1.msra.mxu0 0.0
    %4142 = vmatprep.subr.mxu0 0.0
    %4143 = vmatpush1.msra.mxu0 0.0
    %4144 = vmatprep.subr.mxu0 0.0
    %4145 = vmatpush1.msra.mxu0 0.0
    %4146 = vmatprep.subr.mxu0 0.0
    %4147 = vmatpush1.msra.mxu0 0.0
    %4148 = vmatprep.subr.mxu0 0.0
    %4149 = vmatpush1.msra.mxu0 0.0
    %4150 = vmatprep.subr.mxu0 0.0
    %4151 = vmatpush1.msra.mxu0 0.0
    %4152 = vmatprep.subr.mxu0 0.0
    %4153 = vmatpush1.msra.mxu0 %v4117
    %4154 = vmatprep.subr.mxu0 0.0
    %4155 = vmatpush1.msra.mxu0 %v4116
    %4156 = vmatprep.subr.mxu0 0.0
    %4157 = vmatpush1.msra.mxu0 %v4115
    %4158 = vmatprep.subr.mxu0 0.0
    %4159 = vmatpush1.msra.mxu0 %v4114
    %4160 = vmatprep.subr.mxu0 0.0
    %4161 = vmatpush2.msra.mxu0 0.0
    %4162 = vmatprep.subr.mxu0 0.0
    %4163 = vmatpush2.msra.mxu0 0.0
    %4164 = vmatprep.subr.mxu0 0.0
    %4165 = vmatpush2.msra.mxu0 0.0
    %4166 = vmatprep.subr.mxu0 0.0
    %4167 = vmatpush2.msra.mxu0 0.0
    %4168 = vmatprep.subr.mxu0 0.0
    %4169 = vmatpush2.msra.mxu0 0.0
    %4170 = vmatprep.subr.mxu0 0.0
    %4171 = vmatpush2.msra.mxu0 0.0
    %4172 = vmatprep.subr.mxu0 0.0
    %4173 = vmatpush2.msra.mxu0 0.0
    %4174 = vmatprep.subr.mxu0 0.0
    %4175 = vmatpush2.msra.mxu0 0.0
    %4176 = vmatprep.subr.mxu0 0.0
    %4177 = vmatpush2.msra.mxu0 0.0
    %4178 = vmatprep.subr.mxu0 0.0
    %4179 = vmatpush2.msra.mxu0 0.0
    %4180 = vmatprep.subr.mxu0 0.0
    %4181 = vmatpush2.msra.mxu0 0.0
    %4182 = vmatprep.subr.mxu0 0.0
    %4183 = vmatpush2.msra.mxu0 0.0
    %4184 = vmatprep.subr.mxu0 0.0
    %4185 = vmatpush2.msra.mxu0 0.0
    %4186 = vmatprep.subr.mxu0 0.0
    %4187 = vmatpush2.msra.mxu0 0.0
    %4188 = vmatprep.subr.mxu0 0.0
    %4189 = vmatpush2.msra.mxu0 0.0
    %4190 = vmatprep.subr.mxu0 0.0
    %4191 = vmatpush2.msra.mxu0 0.0
    %4192 = vmatprep.mubr.f32.mxu0 0.0
    %4193 = vmatmul.mubr.f32.gmra.mxu0 %v4126
    %v4194 = vpop.f32.mrf.mxu0
    %v4195 = vadd.f32 %v4123, %v4194
    %v4196 = vpop.f32.mrf.mxu0
    %4197 = vdwg.mxu0
    %4198 = vst [vmem:[#allocation26] sm:$0x3] %v4195
    // Predicated region
    $region142: #{tpu_custom_call.1} parent=1 // pred_check
      _
    $region143: #{tpu_custom_call.1} parent=1 // pred_check_branch
      %4200 = sbr.rel (0) target = $region145
    $region144: #{tpu_custom_call.1} parent=1 // pred_region
      %s4202 = ssub.s32 32, 32
      %4203 = vsyncadd [#allocation4], %s4202
      %s4205 = sshll.u32 [#allocation26], 4
      %s4206 = int_to_ptr.vmem [resolvable:$true] %s4205
      %4208 = dma.vmem_to_hbm [thread:$0]  %s4206, 32, %s20, [#allocation4]
    $region145: #{tpu_custom_call.1} parent=1 // pred_fallthru
      _
    // Predicated region
    $region146: #{tpu_custom_call.1} parent=1 // pred_check
      _
    $region147: #{tpu_custom_call.1} parent=1 // pred_check_branch
      %4210 = sbr.rel (0) target = $region149
    $region148: #{tpu_custom_call.1} parent=1 // pred_region
      %4211 = dma.done [#allocation4], 32
    $region149: #{tpu_custom_call.1} parent=1 // pred_fallthru
      _
    %4212 = vsyncpa [#allocation3], 1
    %4213 = vsyncpa [#allocation6], 1
    %4214 = vsyncpa [#allocation9], 1
    %4215 = vsyncpa [#allocation12], 1
    %4216 = vsyncpa [#allocation15], 1
    %4217 = vsyncpa [#allocation18], 1
    %4218 = vsyncpa [#allocation21], 1
    %4219 = vsyncpa [#allocation24], 1
    %4220 = vsyncpa [#allocation4], 1

</llo_original>
